<compile_context>
chip_gen: v6e
topology: v6e:2x2x1
jax: 0.10.0
libtpu: 0.0.40
codegen_flags: <defaults>
</compile_context>

<pallas_src>
import math
import numpy as np
import jax
import jax.numpy as jnp
from jax import lax
from jax.experimental import pallas as pl
from jax.experimental.pallas import tpu as pltpu


# ----------------------------------------------------------------------------
# Filter / constant-matrix setup (host-side numpy)
# ----------------------------------------------------------------------------
def kaiser_sinc_filter1d(cutoff, half_width, kernel_size):
    """Matches BigVGAN's kaiser_sinc_filter1d (torch.kaiser_window periodic=False)."""
    even = kernel_size % 2 == 0
    half_size = kernel_size // 2
    delta_f = 4.0 * half_width
    A = 2.285 * (half_size - 1) * math.pi * delta_f + 7.95
    if A > 50.0:
        beta = 0.1102 * (A - 8.7)
    elif A >= 21.0:
        beta = 0.5842 * (A - 21.0) ** 0.4 + 0.07886 * (A - 21.0)
    else:
        beta = 0.0
    window = np.kaiser(kernel_size, beta)
    if even:
        time = np.arange(-half_size, half_size) + 0.5
    else:
        time = np.arange(kernel_size) - half_size
    filt = 2.0 * cutoff * window * np.sinc(2.0 * cutoff * time)
    filt = filt / filt.sum()
    return filt.astype(np.float32)


def build_resampler_mats(Lb, filt):
    """Constant banded matrices for a block of Lb samples.

    S_up: (Lb, 2*Lb)  —  x_blk @ S_up = [A | B], the even/odd polyphases of
          UpSample1d(ratio=2, kernel=12) (replicate clamping at block edges).
    S_dn: (2*Lb, Lb)  —  [A | B] @ S_dn = DownSample1d(ratio=2, kernel=12),
          including the cross-phase replicate padding of the interleaved
          upsampled signal (left -> A[0], right -> B[Lb-1]).

    The kernel re-imposes the *true* sequence-boundary conditions separately,
    so the block-edge clamping here only ever touches halo columns.
    """
    f = np.asarray(filt, np.float64)
    S_up = np.zeros((Lb, 2 * Lb), np.float64)
    S_dn = np.zeros((2 * Lb, Lb), np.float64)
    for i in range(Lb):
        for j in range(6):
            # A[i] = sum_j 2*f[2j+1] * x[clamp(i+2-j)],  B[i] uses 2*f[2j], i+3-j
            ra = min(max(i + 2 - j, 0), Lb - 1)
            rb = min(max(i + 3 - j, 0), Lb - 1)
            S_up[ra, i] += 2.0 * f[2 * j + 1]
            S_up[rb, Lb + i] += 2.0 * f[2 * j]
            # y[i] = sum_j f[2j+1]*A_pad[i+j] + f[2j]*B_pad[i+j]
            mA = i + j - 2
            rA = 0 if mA < 0 else (2 * Lb - 1 if mA > Lb - 1 else mA)
            S_dn[rA, i] += f[2 * j + 1]
            mB = i + j - 3
            rB = 0 if mB < 0 else (2 * Lb - 1 if mB > Lb - 1 else Lb + mB)
            S_dn[rB, i] += f[2 * j]
    return S_up.astype(np.float32), S_dn.astype(np.float32)


# ----------------------------------------------------------------------------
# Pallas kernel
# ----------------------------------------------------------------------------
def make_ampblock2_kernel(C, Lt, H, L_true, dilations):
    """One grid step = one batch element x one overlapping L-window of Lt+2H."""
    Lb = Lt + 2 * H

    def kernel(x_ref, su_ref, sd_ref, w_ref, b_ref, ta_ref, hi_ref, o_ref):
        # x_ref: (1, 1, C, Lb); su: (Lb, 2Lb) f32; sd: (2Lb, Lb) f32
        # w_ref: (NL, C, 3C) bf16; b_/ta_/hi_ref: (NL, C, 1) f32; o_ref: (1, C, Lt)
        t = pl.program_id(1)
        g0 = t * Lt - H                                    # global index of column 0
        col = g0 + lax.broadcasted_iota(jnp.int32, (1, Lb), 1)
        col2 = jnp.concatenate([col, col], axis=1)          # (1, 2Lb) for [A|B]
        in_rng = jnp.logical_and(col >= 0, col < L_true)

        su = su_ref[...]
        sd = sd_ref[...]
        x = x_ref[0, 0].astype(jnp.float32)                 # running residual (C, Lb)

        for l, d in enumerate(dilations):
            two_a = ta_ref[l]                               # (C, 1) = 2 * alpha
            hinv = hi_ref[l]                                # (C, 1) = 0.5 / (alpha + eps)

            # --- true-boundary replicate padding of the resampler input
            xs = jnp.where(col < 0, x[:, H:H + 1], x)                       # x[global 0]
            xs = jnp.where(col >= L_true, xs[:, Lt + H - 1:Lt + H], xs)     # x[global L-1]

            # --- UpSample1d(x2, k=12): both polyphases in one MXU call -> [A | B]
            ab = jnp.dot(xs, su, preferred_element_type=jnp.float32)        # (C, 2Lb)

            # --- replicate the interleaved upsampled signal at the true boundary
            #     (left replicates A[global 0], right replicates B[global L-1])
            ab = jnp.where(col2 < 0, ab[:, H:H + 1], ab)
            ab = jnp.where(col2 >= L_true, ab[:, Lb + Lt + H - 1:Lb + Lt + H], ab)

            # --- Snake via cos identity: u + (1/(2a)) * (1 - cos(2a u))
            ab = ab + hinv * (1.0 - jnp.cos(two_a * ab))

            # --- DownSample1d(x2, k=12) on the MXU
            y = jnp.dot(ab, sd, preferred_element_type=jnp.float32)         # (C, Lb)

            # --- dilated Conv1d(C, C, 3, dilation=d, padding=d), zero padding
            #     at the TRUE boundary; fused into one bf16 MXU matmul.
            y = jnp.where(in_rng, y, 0.0).astype(jnp.bfloat16)
            z = jnp.zeros((C, d), jnp.bfloat16)
            yz = jnp.concatenate([z, y, z], axis=1)                         # (C, Lb+2d)
            stacked = jnp.concatenate(
                [yz[:, k * d:k * d + Lb] for k in range(3)], axis=0)        # (3C, Lb)
            conv = jnp.dot(w_ref[l], stacked,
                           preferred_element_type=jnp.float32)              # (C, Lb)

            # --- residual
            x = x + conv + b_ref[l]

        # lane-dense store of the interior Lt columns only
        o_ref[0] = x[:, H:H + Lt].astype(o_ref.dtype)

    return kernel


def ampblock2_forward(x, W, bias, alpha, dilations, filt, *, block_l=None, halo=32):
    """x: (B, C, L); W: (NL, Cout, Cin, K) torch layout; bias/alpha: (NL, C)."""
    B, C, L = x.shape
    NL, _, _, K = W.shape
    assert K == 3

    if block_l is None:
        block_l = L
        for cand in (512, 384, 256, 128):
            if L % cand == 0:
                block_l = cand
                break
    Lt, H = block_l, halo
    Lb = Lt + 2 * H
    NT = L // Lt
    assert L % Lt == 0, "pad L to a multiple of the L-tile"  # TODO(synk): general L via wrapper pad+crop
    assert Lt % 128 == 0 or Lt == L, "keep the L-tile lane-dense (multiple of 128)"
    assert H >= sum(6 + d for d in dilations), "halo must cover the cumulative receptive field"

    # fused conv weights: (NL, C, K*C) with tap-major blocks of C input channels (bf16 for MXU)
    W2 = jnp.concatenate([W[:, :, :, k] for k in range(K)], axis=2).astype(jnp.bfloat16)
    b_ = bias[..., None].astype(jnp.float32)                       # (NL, C, 1)
    two_a = (2.0 * alpha)[..., None].astype(jnp.float32)           # (NL, C, 1)
    hinv = (0.5 / (alpha + 1e-9))[..., None].astype(jnp.float32)   # (NL, C, 1)

    su_np, sd_np = build_resampler_mats(Lb, filt)
    su = jnp.asarray(su_np)                                        # (Lb, 2Lb) f32
    sd = jnp.asarray(sd_np)                                        # (2Lb, Lb) f32

    # Overlapping L-windows with halo. The content of halo columns outside the
    # true sequence is irrelevant: the kernel re-imposes the true boundary
    # conditions from global column indices.
    x_ext = jnp.pad(x, ((0, 0), (0, 0), (H, H)))
    x_tiles = jnp.stack([x_ext[:, :, t * Lt:t * Lt + Lb] for t in range(NT)],
                        axis=1)                                    # (B, NT, C, Lb)

    kernel = make_ampblock2_kernel(C, Lt, H, L, dilations)
    return pl.pallas_call(
        kernel,
        out_shape=jax.ShapeDtypeStruct((B, C, L), x.dtype),
        grid=(B, NT),
        in_specs=[
            pl.BlockSpec((1, 1, C, Lb), lambda b, t: (b, t, 0, 0)),
            pl.BlockSpec((Lb, 2 * Lb), lambda b, t: (0, 0)),
            pl.BlockSpec((2 * Lb, Lb), lambda b, t: (0, 0)),
            pl.BlockSpec((NL, C, K * C), lambda b, t: (0, 0, 0)),
            pl.BlockSpec((NL, C, 1), lambda b, t: (0, 0, 0)),
            pl.BlockSpec((NL, C, 1), lambda b, t: (0, 0, 0)),
            pl.BlockSpec((NL, C, 1), lambda b, t: (0, 0, 0)),
        ],
        out_specs=pl.BlockSpec((1, C, Lt), lambda b, t: (b, 0, t)),
        compiler_params=pltpu.CompilerParams(
            dimension_semantics=("parallel", "parallel"),
            vmem_limit_bytes=48 * 1024 * 1024),
    )(x_tiles, su, sd, W2, b_, two_a, hinv)


# ----------------------------------------------------------------------------
# Pure-JAX reference (independent formulation) for verification
# ----------------------------------------------------------------------------
def _ref_snake(x, alpha):
    a = alpha[None, :, None]
    return x + (1.0 / (a + 1e-9)) * jnp.sin(a * x) ** 2


def _ref_activation1d(x, alpha, filt):
    B, C, L = x.shape
    f = jnp.asarray(filt, jnp.float32)
    # UpSample1d: replicate-pad 5, zero-stuff, correlate, crop 15:15, scale x2
    xp = jnp.pad(x, ((0, 0), (0, 0), (5, 5)), mode="edge")
    Lp = L + 10
    xz = jnp.zeros((B, C, 2 * (Lp - 1) + 1), x.dtype).at[..., ::2].set(xp)
    T = 2 * (Lp - 1) + 12
    xzp = jnp.pad(xz, ((0, 0), (0, 0), (11, 11)))
    y = sum(2.0 * f[k] * xzp[..., 11 - k: 11 - k + T] for k in range(12))
    u = y[..., 15:15 + 2 * L]
    # Snake
    u = _ref_snake(u, alpha)
    # DownSample1d: replicate-pad (5, 6), stride-2 correlation
    up = jnp.pad(u, ((0, 0), (0, 0), (5, 6)), mode="edge")
    out = sum(f[k] * up[..., k:][..., ::2][..., :L] for k in range(12))
    return out


def _ref_conv1d(x, w, b, d):
    out = jax.lax.conv_general_dilated(
        x, w, window_strides=(1,), padding=[(d, d)], rhs_dilation=(d,),
        dimension_numbers=("NCH", "OIH", "NCH"))
    return out + b[None, :, None]


def ref_forward(x, W, bias, alpha, dilations, filt):
    for l, d in enumerate(dilations):
        xt = _ref_activation1d(x, alpha[l], filt)
        xt = _ref_conv1d(xt, W[l], bias[l], d)
        x = xt + x
    return x


# ----------------------------------------------------------------------------
if __name__ == "__main__":
    B, C, L = 2, 8, 512          # small, but long enough to exercise 4 L-tiles
    dilations = (1, 3, 5)
    NL, K = len(dilations), 3

    key = jax.random.PRNGKey(0)
    k1, k2, k3, k4 = jax.random.split(key, 4)
    x = jax.random.normal(k1, (B, C, L), jnp.float32)
    # Conv1d weights (weight_norm folded): init_weights -> N(0, 0.01), torch layout (out,in,k)
    W = 0.01 * jax.random.normal(k2, (NL, C, C, K), jnp.float32)
    bias = 0.01 * jax.random.normal(k3, (NL, C), jnp.float32)
    # Snake alpha (alpha_logscale=False => init 1.0); perturbed to exercise broadcasting
    alpha = 1.0 + 0.1 * jax.random.uniform(k4, (NL, C), jnp.float32)

    # UpSample1d / DownSample1d (ratio=2, k=12) share the kaiser-sinc filter
    filt = kaiser_sinc_filter1d(cutoff=0.25, half_width=0.3, kernel_size=12)

    out = ampblock2_forward(x, W, bias, alpha, dilations, filt, block_l=128, halo=32)
    out = jax.block_until_ready(out)

    ref = jax.block_until_ready(ref_forward(x, W, bias, alpha, dilations, filt))
    np.testing.assert_allclose(np.asarray(out), np.asarray(ref), rtol=3e-3, atol=3e-3)

    print("KERNEL_OK")
</pallas_src>

<mosaic_0001>
module attributes {stable_mosaic.version = 11 : i64} {
  func.func @kernel(%arg0: i32, %arg1: i32, %arg2: memref<1x1x8x192xf32, #tpu.memory_space<vmem>>, %arg3: memref<192x384xf32, #tpu.memory_space<vmem>>, %arg4: memref<384x192xf32, #tpu.memory_space<vmem>>, %arg5: memref<3x8x24xbf16, #tpu.memory_space<vmem>>, %arg6: memref<3x8x1xf32, #tpu.memory_space<vmem>>, %arg7: memref<3x8x1xf32, #tpu.memory_space<vmem>>, %arg8: memref<3x8x1xf32, #tpu.memory_space<vmem>>, %arg9: memref<1x8x128xf32, #tpu.memory_space<vmem>>) attributes {dimension_semantics = [#tpu.dimension_semantics<parallel>, #tpu.dimension_semantics<parallel>], iteration_bounds = array<i64: 2, 4>, scalar_prefetch = 0 : i64, scratch_operands = 0 : i64, tpu.core_type = #tpu.core_type<tc>, window_params = [{transform_indices = @transform_0, window_bounds = array<i64: 1, 1, 8, 192>}, {pipeline_mode = #tpu.pipeline_mode<synchronous>, transform_indices = @transform_1, window_bounds = array<i64: 192, 384>}, {pipeline_mode = #tpu.pipeline_mode<synchronous>, transform_indices = @transform_2, window_bounds = array<i64: 384, 192>}, {pipeline_mode = #tpu.pipeline_mode<synchronous>, transform_indices = @transform_3, window_bounds = array<i64: 3, 8, 24>}, {pipeline_mode = #tpu.pipeline_mode<synchronous>, transform_indices = @transform_4, window_bounds = array<i64: 3, 8, 1>}, {pipeline_mode = #tpu.pipeline_mode<synchronous>, transform_indices = @transform_5, window_bounds = array<i64: 3, 8, 1>}, {pipeline_mode = #tpu.pipeline_mode<synchronous>, transform_indices = @transform_6, window_bounds = array<i64: 3, 8, 1>}, {transform_indices = @transform_7, window_bounds = array<i64: 1, 8, 128>}]} {
    %c128_i32 = arith.constant 128 : i32
    %0 = arith.muli %arg1, %c128_i32 : i32
    %c32_i32 = arith.constant 32 : i32
    %1 = arith.subi %0, %c32_i32 : i32
    %2 = tpu.iota {dimensions = array<i32: 1>} : vector<1x192xi32>
    %3 = vector.broadcast %1 : i32 to vector<1x192xi32>
    %4 = arith.addi %3, %2 : vector<1x192xi32>
    %5 = tpu.concatenate %4, %4 in 1 : vector<1x192xi32>, vector<1x192xi32> -> vector<1x384xi32>
    %c0_i32 = arith.constant 0 : i32
    %6 = vector.broadcast %c0_i32 : i32 to vector<1x192xi32>
    %7 = arith.cmpi sge, %4, %6 : vector<1x192xi32>
    %c512_i32 = arith.constant 512 : i32
    %8 = vector.broadcast %c512_i32 : i32 to vector<1x192xi32>
    %9 = arith.cmpi slt, %4, %8 : vector<1x192xi32>
    %10 = arith.andi %7, %9 : vector<1x192xi1>
    %c0 = arith.constant 0 : index
    %c0_0 = arith.constant 0 : index
    %11 = vector.load %arg3[%c0, %c0_0] : memref<192x384xf32, #tpu.memory_space<vmem>>, vector<192x384xf32>
    %c0_1 = arith.constant 0 : index
    %c0_2 = arith.constant 0 : index
    %12 = vector.load %arg4[%c0_1, %c0_2] : memref<384x192xf32, #tpu.memory_space<vmem>>, vector<384x192xf32>
    %c0_3 = arith.constant 0 : index
    %c0_4 = arith.constant 0 : index
    %c0_5 = arith.constant 0 : index
    %c0_6 = arith.constant 0 : index
    %13 = vector.load %arg2[%c0_3, %c0_4, %c0_5, %c0_6] : memref<1x1x8x192xf32, #tpu.memory_space<vmem>>, vector<1x1x8x192xf32>
    %14 = vector.shape_cast %13 : vector<1x1x8x192xf32> to vector<8x192xf32>
    %c0_7 = arith.constant 0 : index
    %c0_8 = arith.constant 0 : index
    %c0_9 = arith.constant 0 : index
    %15 = vector.load %arg7[%c0_7, %c0_8, %c0_9] : memref<3x8x1xf32, #tpu.memory_space<vmem>>, vector<1x8x1xf32>
    %16 = vector.shape_cast %15 : vector<1x8x1xf32> to vector<8x1xf32>
    %c0_10 = arith.constant 0 : index
    %c0_11 = arith.constant 0 : index
    %c0_12 = arith.constant 0 : index
    %17 = vector.load %arg8[%c0_10, %c0_11, %c0_12] : memref<3x8x1xf32, #tpu.memory_space<vmem>>, vector<1x8x1xf32>
    %18 = vector.shape_cast %17 : vector<1x8x1xf32> to vector<8x1xf32>
    %c0_i32_13 = arith.constant 0 : i32
    %19 = vector.broadcast %c0_i32_13 : i32 to vector<1x192xi32>
    %20 = arith.cmpi slt, %4, %19 : vector<1x192xi32>
    %21 = vector.extract_strided_slice %14 {offsets = [0, 32], sizes = [8, 1], strides = [1, 1]} : vector<8x192xf32> to vector<8x1xf32>
    %22 = vector.shape_cast %20 : vector<1x192xi1> to vector<1x192xi1>
    %23 = vector.broadcast %22 : vector<1x192xi1> to vector<8x192xi1>
    %24 = vector.shape_cast %21 : vector<8x1xf32> to vector<8x1xf32>
    %25 = vector.broadcast %24 : vector<8x1xf32> to vector<8x192xf32>
    %26 = arith.select %23, %25, %14 : vector<8x192xi1>, vector<8x192xf32>
    %c512_i32_14 = arith.constant 512 : i32
    %27 = vector.broadcast %c512_i32_14 : i32 to vector<1x192xi32>
    %28 = arith.cmpi sge, %4, %27 : vector<1x192xi32>
    %29 = vector.extract_strided_slice %26 {offsets = [0, 159], sizes = [8, 1], strides = [1, 1]} : vector<8x192xf32> to vector<8x1xf32>
    %30 = vector.shape_cast %28 : vector<1x192xi1> to vector<1x192xi1>
    %31 = vector.broadcast %30 : vector<1x192xi1> to vector<8x192xi1>
    %32 = vector.shape_cast %29 : vector<8x1xf32> to vector<8x1xf32>
    %33 = vector.broadcast %32 : vector<8x1xf32> to vector<8x192xf32>
    %34 = arith.select %31, %33, %26 : vector<8x192xi1>, vector<8x192xf32>
    %cst = arith.constant dense<0.000000e+00> : vector<8x384xf32>
    %35 = tpu.matmul %34, %11, %cst {dimension_numbers = #tpu.dot_dimension_numbers<[1], [0], [0], [1], [0, 0, 1, 1], [], []>} : vector<8x192xf32>, vector<192x384xf32>, vector<8x384xf32> -> vector<8x384xf32>
    %c0_i32_15 = arith.constant 0 : i32
    %36 = vector.broadcast %c0_i32_15 : i32 to vector<1x384xi32>
    %37 = arith.cmpi slt, %5, %36 : vector<1x384xi32>
    %38 = vector.extract_strided_slice %35 {offsets = [0, 32], sizes = [8, 1], strides = [1, 1]} : vector<8x384xf32> to vector<8x1xf32>
    %39 = vector.shape_cast %37 : vector<1x384xi1> to vector<1x384xi1>
    %40 = vector.broadcast %39 : vector<1x384xi1> to vector<8x384xi1>
    %41 = vector.shape_cast %38 : vector<8x1xf32> to vector<8x1xf32>
    %42 = vector.broadcast %41 : vector<8x1xf32> to vector<8x384xf32>
    %43 = arith.select %40, %42, %35 : vector<8x384xi1>, vector<8x384xf32>
    %c512_i32_16 = arith.constant 512 : i32
    %44 = vector.broadcast %c512_i32_16 : i32 to vector<1x384xi32>
    %45 = arith.cmpi sge, %5, %44 : vector<1x384xi32>
    %46 = vector.extract_strided_slice %43 {offsets = [0, 351], sizes = [8, 1], strides = [1, 1]} : vector<8x384xf32> to vector<8x1xf32>
    %47 = vector.shape_cast %45 : vector<1x384xi1> to vector<1x384xi1>
    %48 = vector.broadcast %47 : vector<1x384xi1> to vector<8x384xi1>
    %49 = vector.shape_cast %46 : vector<8x1xf32> to vector<8x1xf32>
    %50 = vector.broadcast %49 : vector<8x1xf32> to vector<8x384xf32>
    %51 = arith.select %48, %50, %43 : vector<8x384xi1>, vector<8x384xf32>
    %52 = vector.broadcast %16 : vector<8x1xf32> to vector<8x384xf32>
    %53 = arith.mulf %52, %51 : vector<8x384xf32>
    %54 = math.cos %53 : vector<8x384xf32>
    %cst_17 = arith.constant 1.000000e+00 : f32
    %55 = vector.broadcast %cst_17 : f32 to vector<8x384xf32>
    %56 = arith.subf %55, %54 : vector<8x384xf32>
    %57 = vector.broadcast %18 : vector<8x1xf32> to vector<8x384xf32>
    %58 = arith.mulf %57, %56 : vector<8x384xf32>
    %59 = arith.addf %51, %58 : vector<8x384xf32>
    %cst_18 = arith.constant dense<0.000000e+00> : vector<8x192xf32>
    %60 = tpu.matmul %59, %12, %cst_18 {dimension_numbers = #tpu.dot_dimension_numbers<[1], [0], [0], [1], [0, 0, 1, 1], [], []>} : vector<8x384xf32>, vector<384x192xf32>, vector<8x192xf32> -> vector<8x192xf32>
    %cst_19 = arith.constant 0.000000e+00 : f32
    %61 = vector.shape_cast %10 : vector<1x192xi1> to vector<1x192xi1>
    %62 = vector.broadcast %61 : vector<1x192xi1> to vector<8x192xi1>
    %63 = vector.broadcast %cst_19 : f32 to vector<8x192xf32>
    %64 = arith.select %62, %60, %63 : vector<8x192xi1>, vector<8x192xf32>
    %65 = arith.truncf %64 : vector<8x192xf32> to vector<8x192xbf16>
    %cst_20 = arith.constant 0.000000e+00 : bf16
    %66 = vector.broadcast %cst_20 : bf16 to vector<8x1xbf16>
    %67 = tpu.concatenate %66, %65, %66 in 1 : vector<8x1xbf16>, vector<8x192xbf16>, vector<8x1xbf16> -> vector<8x194xbf16>
    %68 = vector.extract_strided_slice %67 {offsets = [0, 0], sizes = [8, 192], strides = [1, 1]} : vector<8x194xbf16> to vector<8x192xbf16>
    %69 = vector.extract_strided_slice %67 {offsets = [0, 1], sizes = [8, 192], strides = [1, 1]} : vector<8x194xbf16> to vector<8x192xbf16>
    %70 = vector.extract_strided_slice %67 {offsets = [0, 2], sizes = [8, 192], strides = [1, 1]} : vector<8x194xbf16> to vector<8x192xbf16>
    %71 = tpu.concatenate %68, %69, %70 in 0 : vector<8x192xbf16>, vector<8x192xbf16>, vector<8x192xbf16> -> vector<24x192xbf16>
    %c0_21 = arith.constant 0 : index
    %c0_22 = arith.constant 0 : index
    %c0_23 = arith.constant 0 : index
    %72 = vector.load %arg5[%c0_21, %c0_22, %c0_23] : memref<3x8x24xbf16, #tpu.memory_space<vmem>>, vector<1x8x24xbf16>
    %73 = vector.shape_cast %72 : vector<1x8x24xbf16> to vector<8x24xbf16>
    %cst_24 = arith.constant dense<0.000000e+00> : vector<8x192xf32>
    %74 = tpu.matmul %73, %71, %cst_24 {dimension_numbers = #tpu.dot_dimension_numbers<[1], [0], [0], [1], [0, 0, 1, 1], [], []>} : vector<8x24xbf16>, vector<24x192xbf16>, vector<8x192xf32> -> vector<8x192xf32>
    %75 = arith.addf %14, %74 : vector<8x192xf32>
    %c0_25 = arith.constant 0 : index
    %c0_26 = arith.constant 0 : index
    %c0_27 = arith.constant 0 : index
    %76 = vector.load %arg6[%c0_25, %c0_26, %c0_27] : memref<3x8x1xf32, #tpu.memory_space<vmem>>, vector<1x8x1xf32>
    %77 = vector.shape_cast %76 : vector<1x8x1xf32> to vector<8x1xf32>
    %78 = vector.broadcast %77 : vector<8x1xf32> to vector<8x192xf32>
    %79 = arith.addf %75, %78 : vector<8x192xf32>
    %c1 = arith.constant 1 : index
    %c0_28 = arith.constant 0 : index
    %c0_29 = arith.constant 0 : index
    %80 = vector.load %arg7[%c1, %c0_28, %c0_29] : memref<3x8x1xf32, #tpu.memory_space<vmem>>, vector<1x8x1xf32>
    %81 = vector.shape_cast %80 : vector<1x8x1xf32> to vector<8x1xf32>
    %c1_30 = arith.constant 1 : index
    %c0_31 = arith.constant 0 : index
    %c0_32 = arith.constant 0 : index
    %82 = vector.load %arg8[%c1_30, %c0_31, %c0_32] : memref<3x8x1xf32, #tpu.memory_space<vmem>>, vector<1x8x1xf32>
    %83 = vector.shape_cast %82 : vector<1x8x1xf32> to vector<8x1xf32>
    %c0_i32_33 = arith.constant 0 : i32
    %84 = vector.broadcast %c0_i32_33 : i32 to vector<1x192xi32>
    %85 = arith.cmpi slt, %4, %84 : vector<1x192xi32>
    %86 = vector.extract_strided_slice %79 {offsets = [0, 32], sizes = [8, 1], strides = [1, 1]} : vector<8x192xf32> to vector<8x1xf32>
    %87 = vector.shape_cast %85 : vector<1x192xi1> to vector<1x192xi1>
    %88 = vector.broadcast %87 : vector<1x192xi1> to vector<8x192xi1>
    %89 = vector.shape_cast %86 : vector<8x1xf32> to vector<8x1xf32>
    %90 = vector.broadcast %89 : vector<8x1xf32> to vector<8x192xf32>
    %91 = arith.select %88, %90, %79 : vector<8x192xi1>, vector<8x192xf32>
    %c512_i32_34 = arith.constant 512 : i32
    %92 = vector.broadcast %c512_i32_34 : i32 to vector<1x192xi32>
    %93 = arith.cmpi sge, %4, %92 : vector<1x192xi32>
    %94 = vector.extract_strided_slice %91 {offsets = [0, 159], sizes = [8, 1], strides = [1, 1]} : vector<8x192xf32> to vector<8x1xf32>
    %95 = vector.shape_cast %93 : vector<1x192xi1> to vector<1x192xi1>
    %96 = vector.broadcast %95 : vector<1x192xi1> to vector<8x192xi1>
    %97 = vector.shape_cast %94 : vector<8x1xf32> to vector<8x1xf32>
    %98 = vector.broadcast %97 : vector<8x1xf32> to vector<8x192xf32>
    %99 = arith.select %96, %98, %91 : vector<8x192xi1>, vector<8x192xf32>
    %cst_35 = arith.constant dense<0.000000e+00> : vector<8x384xf32>
    %100 = tpu.matmul %99, %11, %cst_35 {dimension_numbers = #tpu.dot_dimension_numbers<[1], [0], [0], [1], [0, 0, 1, 1], [], []>} : vector<8x192xf32>, vector<192x384xf32>, vector<8x384xf32> -> vector<8x384xf32>
    %c0_i32_36 = arith.constant 0 : i32
    %101 = vector.broadcast %c0_i32_36 : i32 to vector<1x384xi32>
    %102 = arith.cmpi slt, %5, %101 : vector<1x384xi32>
    %103 = vector.extract_strided_slice %100 {offsets = [0, 32], sizes = [8, 1], strides = [1, 1]} : vector<8x384xf32> to vector<8x1xf32>
    %104 = vector.shape_cast %102 : vector<1x384xi1> to vector<1x384xi1>
    %105 = vector.broadcast %104 : vector<1x384xi1> to vector<8x384xi1>
    %106 = vector.shape_cast %103 : vector<8x1xf32> to vector<8x1xf32>
    %107 = vector.broadcast %106 : vector<8x1xf32> to vector<8x384xf32>
    %108 = arith.select %105, %107, %100 : vector<8x384xi1>, vector<8x384xf32>
    %c512_i32_37 = arith.constant 512 : i32
    %109 = vector.broadcast %c512_i32_37 : i32 to vector<1x384xi32>
    %110 = arith.cmpi sge, %5, %109 : vector<1x384xi32>
    %111 = vector.extract_strided_slice %108 {offsets = [0, 351], sizes = [8, 1], strides = [1, 1]} : vector<8x384xf32> to vector<8x1xf32>
    %112 = vector.shape_cast %110 : vector<1x384xi1> to vector<1x384xi1>
    %113 = vector.broadcast %112 : vector<1x384xi1> to vector<8x384xi1>
    %114 = vector.shape_cast %111 : vector<8x1xf32> to vector<8x1xf32>
    %115 = vector.broadcast %114 : vector<8x1xf32> to vector<8x384xf32>
    %116 = arith.select %113, %115, %108 : vector<8x384xi1>, vector<8x384xf32>
    %117 = vector.broadcast %81 : vector<8x1xf32> to vector<8x384xf32>
    %118 = arith.mulf %117, %116 : vector<8x384xf32>
    %119 = math.cos %118 : vector<8x384xf32>
    %cst_38 = arith.constant 1.000000e+00 : f32
    %120 = vector.broadcast %cst_38 : f32 to vector<8x384xf32>
    %121 = arith.subf %120, %119 : vector<8x384xf32>
    %122 = vector.broadcast %83 : vector<8x1xf32> to vector<8x384xf32>
    %123 = arith.mulf %122, %121 : vector<8x384xf32>
    %124 = arith.addf %116, %123 : vector<8x384xf32>
    %cst_39 = arith.constant dense<0.000000e+00> : vector<8x192xf32>
    %125 = tpu.matmul %124, %12, %cst_39 {dimension_numbers = #tpu.dot_dimension_numbers<[1], [0], [0], [1], [0, 0, 1, 1], [], []>} : vector<8x384xf32>, vector<384x192xf32>, vector<8x192xf32> -> vector<8x192xf32>
    %cst_40 = arith.constant 0.000000e+00 : f32
    %126 = vector.shape_cast %10 : vector<1x192xi1> to vector<1x192xi1>
    %127 = vector.broadcast %126 : vector<1x192xi1> to vector<8x192xi1>
    %128 = vector.broadcast %cst_40 : f32 to vector<8x192xf32>
    %129 = arith.select %127, %125, %128 : vector<8x192xi1>, vector<8x192xf32>
    %130 = arith.truncf %129 : vector<8x192xf32> to vector<8x192xbf16>
    %cst_41 = arith.constant 0.000000e+00 : bf16
    %131 = vector.broadcast %cst_41 : bf16 to vector<8x3xbf16>
    %132 = tpu.concatenate %131, %130, %131 in 1 : vector<8x3xbf16>, vector<8x192xbf16>, vector<8x3xbf16> -> vector<8x198xbf16>
    %133 = vector.extract_strided_slice %132 {offsets = [0, 0], sizes = [8, 192], strides = [1, 1]} : vector<8x198xbf16> to vector<8x192xbf16>
    %134 = vector.extract_strided_slice %132 {offsets = [0, 3], sizes = [8, 192], strides = [1, 1]} : vector<8x198xbf16> to vector<8x192xbf16>
    %135 = vector.extract_strided_slice %132 {offsets = [0, 6], sizes = [8, 192], strides = [1, 1]} : vector<8x198xbf16> to vector<8x192xbf16>
    %136 = tpu.concatenate %133, %134, %135 in 0 : vector<8x192xbf16>, vector<8x192xbf16>, vector<8x192xbf16> -> vector<24x192xbf16>
    %c1_42 = arith.constant 1 : index
    %c0_43 = arith.constant 0 : index
    %c0_44 = arith.constant 0 : index
    %137 = vector.load %arg5[%c1_42, %c0_43, %c0_44] : memref<3x8x24xbf16, #tpu.memory_space<vmem>>, vector<1x8x24xbf16>
    %138 = vector.shape_cast %137 : vector<1x8x24xbf16> to vector<8x24xbf16>
    %cst_45 = arith.constant dense<0.000000e+00> : vector<8x192xf32>
    %139 = tpu.matmul %138, %136, %cst_45 {dimension_numbers = #tpu.dot_dimension_numbers<[1], [0], [0], [1], [0, 0, 1, 1], [], []>} : vector<8x24xbf16>, vector<24x192xbf16>, vector<8x192xf32> -> vector<8x192xf32>
    %140 = arith.addf %79, %139 : vector<8x192xf32>
    %c1_46 = arith.constant 1 : index
    %c0_47 = arith.constant 0 : index
    %c0_48 = arith.constant 0 : index
    %141 = vector.load %arg6[%c1_46, %c0_47, %c0_48] : memref<3x8x1xf32, #tpu.memory_space<vmem>>, vector<1x8x1xf32>
    %142 = vector.shape_cast %141 : vector<1x8x1xf32> to vector<8x1xf32>
    %143 = vector.broadcast %142 : vector<8x1xf32> to vector<8x192xf32>
    %144 = arith.addf %140, %143 : vector<8x192xf32>
    %c2 = arith.constant 2 : index
    %c0_49 = arith.constant 0 : index
    %c0_50 = arith.constant 0 : index
    %145 = vector.load %arg7[%c2, %c0_49, %c0_50] : memref<3x8x1xf32, #tpu.memory_space<vmem>>, vector<1x8x1xf32>
    %146 = vector.shape_cast %145 : vector<1x8x1xf32> to vector<8x1xf32>
    %c2_51 = arith.constant 2 : index
    %c0_52 = arith.constant 0 : index
    %c0_53 = arith.constant 0 : index
    %147 = vector.load %arg8[%c2_51, %c0_52, %c0_53] : memref<3x8x1xf32, #tpu.memory_space<vmem>>, vector<1x8x1xf32>
    %148 = vector.shape_cast %147 : vector<1x8x1xf32> to vector<8x1xf32>
    %c0_i32_54 = arith.constant 0 : i32
    %149 = vector.broadcast %c0_i32_54 : i32 to vector<1x192xi32>
    %150 = arith.cmpi slt, %4, %149 : vector<1x192xi32>
    %151 = vector.extract_strided_slice %144 {offsets = [0, 32], sizes = [8, 1], strides = [1, 1]} : vector<8x192xf32> to vector<8x1xf32>
    %152 = vector.shape_cast %150 : vector<1x192xi1> to vector<1x192xi1>
    %153 = vector.broadcast %152 : vector<1x192xi1> to vector<8x192xi1>
    %154 = vector.shape_cast %151 : vector<8x1xf32> to vector<8x1xf32>
    %155 = vector.broadcast %154 : vector<8x1xf32> to vector<8x192xf32>
    %156 = arith.select %153, %155, %144 : vector<8x192xi1>, vector<8x192xf32>
    %c512_i32_55 = arith.constant 512 : i32
    %157 = vector.broadcast %c512_i32_55 : i32 to vector<1x192xi32>
    %158 = arith.cmpi sge, %4, %157 : vector<1x192xi32>
    %159 = vector.extract_strided_slice %156 {offsets = [0, 159], sizes = [8, 1], strides = [1, 1]} : vector<8x192xf32> to vector<8x1xf32>
    %160 = vector.shape_cast %158 : vector<1x192xi1> to vector<1x192xi1>
    %161 = vector.broadcast %160 : vector<1x192xi1> to vector<8x192xi1>
    %162 = vector.shape_cast %159 : vector<8x1xf32> to vector<8x1xf32>
    %163 = vector.broadcast %162 : vector<8x1xf32> to vector<8x192xf32>
    %164 = arith.select %161, %163, %156 : vector<8x192xi1>, vector<8x192xf32>
    %cst_56 = arith.constant dense<0.000000e+00> : vector<8x384xf32>
    %165 = tpu.matmul %164, %11, %cst_56 {dimension_numbers = #tpu.dot_dimension_numbers<[1], [0], [0], [1], [0, 0, 1, 1], [], []>} : vector<8x192xf32>, vector<192x384xf32>, vector<8x384xf32> -> vector<8x384xf32>
    %c0_i32_57 = arith.constant 0 : i32
    %166 = vector.broadcast %c0_i32_57 : i32 to vector<1x384xi32>
    %167 = arith.cmpi slt, %5, %166 : vector<1x384xi32>
    %168 = vector.extract_strided_slice %165 {offsets = [0, 32], sizes = [8, 1], strides = [1, 1]} : vector<8x384xf32> to vector<8x1xf32>
    %169 = vector.shape_cast %167 : vector<1x384xi1> to vector<1x384xi1>
    %170 = vector.broadcast %169 : vector<1x384xi1> to vector<8x384xi1>
    %171 = vector.shape_cast %168 : vector<8x1xf32> to vector<8x1xf32>
    %172 = vector.broadcast %171 : vector<8x1xf32> to vector<8x384xf32>
    %173 = arith.select %170, %172, %165 : vector<8x384xi1>, vector<8x384xf32>
    %c512_i32_58 = arith.constant 512 : i32
    %174 = vector.broadcast %c512_i32_58 : i32 to vector<1x384xi32>
    %175 = arith.cmpi sge, %5, %174 : vector<1x384xi32>
    %176 = vector.extract_strided_slice %173 {offsets = [0, 351], sizes = [8, 1], strides = [1, 1]} : vector<8x384xf32> to vector<8x1xf32>
    %177 = vector.shape_cast %175 : vector<1x384xi1> to vector<1x384xi1>
    %178 = vector.broadcast %177 : vector<1x384xi1> to vector<8x384xi1>
    %179 = vector.shape_cast %176 : vector<8x1xf32> to vector<8x1xf32>
    %180 = vector.broadcast %179 : vector<8x1xf32> to vector<8x384xf32>
    %181 = arith.select %178, %180, %173 : vector<8x384xi1>, vector<8x384xf32>
    %182 = vector.broadcast %146 : vector<8x1xf32> to vector<8x384xf32>
    %183 = arith.mulf %182, %181 : vector<8x384xf32>
    %184 = math.cos %183 : vector<8x384xf32>
    %cst_59 = arith.constant 1.000000e+00 : f32
    %185 = vector.broadcast %cst_59 : f32 to vector<8x384xf32>
    %186 = arith.subf %185, %184 : vector<8x384xf32>
    %187 = vector.broadcast %148 : vector<8x1xf32> to vector<8x384xf32>
    %188 = arith.mulf %187, %186 : vector<8x384xf32>
    %189 = arith.addf %181, %188 : vector<8x384xf32>
    %cst_60 = arith.constant dense<0.000000e+00> : vector<8x192xf32>
    %190 = tpu.matmul %189, %12, %cst_60 {dimension_numbers = #tpu.dot_dimension_numbers<[1], [0], [0], [1], [0, 0, 1, 1], [], []>} : vector<8x384xf32>, vector<384x192xf32>, vector<8x192xf32> -> vector<8x192xf32>
    %cst_61 = arith.constant 0.000000e+00 : f32
    %191 = vector.shape_cast %10 : vector<1x192xi1> to vector<1x192xi1>
    %192 = vector.broadcast %191 : vector<1x192xi1> to vector<8x192xi1>
    %193 = vector.broadcast %cst_61 : f32 to vector<8x192xf32>
    %194 = arith.select %192, %190, %193 : vector<8x192xi1>, vector<8x192xf32>
    %195 = arith.truncf %194 : vector<8x192xf32> to vector<8x192xbf16>
    %cst_62 = arith.constant 0.000000e+00 : bf16
    %196 = vector.broadcast %cst_62 : bf16 to vector<8x5xbf16>
    %197 = tpu.concatenate %196, %195, %196 in 1 : vector<8x5xbf16>, vector<8x192xbf16>, vector<8x5xbf16> -> vector<8x202xbf16>
    %198 = vector.extract_strided_slice %197 {offsets = [0, 0], sizes = [8, 192], strides = [1, 1]} : vector<8x202xbf16> to vector<8x192xbf16>
    %199 = vector.extract_strided_slice %197 {offsets = [0, 5], sizes = [8, 192], strides = [1, 1]} : vector<8x202xbf16> to vector<8x192xbf16>
    %200 = vector.extract_strided_slice %197 {offsets = [0, 10], sizes = [8, 192], strides = [1, 1]} : vector<8x202xbf16> to vector<8x192xbf16>
    %201 = tpu.concatenate %198, %199, %200 in 0 : vector<8x192xbf16>, vector<8x192xbf16>, vector<8x192xbf16> -> vector<24x192xbf16>
    %c2_63 = arith.constant 2 : index
    %c0_64 = arith.constant 0 : index
    %c0_65 = arith.constant 0 : index
    %202 = vector.load %arg5[%c2_63, %c0_64, %c0_65] : memref<3x8x24xbf16, #tpu.memory_space<vmem>>, vector<1x8x24xbf16>
    %203 = vector.shape_cast %202 : vector<1x8x24xbf16> to vector<8x24xbf16>
    %cst_66 = arith.constant dense<0.000000e+00> : vector<8x192xf32>
    %204 = tpu.matmul %203, %201, %cst_66 {dimension_numbers = #tpu.dot_dimension_numbers<[1], [0], [0], [1], [0, 0, 1, 1], [], []>} : vector<8x24xbf16>, vector<24x192xbf16>, vector<8x192xf32> -> vector<8x192xf32>
    %205 = arith.addf %144, %204 : vector<8x192xf32>
    %c2_67 = arith.constant 2 : index
    %c0_68 = arith.constant 0 : index
    %c0_69 = arith.constant 0 : index
    %206 = vector.load %arg6[%c2_67, %c0_68, %c0_69] : memref<3x8x1xf32, #tpu.memory_space<vmem>>, vector<1x8x1xf32>
    %207 = vector.shape_cast %206 : vector<1x8x1xf32> to vector<8x1xf32>
    %208 = vector.broadcast %207 : vector<8x1xf32> to vector<8x192xf32>
    %209 = arith.addf %205, %208 : vector<8x192xf32>
    %210 = vector.extract_strided_slice %209 {offsets = [0, 32], sizes = [8, 128], strides = [1, 1]} : vector<8x192xf32> to vector<8x128xf32>
    %c0_70 = arith.constant 0 : index
    %c0_71 = arith.constant 0 : index
    %c0_72 = arith.constant 0 : index
    %211 = vector.load %arg9[%c0_70, %c0_71, %c0_72] : memref<1x8x128xf32, #tpu.memory_space<vmem>>, vector<1x8x128xf32>
    %212 = vector.shape_cast %211 : vector<1x8x128xf32> to vector<8x128xf32>
    %213 = vector.shape_cast %210 : vector<8x128xf32> to vector<1x8x128xf32>
    tpu.vector_store %arg9[%c0_70, %c0_71, %c0_72], %213 {strides = array<i32>} : memref<1x8x128xf32, #tpu.memory_space<vmem>>, vector<1x8x128xf32>,
    return
  }
  func.func @transform_0(%arg0: i32, %arg1: i32) -> (i32, i32, i32, i32) {
    %c0_i32 = arith.constant 0 : i32
    %c0_i32_0 = arith.constant 0 : i32
    %c0_i32_1 = arith.constant 0 : i32
    return %arg0, %arg1, %c0_i32, %c0_i32_0 : i32, i32, i32, i32
  }
  func.func @transform_1(%arg0: i32, %arg1: i32) -> (i32, i32) {
    %c0_i32 = arith.constant 0 : i32
    %c0_i32_0 = arith.constant 0 : i32
    %c0_i32_1 = arith.constant 0 : i32
    return %c0_i32, %c0_i32_0 : i32, i32
  }
  func.func @transform_2(%arg0: i32, %arg1: i32) -> (i32, i32) {
    %c0_i32 = arith.constant 0 : i32
    %c0_i32_0 = arith.constant 0 : i32
    %c0_i32_1 = arith.constant 0 : i32
    return %c0_i32, %c0_i32_0 : i32, i32
  }
  func.func @transform_3(%arg0: i32, %arg1: i32) -> (i32, i32, i32) {
    %c0_i32 = arith.constant 0 : i32
    %c0_i32_0 = arith.constant 0 : i32
    %c0_i32_1 = arith.constant 0 : i32
    %c0_i32_2 = arith.constant 0 : i32
    return %c0_i32, %c0_i32_0, %c0_i32_1 : i32, i32, i32
  }
  func.func @transform_4(%arg0: i32, %arg1: i32) -> (i32, i32, i32) {
    %c0_i32 = arith.constant 0 : i32
    %c0_i32_0 = arith.constant 0 : i32
    %c0_i32_1 = arith.constant 0 : i32
    %c0_i32_2 = arith.constant 0 : i32
    return %c0_i32, %c0_i32_0, %c0_i32_1 : i32, i32, i32
  }
  func.func @transform_5(%arg0: i32, %arg1: i32) -> (i32, i32, i32) {
    %c0_i32 = arith.constant 0 : i32
    %c0_i32_0 = arith.constant 0 : i32
    %c0_i32_1 = arith.constant 0 : i32
    %c0_i32_2 = arith.constant 0 : i32
    return %c0_i32, %c0_i32_0, %c0_i32_1 : i32, i32, i32
  }
  func.func @transform_6(%arg0: i32, %arg1: i32) -> (i32, i32, i32) {
    %c0_i32 = arith.constant 0 : i32
    %c0_i32_0 = arith.constant 0 : i32
    %c0_i32_1 = arith.constant 0 : i32
    %c0_i32_2 = arith.constant 0 : i32
    return %c0_i32, %c0_i32_0, %c0_i32_1 : i32, i32, i32
  }
  func.func @transform_7(%arg0: i32, %arg1: i32) -> (i32, i32, i32) {
    %c0_i32 = arith.constant 0 : i32
    %c0_i32_0 = arith.constant 0 : i32
    return %arg0, %c0_i32, %arg1 : i32, i32, i32
  }
}

</mosaic_0001>

<llo_original>
// kernel: tpu_custom_call.1
$region0: #{tpu_custom_call.1}
  #allocation0 [shape = 'u32[]', space=smem, size = 0x4, offset = 0x4, fixed_abs, tag = 'smem constant byte address 0x4 - core index']
  #allocation1 [shape = 'u32[144,128]{1,0:T(1,128)}', space=vmem, size = 0x12000, scoped, tag = 'internal scratch']
  %s0 = inlined_call_operand.vmem [shape: f32[2,4,8,192], index: 0, kind: input, shape index: {}]
  %s1 = inlined_call_operand.vmem [shape: f32[192,384], index: 1, kind: input, shape index: {}]
  %s2 = inlined_call_operand.vmem [shape: f32[384,192], index: 2, kind: input, shape index: {}]
  %s3 = inlined_call_operand.vmem [shape: bf16[3,8,24], index: 3, kind: input, shape index: {}]
  %s4 = inlined_call_operand.vmem [shape: f32[3,8,1], index: 4, kind: input, shape index: {}]
  %s5 = inlined_call_operand.vmem [shape: f32[3,8,1], index: 5, kind: input, shape index: {}]
  %s6 = inlined_call_operand.vmem [shape: f32[3,8,1], index: 6, kind: input, shape index: {}]
  %s7 = inlined_call_operand.hbm [shape: f32[2,8,512], index: 7, kind: output, shape index: {}]
  %s8 = sld [smem:[#allocation0]]
  $region61: #{tpu_custom_call.1} parent=0
    _
  %s10 = ssub.s32 1, %s8
  %s11 = scalar_select 0, %s10, %s8
  $region1: #{tpu_custom_call.1} parent=0
    #allocation2 [shape = 'u8[8192]{0}', space=vmem, size = 0x2000, scoped, tag = 'output window, operand 0']
    #allocation3 [shape = 's32[2]{0}', space=sflag, size = 0x8, scoped, tag = 'scoped memory for tpu_custom_call.1']
    %12 = vsyncpa [#allocation3], 0
    %s13 = scalar_lea.sflag [#allocation3], 1
    %14 = vsyncpa %s13, 0
    loop: start=0, step=1, limit=10
    $region2: #{tpu_custom_call.1} parent=1 // loop_pre_header
      _
    $region3: #{tpu_custom_call.1} parent=1 // loop_header
      %s16 = sphi 0, %s20
      %p17 = scmp.ge.s32.totalorder %s16, 10
      %s23 = sphi 0, %s35
      %s24 = sphi 0, %s31
      %s25 = sphi 0, %s23
      %s26 = sphi 0, %s24
      %s27 = sphi 0, %s25
      %s28 = sphi 0, %s26
      %s40 = sphi 0, %s42
      %s43 = sphi 0, %s40
      %s44 = sphi 0, %s43
      %s60 = sphi 0, %s44
      %s64 = sphi 0, %s64
      %s66 = sphi 0, %s64
      %s67 = sphi 0, %s66
      %s81 = sphi 0, %s67
      %s85 = sphi 0, %s85
      %s87 = sphi 0, %s85
      %s88 = sphi 0, %s87
      %s102 = sphi 0, %s88
      %s106 = sphi 0, %s106
      %s108 = sphi 0, %s106
      %s109 = sphi 0, %s108
      %s123 = sphi 0, %s109
      %s127 = sphi 0, %s127
      %s129 = sphi 0, %s127
      %s130 = sphi 0, %s129
      %s144 = sphi 0, %s130
      %s148 = sphi 0, %s148
      %s150 = sphi 0, %s148
      %s151 = sphi 0, %s150
      %s165 = sphi 0, %s151
      %s169 = sphi 0, %s169
      %s171 = sphi 0, %s169
      %s172 = sphi 0, %s171
      %s186 = sphi 0, %s172
      %s194 = sphi 0, %s196
      %s197 = sphi 0, %s194
      %s198 = sphi 0, %s197
      %s214 = sphi 0, %s198
    $region4: #{tpu_custom_call.1} parent=1 // loop_header_branch
      %19 = sbr.rel (%p17) target = $region8
    $region5: #{tpu_custom_call.1} parent=1 // loop_body
      %s21 = ssub.s32 %s16, 1
      %s22 = ssub.s32 %s16, 2
      %s29 = sadd.s32 1, %s24
      %p30 = scmp.ge.s32.totalorder %s29, 4
      %s31 = scalar_select %p30, 0, %s29
      %s32 = sadd.s32 1, %s23
      %s33 = scalar_select %p30, %s32, %s23
      %p34 = scmp.ge.s32.totalorder %s33, 2
      %s35 = scalar_select %p34, 0, %s33
      %s36 = ssub.s32 %s23, %s35
      %s37 = ssub.s32 %s24, %s31
      %s38 = sor.u32 %s36, %s37
      %p39 = scmp.eq.s32.totalorder %s38, 0
      %s41 = sadd.s32 %s40, 1
      %s42 = scalar_select %p39, %s40, %s41
      %p45 = pneg %p39
      %p46 = scmp.eq.s32.totalorder %s16, 7
      %p47 = por %p45, %p46
      %p48 = scmp.ne.s32.totalorder %s40, %s43
      %p49 = scmp.eq.s32.totalorder %s16, 0
      %p50 = por %p48, %p49
      %p51 = scmp.ne.s32.totalorder %s40, %s43
      %p52 = scmp.eq.s32.totalorder %s21, 7
      %p53 = por %p51, %p52
      %p54 = scmp.ne.s32.totalorder %s43, %s44
      %p55 = scmp.eq.s32.totalorder %s21, 0
      %p56 = por %p54, %p55
      %p57 = scmp.ne.s32.totalorder %s43, %s44
      %p58 = scmp.eq.s32.totalorder %s22, 7
      %p59 = por %p57, %p58
      %p61 = scmp.ne.s32.totalorder %s44, %s60
      %p62 = scmp.eq.s32.totalorder %s22, 0
      %p63 = por %p61, %p62
      %s65 = sadd.s32 %s64, 1
      %p68 = scmp.eq.s32.totalorder %s16, 7
      %p69 = scmp.ne.s32.totalorder %s64, %s66
      %p70 = scmp.eq.s32.totalorder %s16, 0
      %p71 = por %p69, %p70
      %p72 = scmp.ne.s32.totalorder %s64, %s66
      %p73 = scmp.eq.s32.totalorder %s21, 7
      %p74 = por %p72, %p73
      %p75 = scmp.ne.s32.totalorder %s66, %s67
      %p76 = scmp.eq.s32.totalorder %s21, 0
      %p77 = por %p75, %p76
      %p78 = scmp.ne.s32.totalorder %s66, %s67
      %p79 = scmp.eq.s32.totalorder %s22, 7
      %p80 = por %p78, %p79
      %p82 = scmp.ne.s32.totalorder %s67, %s81
      %p83 = scmp.eq.s32.totalorder %s22, 0
      %p84 = por %p82, %p83
      %s86 = sadd.s32 %s85, 1
      %p89 = scmp.eq.s32.totalorder %s16, 7
      %p90 = scmp.ne.s32.totalorder %s85, %s87
      %p91 = scmp.eq.s32.totalorder %s16, 0
      %p92 = por %p90, %p91
      %p93 = scmp.ne.s32.totalorder %s85, %s87
      %p94 = scmp.eq.s32.totalorder %s21, 7
      %p95 = por %p93, %p94
      %p96 = scmp.ne.s32.totalorder %s87, %s88
      %p97 = scmp.eq.s32.totalorder %s21, 0
      %p98 = por %p96, %p97
      %p99 = scmp.ne.s32.totalorder %s87, %s88
      %p100 = scmp.eq.s32.totalorder %s22, 7
      %p101 = por %p99, %p100
      %p103 = scmp.ne.s32.totalorder %s88, %s102
      %p104 = scmp.eq.s32.totalorder %s22, 0
      %p105 = por %p103, %p104
      %s107 = sadd.s32 %s106, 1
      %p110 = scmp.eq.s32.totalorder %s16, 7
      %p111 = scmp.ne.s32.totalorder %s106, %s108
      %p112 = scmp.eq.s32.totalorder %s16, 0
      %p113 = por %p111, %p112
      %p114 = scmp.ne.s32.totalorder %s106, %s108
      %p115 = scmp.eq.s32.totalorder %s21, 7
      %p116 = por %p114, %p115
      %p117 = scmp.ne.s32.totalorder %s108, %s109
      %p118 = scmp.eq.s32.totalorder %s21, 0
      %p119 = por %p117, %p118
      %p120 = scmp.ne.s32.totalorder %s108, %s109
      %p121 = scmp.eq.s32.totalorder %s22, 7
      %p122 = por %p120, %p121
      %p124 = scmp.ne.s32.totalorder %s109, %s123
      %p125 = scmp.eq.s32.totalorder %s22, 0
      %p126 = por %p124, %p125
      %s128 = sadd.s32 %s127, 1
      %p131 = scmp.eq.s32.totalorder %s16, 7
      %p132 = scmp.ne.s32.totalorder %s127, %s129
      %p133 = scmp.eq.s32.totalorder %s16, 0
      %p134 = por %p132, %p133
      %p135 = scmp.ne.s32.totalorder %s127, %s129
      %p136 = scmp.eq.s32.totalorder %s21, 7
      %p137 = por %p135, %p136
      %p138 = scmp.ne.s32.totalorder %s129, %s130
      %p139 = scmp.eq.s32.totalorder %s21, 0
      %p140 = por %p138, %p139
      %p141 = scmp.ne.s32.totalorder %s129, %s130
      %p142 = scmp.eq.s32.totalorder %s22, 7
      %p143 = por %p141, %p142
      %p145 = scmp.ne.s32.totalorder %s130, %s144
      %p146 = scmp.eq.s32.totalorder %s22, 0
      %p147 = por %p145, %p146
      %s149 = sadd.s32 %s148, 1
      %p152 = scmp.eq.s32.totalorder %s16, 7
      %p153 = scmp.ne.s32.totalorder %s148, %s150
      %p154 = scmp.eq.s32.totalorder %s16, 0
      %p155 = por %p153, %p154
      %p156 = scmp.ne.s32.totalorder %s148, %s150
      %p157 = scmp.eq.s32.totalorder %s21, 7
      %p158 = por %p156, %p157
      %p159 = scmp.ne.s32.totalorder %s150, %s151
      %p160 = scmp.eq.s32.totalorder %s21, 0
      %p161 = por %p159, %p160
      %p162 = scmp.ne.s32.totalorder %s150, %s151
      %p163 = scmp.eq.s32.totalorder %s22, 7
      %p164 = por %p162, %p163
      %p166 = scmp.ne.s32.totalorder %s151, %s165
      %p167 = scmp.eq.s32.totalorder %s22, 0
      %p168 = por %p166, %p167
      %s170 = sadd.s32 %s169, 1
      %p173 = scmp.eq.s32.totalorder %s16, 7
      %p174 = scmp.ne.s32.totalorder %s169, %s171
      %p175 = scmp.eq.s32.totalorder %s16, 0
      %p176 = por %p174, %p175
      %p177 = scmp.ne.s32.totalorder %s169, %s171
      %p178 = scmp.eq.s32.totalorder %s21, 7
      %p179 = por %p177, %p178
      %p180 = scmp.ne.s32.totalorder %s171, %s172
      %p181 = scmp.eq.s32.totalorder %s21, 0
      %p182 = por %p180, %p181
      %p183 = scmp.ne.s32.totalorder %s171, %s172
      %p184 = scmp.eq.s32.totalorder %s22, 7
      %p185 = por %p183, %p184
      %p187 = scmp.ne.s32.totalorder %s172, %s186
      %p188 = scmp.eq.s32.totalorder %s22, 0
      %p189 = por %p187, %p188
      %s190 = ssub.s32 %s23, %s35
      %s191 = ssub.s32 %s24, %s31
      %s192 = sor.u32 %s190, %s191
      %p193 = scmp.eq.s32.totalorder %s192, 0
      %s195 = sadd.s32 %s194, 1
      %s196 = scalar_select %p193, %s194, %s195
      %p199 = pneg %p193
      %p200 = scmp.eq.s32.totalorder %s16, 7
      %p201 = por %p199, %p200
      %p202 = scmp.ne.s32.totalorder %s194, %s197
      %p203 = scmp.eq.s32.totalorder %s16, 0
      %p204 = por %p202, %p203
      %p205 = scmp.ne.s32.totalorder %s194, %s197
      %p206 = scmp.eq.s32.totalorder %s21, 7
      %p207 = por %p205, %p206
      %p208 = scmp.ne.s32.totalorder %s197, %s198
      %p209 = scmp.eq.s32.totalorder %s21, 0
      %p210 = por %p208, %p209
      %p211 = scmp.ne.s32.totalorder %s197, %s198
      %p212 = scmp.eq.s32.totalorder %s22, 7
      %p213 = por %p211, %p212
      %p215 = scmp.ne.s32.totalorder %s198, %s214
      %p216 = scmp.eq.s32.totalorder %s22, 0
      %p217 = por %p215, %p216
      %p218 = scmp.le.s32.totalorder 1, %s16
      %p219 = scmp.lt.s32.totalorder %s16, 9
      %p220 = pnand %p218, %p219
      %p221 = pneg %p220
      // Predicated region
      $region9: #{tpu_custom_call.1} parent=5 // pred_check
        _
      $region10: #{tpu_custom_call.1} parent=5 // pred_check_branch
        %223 = sbr.rel (%p220) target = $region12
      $region11: #{tpu_custom_call.1} parent=5 // pred_region
        %s224 = ssub.s32 %s16, 1
        // Predicated region
        $region13: #{tpu_custom_call.1} parent=11 // pred_check
          %p225 = pneg %p77
        $region14: #{tpu_custom_call.1} parent=11 // pred_check_branch
          %227 = sbr.rel (%p225) target = $region16
        $region15: #{tpu_custom_call.1} parent=11 // pred_region
          _
        $region16: #{tpu_custom_call.1} parent=11 // pred_fallthru
          _
        // Predicated region
        $region17: #{tpu_custom_call.1} parent=11 // pred_check
          %p228 = pneg %p98
        $region18: #{tpu_custom_call.1} parent=11 // pred_check_branch
          %230 = sbr.rel (%p228) target = $region20
        $region19: #{tpu_custom_call.1} parent=11 // pred_region
          _
        $region20: #{tpu_custom_call.1} parent=11 // pred_fallthru
          _
        // Predicated region
        $region21: #{tpu_custom_call.1} parent=11 // pred_check
          %p231 = pneg %p119
        $region22: #{tpu_custom_call.1} parent=11 // pred_check_branch
          %233 = sbr.rel (%p231) target = $region24
        $region23: #{tpu_custom_call.1} parent=11 // pred_region
          _
        $region24: #{tpu_custom_call.1} parent=11 // pred_fallthru
          _
        // Predicated region
        $region25: #{tpu_custom_call.1} parent=11 // pred_check
          %p234 = pneg %p140
        $region26: #{tpu_custom_call.1} parent=11 // pred_check_branch
          %236 = sbr.rel (%p234) target = $region28
        $region27: #{tpu_custom_call.1} parent=11 // pred_region
          _
        $region28: #{tpu_custom_call.1} parent=11 // pred_fallthru
          _
        // Predicated region
        $region29: #{tpu_custom_call.1} parent=11 // pred_check
          %p237 = pneg %p161
        $region30: #{tpu_custom_call.1} parent=11 // pred_check_branch
          %239 = sbr.rel (%p237) target = $region32
        $region31: #{tpu_custom_call.1} parent=11 // pred_region
          _
        $region32: #{tpu_custom_call.1} parent=11 // pred_fallthru
          _
        // Predicated region
        $region33: #{tpu_custom_call.1} parent=11 // pred_check
          %p240 = pneg %p182
        $region34: #{tpu_custom_call.1} parent=11 // pred_check_branch
          %242 = sbr.rel (%p240) target = $region36
        $region35: #{tpu_custom_call.1} parent=11 // pred_region
          _
        $region36: #{tpu_custom_call.1} parent=11 // pred_fallthru
          _
      $region12: #{tpu_custom_call.1} parent=5 // pred_fallthru
        _
      %p243 = scmp.lt.s32.totalorder %s16, 8
      // Predicated region
      $region37: #{tpu_custom_call.1} parent=5 // pred_check
        %p244 = pneg %p243
      $region38: #{tpu_custom_call.1} parent=5 // pred_check_branch
        %246 = sbr.rel (%p244) target = $region40
      $region39: #{tpu_custom_call.1} parent=5 // pred_region
        // Predicated region
        $region41: #{tpu_custom_call.1} parent=39 // pred_check
          %p247 = pneg %p50
        $region42: #{tpu_custom_call.1} parent=39 // pred_check_branch
          %249 = sbr.rel (%p247) target = $region44
        $region43: #{tpu_custom_call.1} parent=39 // pred_region
          %p250 = scmp.lt.s32.totalorder %s23, 1
          %s251 = scalar_select %p250, %s23, 1
          %p252 = scmp.lt.s32.totalorder %s24, 3
          %s253 = scalar_select %p252, %s24, 3
          %s254 = smul.addr %s253, 2
          %s255 = smul.addr %s251, 8
          %s256 = sadd.s32 %s254, %s255
          %s257 = smul.addr %s256, 8
          %s258 = scalar_lea.vmem %s0, %s257
        $region44: #{tpu_custom_call.1} parent=39 // pred_fallthru
          _
      $region40: #{tpu_custom_call.1} parent=5 // pred_fallthru
        _
      %p259 = scmp.le.s32.totalorder 1, %s16
      %p260 = scmp.lt.s32.totalorder %s16, 9
      %p261 = pnand %p259, %p260
      %p262 = pneg %p261
      // Predicated region
      $region45: #{tpu_custom_call.1} parent=5 // pred_check
        _
      $region46: #{tpu_custom_call.1} parent=5 // pred_check_branch
        %264 = sbr.rel (%p261) target = $region48
      $region47: #{tpu_custom_call.1} parent=5 // pred_region
        %s265 = ssub.s32 %s16, 1
        %p266 = scmp.lt.s32.totalorder %s25, 1
        %s267 = scalar_select %p266, %s25, 1
        %p268 = scmp.lt.s32.totalorder %s26, 3
        %s269 = scalar_select %p268, %s26, 3
        %s270 = smul.addr %s269, 2
        %s271 = smul.addr %s267, 8
        %s272 = sadd.s32 %s270, %s271
        %s273 = smul.addr %s272, 8
        %s274 = scalar_lea.vmem %s0, %s273
        %p275 = pneg %p56
        %p276 = pneg %p53
        %p277 = pneg %p77
        %p278 = pneg %p74
        %p279 = pneg %p98
        %p280 = pneg %p95
        %p281 = pneg %p119
        %p282 = pneg %p116
        %p283 = pneg %p140
        %p284 = pneg %p137
        %p285 = pneg %p161
        %p286 = pneg %p158
        %p287 = pneg %p182
        %p288 = pneg %p179
        %p289 = pneg %p210
        %p290 = pneg %p207
        %s291 = sand.u32 %s197, 1
        %s292 = scalar_lea.sflag [#allocation3], %s291
        %s293 = sand.u32 %s197, 1
        %s294 = smul.addr %s293, 8
        %s295 = scalar_lea.vmem [#allocation2], %s294
        %p296 = scmp.lt.s32.totalorder %s25, 1
        %s297 = scalar_select %p296, %s25, 1
        %p298 = scmp.lt.s32.totalorder %s26, 3
        %s299 = scalar_select %p298, %s26, 3
        %s300 = smul.addr %s299, 2
        %s301 = smul.addr %s297, 8
        %s302 = sadd.s32 %s300, %s301
        %s303 = smul.addr %s302, 8
        %s304 = scalar_lea.vmem %s0, %s303
        %s306 = smul.u32 %s26, 128
        %s307 = ssub.s32 %s306, 32
        %v308 = vlaneseq
        %v309 = vand.u32 %v308, 127
        %v310 = vadd.s32 %v309, 128
        %v311 = vstv %s307
        %v312 = vadd.s32 %v311, %v309
        %v313 = vadd.s32 %v311, %v310
        %314 = vrot.lane.b32.xlu0 %v312, 64
        %v315 = vpop.permute.xlu0 %314
        %316 = vrot.lane.b32.xlu0 %v313, 64
        %v317 = vpop.permute.xlu0 %316
        %vm318 = vcmask 523264
        %v319 = vsel %vm318, %v315, %v317
        %v320 = vsel %vm318, %v313, %v315
        %vm321 = vcmp.ge.s32.totalorder %v312, 0
        %vm322 = vcmp.ge.s32.totalorder %v313, 0
        %vm323 = vcmp.lt.s32.totalorder %v312, 512
        %vm324 = vcmp.lt.s32.totalorder %v313, 512
        %vm325 = vmand %vm321, %vm323
        %vm326 = vmand %vm322, %vm324
        %v327 = vld [vmem:[%s1] sm:$0xff]
        %v328 = vld [vmem:[%s1 + $0x8] sm:$0xff]
        %v329 = vld [vmem:[%s1 + $0x10] sm:$0xff]
        %v330 = vld [vmem:[%s1 + $0x18] sm:$0xff]
        %v331 = vld [vmem:[%s1 + $0x20] sm:$0xff]
        %v332 = vld [vmem:[%s1 + $0x28] sm:$0xff]
        %v333 = vld [vmem:[%s1 + $0x30] sm:$0xff]
        %v334 = vld [vmem:[%s1 + $0x38] sm:$0xff]
        %v335 = vld [vmem:[%s1 + $0x40] sm:$0xff]
        %v336 = vld [vmem:[%s1 + $0x48] sm:$0xff]
        %v337 = vld [vmem:[%s1 + $0x50] sm:$0xff]
        %v338 = vld [vmem:[%s1 + $0x58] sm:$0xff]
        %v339 = vld [vmem:[%s1 + $0x60] sm:$0xff]
        %v340 = vld [vmem:[%s1 + $0x68] sm:$0xff]
        %v341 = vld [vmem:[%s1 + $0x70] sm:$0xff]
        %v342 = vld [vmem:[%s1 + $0x78] sm:$0xff]
        %v343 = vld [vmem:[%s1 + $0x80] sm:$0xff]
        %v344 = vld [vmem:[%s1 + $0x88] sm:$0xff]
        %v345 = vld [vmem:[%s1 + $0x90] sm:$0xff]
        %v346 = vld [vmem:[%s1 + $0x98] sm:$0xff]
        %v347 = vld [vmem:[%s1 + $0xa0] sm:$0xff]
        %v348 = vld [vmem:[%s1 + $0xa8] sm:$0xff]
        %v349 = vld [vmem:[%s1 + $0xb0] sm:$0xff]
        %v350 = vld [vmem:[%s1 + $0xb8] sm:$0xff]
        %v351 = vld [vmem:[%s1 + $0xc0] sm:$0xff]
        %v352 = vld [vmem:[%s1 + $0xc8] sm:$0xff]
        %v353 = vld [vmem:[%s1 + $0xd0] sm:$0xff]
        %v354 = vld [vmem:[%s1 + $0xd8] sm:$0xff]
        %v355 = vld [vmem:[%s1 + $0xe0] sm:$0xff]
        %v356 = vld [vmem:[%s1 + $0xe8] sm:$0xff]
        %v357 = vld [vmem:[%s1 + $0xf0] sm:$0xff]
        %v358 = vld [vmem:[%s1 + $0xf8] sm:$0xff]
        %v359 = vld [vmem:[%s1 + $0x100] sm:$0xff]
        %v360 = vld [vmem:[%s1 + $0x108] sm:$0xff]
        %v361 = vld [vmem:[%s1 + $0x110] sm:$0xff]
        %v362 = vld [vmem:[%s1 + $0x118] sm:$0xff]
        %v363 = vld [vmem:[%s1 + $0x120] sm:$0xff]
        %v364 = vld [vmem:[%s1 + $0x128] sm:$0xff]
        %v365 = vld [vmem:[%s1 + $0x130] sm:$0xff]
        %v366 = vld [vmem:[%s1 + $0x138] sm:$0xff]
        %v367 = vld [vmem:[%s1 + $0x140] sm:$0xff]
        %v368 = vld [vmem:[%s1 + $0x148] sm:$0xff]
        %v369 = vld [vmem:[%s1 + $0x150] sm:$0xff]
        %v370 = vld [vmem:[%s1 + $0x158] sm:$0xff]
        %v371 = vld [vmem:[%s1 + $0x160] sm:$0xff]
        %v372 = vld [vmem:[%s1 + $0x168] sm:$0xff]
        %v373 = vld [vmem:[%s1 + $0x170] sm:$0xff]
        %v374 = vld [vmem:[%s1 + $0x178] sm:$0xff]
        %v375 = vld [vmem:[%s1 + $0x180] sm:$0xff]
        %v376 = vld [vmem:[%s1 + $0x188] sm:$0xff]
        %v377 = vld [vmem:[%s1 + $0x190] sm:$0xff]
        %v378 = vld [vmem:[%s1 + $0x198] sm:$0xff]
        %v379 = vld [vmem:[%s1 + $0x1a0] sm:$0xff]
        %v380 = vld [vmem:[%s1 + $0x1a8] sm:$0xff]
        %v381 = vld [vmem:[%s1 + $0x1b0] sm:$0xff]
        %v382 = vld [vmem:[%s1 + $0x1b8] sm:$0xff]
        %v383 = vld [vmem:[%s1 + $0x1c0] sm:$0xff]
        %v384 = vld [vmem:[%s1 + $0x1c8] sm:$0xff]
        %v385 = vld [vmem:[%s1 + $0x1d0] sm:$0xff]
        %v386 = vld [vmem:[%s1 + $0x1d8] sm:$0xff]
        %v387 = vld [vmem:[%s1 + $0x1e0] sm:$0xff]
        %v388 = vld [vmem:[%s1 + $0x1e8] sm:$0xff]
        %v389 = vld [vmem:[%s1 + $0x1f0] sm:$0xff]
        %v390 = vld [vmem:[%s1 + $0x1f8] sm:$0xff]
        %v391 = vld [vmem:[%s1 + $0x200] sm:$0xff]
        %v392 = vld [vmem:[%s1 + $0x208] sm:$0xff]
        %v393 = vld [vmem:[%s1 + $0x210] sm:$0xff]
        %v394 = vld [vmem:[%s1 + $0x218] sm:$0xff]
        %v395 = vld [vmem:[%s1 + $0x220] sm:$0xff]
        %v396 = vld [vmem:[%s1 + $0x228] sm:$0xff]
        %v397 = vld [vmem:[%s1 + $0x230] sm:$0xff]
        %v398 = vld [vmem:[%s1 + $0x238] sm:$0xff]
        %v399 = vld [vmem:[%s2] sm:$0xff]
        %v400 = vld [vmem:[%s2 + $0x8] sm:$0xff]
        %v401 = vld [vmem:[%s2 + $0x10] sm:$0xff]
        %v402 = vld [vmem:[%s2 + $0x18] sm:$0xff]
        %v403 = vld [vmem:[%s2 + $0x20] sm:$0xff]
        %v404 = vld [vmem:[%s2 + $0x28] sm:$0xff]
        %v405 = vld [vmem:[%s2 + $0x30] sm:$0xff]
        %v406 = vld [vmem:[%s2 + $0x38] sm:$0xff]
        %v407 = vld [vmem:[%s2 + $0x40] sm:$0xff]
        %v408 = vld [vmem:[%s2 + $0x48] sm:$0xff]
        %v409 = vld [vmem:[%s2 + $0x50] sm:$0xff]
        %v410 = vld [vmem:[%s2 + $0x58] sm:$0xff]
        %v411 = vld [vmem:[%s2 + $0x60] sm:$0xff]
        %v412 = vld [vmem:[%s2 + $0x68] sm:$0xff]
        %v413 = vld [vmem:[%s2 + $0x70] sm:$0xff]
        %v414 = vld [vmem:[%s2 + $0x78] sm:$0xff]
        %v415 = vld [vmem:[%s2 + $0x80] sm:$0xff]
        %v416 = vld [vmem:[%s2 + $0x88] sm:$0xff]
        %v417 = vld [vmem:[%s2 + $0x90] sm:$0xff]
        %v418 = vld [vmem:[%s2 + $0x98] sm:$0xff]
        %v419 = vld [vmem:[%s2 + $0xa0] sm:$0xff]
        %v420 = vld [vmem:[%s2 + $0xa8] sm:$0xff]
        %v421 = vld [vmem:[%s2 + $0xb0] sm:$0xff]
        %v422 = vld [vmem:[%s2 + $0xb8] sm:$0xff]
        %v423 = vld [vmem:[%s2 + $0xc0] sm:$0xff]
        %v424 = vld [vmem:[%s2 + $0xc8] sm:$0xff]
        %v425 = vld [vmem:[%s2 + $0xd0] sm:$0xff]
        %v426 = vld [vmem:[%s2 + $0xd8] sm:$0xff]
        %v427 = vld [vmem:[%s2 + $0xe0] sm:$0xff]
        %v428 = vld [vmem:[%s2 + $0xe8] sm:$0xff]
        %v429 = vld [vmem:[%s2 + $0xf0] sm:$0xff]
        %v430 = vld [vmem:[%s2 + $0xf8] sm:$0xff]
        %v431 = vld [vmem:[%s2 + $0x100] sm:$0xff]
        %v432 = vld [vmem:[%s2 + $0x108] sm:$0xff]
        %v433 = vld [vmem:[%s2 + $0x110] sm:$0xff]
        %v434 = vld [vmem:[%s2 + $0x118] sm:$0xff]
        %v435 = vld [vmem:[%s2 + $0x120] sm:$0xff]
        %v436 = vld [vmem:[%s2 + $0x128] sm:$0xff]
        %v437 = vld [vmem:[%s2 + $0x130] sm:$0xff]
        %v438 = vld [vmem:[%s2 + $0x138] sm:$0xff]
        %v439 = vld [vmem:[%s2 + $0x140] sm:$0xff]
        %v440 = vld [vmem:[%s2 + $0x148] sm:$0xff]
        %v441 = vld [vmem:[%s2 + $0x150] sm:$0xff]
        %v442 = vld [vmem:[%s2 + $0x158] sm:$0xff]
        %v443 = vld [vmem:[%s2 + $0x160] sm:$0xff]
        %v444 = vld [vmem:[%s2 + $0x168] sm:$0xff]
        %v445 = vld [vmem:[%s2 + $0x170] sm:$0xff]
        %v446 = vld [vmem:[%s2 + $0x178] sm:$0xff]
        %v447 = vld [vmem:[%s2 + $0x180] sm:$0xff]
        %v448 = vld [vmem:[%s2 + $0x188] sm:$0xff]
        %v449 = vld [vmem:[%s2 + $0x190] sm:$0xff]
        %v450 = vld [vmem:[%s2 + $0x198] sm:$0xff]
        %v451 = vld [vmem:[%s2 + $0x1a0] sm:$0xff]
        %v452 = vld [vmem:[%s2 + $0x1a8] sm:$0xff]
        %v453 = vld [vmem:[%s2 + $0x1b0] sm:$0xff]
        %v454 = vld [vmem:[%s2 + $0x1b8] sm:$0xff]
        %v455 = vld [vmem:[%s2 + $0x1c0] sm:$0xff]
        %v456 = vld [vmem:[%s2 + $0x1c8] sm:$0xff]
        %v457 = vld [vmem:[%s2 + $0x1d0] sm:$0xff]
        %v458 = vld [vmem:[%s2 + $0x1d8] sm:$0xff]
        %v459 = vld [vmem:[%s2 + $0x1e0] sm:$0xff]
        %v460 = vld [vmem:[%s2 + $0x1e8] sm:$0xff]
        %v461 = vld [vmem:[%s2 + $0x1f0] sm:$0xff]
        %v462 = vld [vmem:[%s2 + $0x1f8] sm:$0xff]
        %v463 = vld [vmem:[%s2 + $0x200] sm:$0xff]
        %v464 = vld [vmem:[%s2 + $0x208] sm:$0xff]
        %v465 = vld [vmem:[%s2 + $0x210] sm:$0xff]
        %v466 = vld [vmem:[%s2 + $0x218] sm:$0xff]
        %v467 = vld [vmem:[%s2 + $0x220] sm:$0xff]
        %v468 = vld [vmem:[%s2 + $0x228] sm:$0xff]
        %v469 = vld [vmem:[%s2 + $0x230] sm:$0xff]
        %v470 = vld [vmem:[%s2 + $0x238] sm:$0xff]
        %v471 = vld [vmem:[%s2 + $0x240] sm:$0xff]
        %v472 = vld [vmem:[%s2 + $0x248] sm:$0xff]
        %v473 = vld [vmem:[%s2 + $0x250] sm:$0xff]
        %v474 = vld [vmem:[%s2 + $0x258] sm:$0xff]
        %v475 = vld [vmem:[%s2 + $0x260] sm:$0xff]
        %v476 = vld [vmem:[%s2 + $0x268] sm:$0xff]
        %v477 = vld [vmem:[%s2 + $0x270] sm:$0xff]
        %v478 = vld [vmem:[%s2 + $0x278] sm:$0xff]
        %v479 = vld [vmem:[%s2 + $0x280] sm:$0xff]
        %v480 = vld [vmem:[%s2 + $0x288] sm:$0xff]
        %v481 = vld [vmem:[%s2 + $0x290] sm:$0xff]
        %v482 = vld [vmem:[%s2 + $0x298] sm:$0xff]
        %v483 = vld [vmem:[%s2 + $0x2a0] sm:$0xff]
        %v484 = vld [vmem:[%s2 + $0x2a8] sm:$0xff]
        %v485 = vld [vmem:[%s2 + $0x2b0] sm:$0xff]
        %v486 = vld [vmem:[%s2 + $0x2b8] sm:$0xff]
        %v487 = vld [vmem:[%s2 + $0x2c0] sm:$0xff]
        %v488 = vld [vmem:[%s2 + $0x2c8] sm:$0xff]
        %v489 = vld [vmem:[%s2 + $0x2d0] sm:$0xff]
        %v490 = vld [vmem:[%s2 + $0x2d8] sm:$0xff]
        %v491 = vld [vmem:[%s2 + $0x2e0] sm:$0xff]
        %v492 = vld [vmem:[%s2 + $0x2e8] sm:$0xff]
        %v493 = vld [vmem:[%s2 + $0x2f0] sm:$0xff]
        %v494 = vld [vmem:[%s2 + $0x2f8] sm:$0xff]
        %v495 = vld [vmem:[%s304] sm:$0xff]
        %v496 = vld [vmem:[%s304 + $0x8] sm:$0xff]
        %v497 = vld [vmem:[%s5] sm:$0xff]
        %v498 = vld [vmem:[%s6] sm:$0xff]
        %vm499 = vcmp.lt.s32.totalorder %v312, 0
        %vm500 = vcmp.lt.s32.totalorder %v313, 0
        %v501 = vsel %vm499, 1, 0
        %v502 = vsel %vm500, 1, 0
        %vm503 = vcmp.eq.s32.totalorder %v501, 1
        %vm504 = vcmp.eq.s32.totalorder %v502, 1
        %506 = vset.pattern.permute.xlu0 32
        %507 = vperm.xlu0 %506, %v495
        %v508 = vpop.permute.xlu0 %507
        %v510 = vsel %vm503, %v508, %v495
        %v511 = vsel %vm504, %v508, %v496
        %vm512 = vcmp.ge.s32.totalorder %v312, 512
        %vm513 = vcmp.ge.s32.totalorder %v313, 512
        %v514 = vsel %vm512, 1, 0
        %v515 = vsel %vm513, 1, 0
        %vm516 = vcmp.eq.s32.totalorder %v514, 1
        %vm517 = vcmp.eq.s32.totalorder %v515, 1
        %519 = vset.pattern.permute.xlu0 31
        %520 = vperm.xlu0 %519, %v511
        %v521 = vpop.permute.xlu0 %520
        %v523 = vsel %vm516, %v521, %v510
        %v524 = vsel %vm517, %v521, %v511
        %v526 = vsel %vm318, %v524, 0
        %528 = vmatprep.subr.mxu0 %v373
        %529 = vmatpush1.msra.mxu0 %v372
        %530 = vmatprep.subr.mxu0 %v370
        %531 = vmatpush1.msra.mxu0 %v369
        %532 = vmatprep.subr.mxu0 %v367
        %533 = vmatpush1.msra.mxu0 %v366
        %534 = vmatprep.subr.mxu0 %v364
        %535 = vmatpush1.msra.mxu0 %v363
        %536 = vmatprep.subr.mxu0 %v361
        %537 = vmatpush1.msra.mxu0 %v360
        %538 = vmatprep.subr.mxu0 %v358
        %539 = vmatpush1.msra.mxu0 %v357
        %540 = vmatprep.subr.mxu0 %v355
        %541 = vmatpush1.msra.mxu0 %v354
        %542 = vmatprep.subr.mxu0 %v352
        %543 = vmatpush1.msra.mxu0 %v351
        %544 = vmatprep.subr.mxu0 %v349
        %545 = vmatpush1.msra.mxu0 %v348
        %546 = vmatprep.subr.mxu0 %v346
        %547 = vmatpush1.msra.mxu0 %v345
        %548 = vmatprep.subr.mxu0 %v343
        %549 = vmatpush1.msra.mxu0 %v342
        %550 = vmatprep.subr.mxu0 %v340
        %551 = vmatpush1.msra.mxu0 %v339
        %552 = vmatprep.subr.mxu0 %v337
        %553 = vmatpush1.msra.mxu0 %v336
        %554 = vmatprep.subr.mxu0 %v334
        %555 = vmatpush1.msra.mxu0 %v333
        %556 = vmatprep.subr.mxu0 %v331
        %557 = vmatpush1.msra.mxu0 %v330
        %558 = vmatprep.subr.mxu0 %v328
        %559 = vmatpush1.msra.mxu0 %v327
        %560 = vmatprep.subr.mxu0 0.0
        %561 = vmatpush2.msra.mxu0 0.0
        %562 = vmatprep.subr.mxu0 0.0
        %563 = vmatpush2.msra.mxu0 0.0
        %564 = vmatprep.subr.mxu0 0.0
        %565 = vmatpush2.msra.mxu0 0.0
        %566 = vmatprep.subr.mxu0 0.0
        %567 = vmatpush2.msra.mxu0 0.0
        %568 = vmatprep.subr.mxu0 0.0
        %569 = vmatpush2.msra.mxu0 0.0
        %570 = vmatprep.subr.mxu0 0.0
        %571 = vmatpush2.msra.mxu0 0.0
        %572 = vmatprep.subr.mxu0 0.0
        %573 = vmatpush2.msra.mxu0 0.0
        %574 = vmatprep.subr.mxu0 0.0
        %575 = vmatpush2.msra.mxu0 0.0
        %576 = vmatprep.subr.mxu0 %v397
        %577 = vmatpush2.msra.mxu0 %v396
        %578 = vmatprep.subr.mxu0 %v394
        %579 = vmatpush2.msra.mxu0 %v393
        %580 = vmatprep.subr.mxu0 %v391
        %581 = vmatpush2.msra.mxu0 %v390
        %582 = vmatprep.subr.mxu0 %v388
        %583 = vmatpush2.msra.mxu0 %v387
        %584 = vmatprep.subr.mxu0 %v385
        %585 = vmatpush2.msra.mxu0 %v384
        %586 = vmatprep.subr.mxu0 %v382
        %587 = vmatpush2.msra.mxu0 %v381
        %588 = vmatprep.subr.mxu0 %v379
        %589 = vmatpush2.msra.mxu0 %v378
        %590 = vmatprep.subr.mxu0 %v376
        %591 = vmatpush2.msra.mxu0 %v375
        %592 = vmatprep.mubr.f32.mxu0 %v526
        %593 = vmatmul.mubr.f32.gmra.mxu0 %v523
        %v594 = vpop.f32.mrf.mxu0
        %v595 = vadd.f32 0.0, %v594
        %v596 = vpop.f32.mrf.mxu0
        %v597 = vadd.f32 0.0, %v596
        %598 = vdwg.mxu0
        %599 = vmatprep.subr.mxu0 0.0
        %600 = vmatpush1.msra.mxu0 %v374
        %601 = vmatprep.subr.mxu0 0.0
        %602 = vmatpush1.msra.mxu0 %v371
        %603 = vmatprep.subr.mxu0 0.0
        %604 = vmatpush1.msra.mxu0 %v368
        %605 = vmatprep.subr.mxu0 0.0
        %606 = vmatpush1.msra.mxu0 %v365
        %607 = vmatprep.subr.mxu0 0.0
        %608 = vmatpush1.msra.mxu0 %v362
        %609 = vmatprep.subr.mxu0 0.0
        %610 = vmatpush1.msra.mxu0 %v359
        %611 = vmatprep.subr.mxu0 0.0
        %612 = vmatpush1.msra.mxu0 %v356
        %613 = vmatprep.subr.mxu0 0.0
        %614 = vmatpush1.msra.mxu0 %v353
        %615 = vmatprep.subr.mxu0 0.0
        %616 = vmatpush1.msra.mxu0 %v350
        %617 = vmatprep.subr.mxu0 0.0
        %618 = vmatpush1.msra.mxu0 %v347
        %619 = vmatprep.subr.mxu0 0.0
        %620 = vmatpush1.msra.mxu0 %v344
        %621 = vmatprep.subr.mxu0 0.0
        %622 = vmatpush1.msra.mxu0 %v341
        %623 = vmatprep.subr.mxu0 0.0
        %624 = vmatpush1.msra.mxu0 %v338
        %625 = vmatprep.subr.mxu0 0.0
        %626 = vmatpush1.msra.mxu0 %v335
        %627 = vmatprep.subr.mxu0 0.0
        %628 = vmatpush1.msra.mxu0 %v332
        %629 = vmatprep.subr.mxu0 0.0
        %630 = vmatpush1.msra.mxu0 %v329
        %631 = vmatprep.subr.mxu0 0.0
        %632 = vmatpush2.msra.mxu0 0.0
        %633 = vmatprep.subr.mxu0 0.0
        %634 = vmatpush2.msra.mxu0 0.0
        %635 = vmatprep.subr.mxu0 0.0
        %636 = vmatpush2.msra.mxu0 0.0
        %637 = vmatprep.subr.mxu0 0.0
        %638 = vmatpush2.msra.mxu0 0.0
        %639 = vmatprep.subr.mxu0 0.0
        %640 = vmatpush2.msra.mxu0 0.0
        %641 = vmatprep.subr.mxu0 0.0
        %642 = vmatpush2.msra.mxu0 0.0
        %643 = vmatprep.subr.mxu0 0.0
        %644 = vmatpush2.msra.mxu0 0.0
        %645 = vmatprep.subr.mxu0 0.0
        %646 = vmatpush2.msra.mxu0 0.0
        %647 = vmatprep.subr.mxu0 0.0
        %648 = vmatpush2.msra.mxu0 %v398
        %649 = vmatprep.subr.mxu0 0.0
        %650 = vmatpush2.msra.mxu0 %v395
        %651 = vmatprep.subr.mxu0 0.0
        %652 = vmatpush2.msra.mxu0 %v392
        %653 = vmatprep.subr.mxu0 0.0
        %654 = vmatpush2.msra.mxu0 %v389
        %655 = vmatprep.subr.mxu0 0.0
        %656 = vmatpush2.msra.mxu0 %v386
        %657 = vmatprep.subr.mxu0 0.0
        %658 = vmatpush2.msra.mxu0 %v383
        %659 = vmatprep.subr.mxu0 0.0
        %660 = vmatpush2.msra.mxu0 %v380
        %661 = vmatprep.subr.mxu0 0.0
        %662 = vmatpush2.msra.mxu0 %v377
        %663 = vmatprep.mubr.f32.mxu0 %v526
        %664 = vmatmul.mubr.f32.gmra.mxu0 %v523
        %v665 = vpop.f32.mrf.mxu0
        %v666 = vadd.f32 0.0, %v665
        %v667 = vpop.f32.mrf.mxu0
        %668 = vdwg.mxu0
        %vm669 = vcmp.lt.s32.totalorder %v320, 0
        %vm670 = vcmp.lt.s32.totalorder %v319, 0
        %v671 = vsel %vm669, 1, 0
        %v672 = vsel %vm670, 1, 0
        %v673 = vlaneseq
        %v674 = vshrl.u32 %v673, 7
        %v675 = vsub.s32 0, %v674
        %v676 = vrot.slane %v501, %v675
        %v677 = vlaneseq
        %v678 = vshrl.u32 %v677, 7
        %v679 = vsub.s32 0, %v678
        %v680 = vrot.slane %v671, %v679
        %v681 = vlaneseq
        %v682 = vshrl.u32 %v681, 7
        %v683 = vsub.s32 0, %v682
        %v684 = vrot.slane %v672, %v683
        %vm685 = vcmp.eq.s32.totalorder %v676, 1
        %vm686 = vcmp.eq.s32.totalorder %v680, 1
        %vm687 = vcmp.eq.s32.totalorder %v684, 1
        %689 = vset.pattern.permute.xlu0 32
        %690 = vperm.xlu0 %689, %v595
        %v691 = vpop.permute.xlu0 %690
        %v693 = vsel %vm685, %v691, %v595
        %v694 = vsel %vm686, %v691, %v597
        %v695 = vsel %vm687, %v691, %v666
        %vm696 = vcmp.ge.s32.totalorder %v320, 512
        %vm697 = vcmp.ge.s32.totalorder %v319, 512
        %v698 = vsel %vm696, 1, 0
        %v699 = vsel %vm697, 1, 0
        %v700 = vlaneseq
        %v701 = vshrl.u32 %v700, 7
        %v702 = vsub.s32 0, %v701
        %v703 = vrot.slane %v514, %v702
        %v704 = vlaneseq
        %v705 = vshrl.u32 %v704, 7
        %v706 = vsub.s32 0, %v705
        %v707 = vrot.slane %v698, %v706
        %v708 = vlaneseq
        %v709 = vshrl.u32 %v708, 7
        %v710 = vsub.s32 0, %v709
        %v711 = vrot.slane %v699, %v710
        %vm712 = vcmp.eq.s32.totalorder %v703, 1
        %vm713 = vcmp.eq.s32.totalorder %v707, 1
        %vm714 = vcmp.eq.s32.totalorder %v711, 1
        %716 = vset.pattern.permute.xlu0 95
        %717 = vperm.xlu0 %716, %v695
        %v718 = vpop.permute.xlu0 %717
        %v720 = vsel %vm712, %v718, %v693
        %v721 = vsel %vm713, %v718, %v694
        %v722 = vsel %vm714, %v718, %v695
        %724 = vset.pattern.permute.xlu0 0
        %725 = vperm.xlu0 %724, %v497
        %v726 = vpop.permute.xlu0 %725
        %v728 = vmul.f32 %v726, %v720
        %v729 = vmul.f32 %v726, %v721
        %v730 = vmul.f32 %v726, %v722
        %v731 = vand.u32 2147483647, %v728
        %vm732 = vcmp.le.f32.partialorder %v731, 0.7853982
        %vm733 = vcmp.lt.s32.totalorder %v728, 0
        %v734 = vand.u32 %v728, 2139095040
        %v735 = vshrl.u32 %v734, 23
        %v736 = vsub.s32 %v735, 127
        %v737 = vand.u32 2147483647, %v728
        %v738 = vand.u32 %v737, 8388607
        %v739 = vor.u32 %v738, 8388608
        %v740 = vsub.s32 0, %v739
        %v741 = vadd.s32 %v736, 1
        %vm742 = vcmp.gt.s32.totalorder %v741, 0
        %v743 = vsel %vm742, %v741, 0
        %v744 = vshrl.u32 %v743, 5
        %v745 = vand.u32 %v743, 31
        %v746 = vsub.s32 32, %v745
        %v747 = vshrl.u32 683565275, %v746
        %v748 = vshll.u32 683565275, %v745
        %v749 = vshrl.u32 2475754826, %v746
        %v750 = vor.u32 %v748, %v749
        %v751 = vshll.u32 2475754826, %v745
        %v752 = vshrl.u32 2131351028, %v746
        %v753 = vor.u32 %v751, %v752
        %v754 = vshll.u32 2131351028, %v745
        %v755 = vshrl.u32 2102212464, %v746
        %v756 = vor.u32 %v754, %v755
        %v757 = vshll.u32 2102212464, %v745
        %v758 = vshrl.u32 920167782, %v746
        %v759 = vor.u32 %v757, %v758
        %v760 = vshll.u32 920167782, %v745
        %v761 = vshrl.u32 1326507024, %v746
        %v762 = vor.u32 %v760, %v761
        %vm763 = vcmp.lt.s32.totalorder %v744, 1
        %vm764 = vcmp.lt.s32.totalorder %v744, 2
        %vm765 = vcmp.lt.s32.totalorder %v744, 3
        %vm766 = vcmp.lt.s32.totalorder %v744, 4
        %v767 = vsel %vm763, %v747, %v750
        %v768 = vsel %vm766, %v756, 2102212464
        %v769 = vsel %vm765, %v753, %v768
        %v770 = vsel %vm764, %v767, %v769
        %v771 = vsel %vm763, %v750, %v753
        %v772 = vsel %vm766, %v759, 920167782
        %v773 = vsel %vm765, %v756, %v772
        %v774 = vsel %vm764, %v771, %v773
        %v775 = vsel %vm763, %v753, %v756
        %v776 = vsel %vm766, %v762, 1326507024
        %v777 = vsel %vm765, %v759, %v776
        %v778 = vsel %vm764, %v775, %v777
        %v779 = vshll.u32 %v739, 8
        %v780 = vmul.u32.u64.compose %v779, %v778
        %v781 = vextract.low.u32 %v780
        %v782 = vextract.high.u32 %v780
        %v783 = vmul.u32.u64.compose %v779, %v774
        %v784 = vextract.low.u32 %v783
        %v785 = vextract.high.u32 %v783
        %v786 = vmul.u32 %v779, %v770
        %v787 = vadd.s32 %v782, %v784
        %vm788 = vc.u32 %v782, %v784
        %v789 = vadd.s32 %v785, 1
        %v790 = vsel %vm788, %v789, %v785
        %v791 = vadd.s32 %v786, %v790
        %v792 = vadd.s32 %v791, 536870912
        %v793 = vshrl.u32 %v792, 30
        %v794 = vshll.u32 %v793, 30
        %v795 = vsub.s32 %v791, %v794
        %vm796 = vcmp.lt.s32.totalorder %v795, 0
        %v797 = vsub.s32 0, %v795
        %v798 = vsel %vm796, %v797, %v795
        %v799 = vclz %v798
        %v800 = vsub.s32 %v799, 2
        %vm801 = vcmp.gt.s32.totalorder 0, %v800
        %v802 = vsel %vm801, 0, %v800
        %v803 = vsub.s32 32, %v802
        %v804 = vshll.u32 %v795, %v802
        %v805 = vshrl.u32 %v787, %v803
        %v806 = vor.u32 %v804, %v805
        %v807 = vsub.s32 4294967266, %v802
        %v808 = vadd.s32 %v807, 127
        %v809 = vshll.u32 %v808, 23
        %v810 = vor.u32 4788187, %v809
        %v811 = vand.u32 2147483647, %v810
        %v813 = vcvt.s32.f32 %v806
        %v814 = vmul.f32 %v813, %v811
        %v815 = vxor.u32 %v814, 2147483648
        %v816 = vsel %vm733, %v815, %v814
        %v817 = vsub.s32 4, %v793
        %v818 = vsel %vm733, %v817, %v793
        %v819 = vsel %vm732, %v728, %v816
        %v820 = vsel %vm732, 0, %v818
        %v821 = vcosq.f32.pop %v819
        %v822 = vsinq.f32.pop %v819
        %vm823 = vweird.f32 %v728
        %v824 = vand.u32 %v820, 3
        %vm825 = vcmp.lt.s32.totalorder %v824, 2
        %vm826 = vcmp.eq.s32.totalorder %v824, 0
        %v827 = vxor.u32 %v822, 2147483648
        %v828 = vsel %vm826, %v821, %v827
        %vm829 = vcmp.eq.s32.totalorder %v824, 2
        %v830 = vxor.u32 %v821, 2147483648
        %v831 = vsel %vm829, %v830, %v822
        %v832 = vsel %vm825, %v828, %v831
        %v833 = vsel %vm823, nan, %v832
        %v834 = vand.u32 2147483647, %v729
        %vm835 = vcmp.le.f32.partialorder %v834, 0.7853982
        %vm836 = vcmp.lt.s32.totalorder %v729, 0
        %v837 = vand.u32 %v729, 2139095040
        %v838 = vshrl.u32 %v837, 23
        %v839 = vsub.s32 %v838, 127
        %v840 = vand.u32 2147483647, %v729
        %v841 = vand.u32 %v840, 8388607
        %v842 = vor.u32 %v841, 8388608
        %v843 = vsub.s32 0, %v842
        %v844 = vadd.s32 %v839, 1
        %vm845 = vcmp.gt.s32.totalorder %v844, 0
        %v846 = vsel %vm845, %v844, 0
        %v847 = vshrl.u32 %v846, 5
        %v848 = vand.u32 %v846, 31
        %v849 = vsub.s32 32, %v848
        %v850 = vshrl.u32 683565275, %v849
        %v851 = vshll.u32 683565275, %v848
        %v852 = vshrl.u32 2475754826, %v849
        %v853 = vor.u32 %v851, %v852
        %v854 = vshll.u32 2475754826, %v848
        %v855 = vshrl.u32 2131351028, %v849
        %v856 = vor.u32 %v854, %v855
        %v857 = vshll.u32 2131351028, %v848
        %v858 = vshrl.u32 2102212464, %v849
        %v859 = vor.u32 %v857, %v858
        %v860 = vshll.u32 2102212464, %v848
        %v861 = vshrl.u32 920167782, %v849
        %v862 = vor.u32 %v860, %v861
        %v863 = vshll.u32 920167782, %v848
        %v864 = vshrl.u32 1326507024, %v849
        %v865 = vor.u32 %v863, %v864
        %vm866 = vcmp.lt.s32.totalorder %v847, 1
        %vm867 = vcmp.lt.s32.totalorder %v847, 2
        %vm868 = vcmp.lt.s32.totalorder %v847, 3
        %vm869 = vcmp.lt.s32.totalorder %v847, 4
        %v870 = vsel %vm866, %v850, %v853
        %v871 = vsel %vm869, %v859, 2102212464
        %v872 = vsel %vm868, %v856, %v871
        %v873 = vsel %vm867, %v870, %v872
        %v874 = vsel %vm866, %v853, %v856
        %v875 = vsel %vm869, %v862, 920167782
        %v876 = vsel %vm868, %v859, %v875
        %v877 = vsel %vm867, %v874, %v876
        %v878 = vsel %vm866, %v856, %v859
        %v879 = vsel %vm869, %v865, 1326507024
        %v880 = vsel %vm868, %v862, %v879
        %v881 = vsel %vm867, %v878, %v880
        %v882 = vshll.u32 %v842, 8
        %v883 = vmul.u32.u64.compose %v882, %v881
        %v884 = vextract.low.u32 %v883
        %v885 = vextract.high.u32 %v883
        %v886 = vmul.u32.u64.compose %v882, %v877
        %v887 = vextract.low.u32 %v886
        %v888 = vextract.high.u32 %v886
        %v889 = vmul.u32 %v882, %v873
        %v890 = vadd.s32 %v885, %v887
        %vm891 = vc.u32 %v885, %v887
        %v892 = vadd.s32 %v888, 1
        %v893 = vsel %vm891, %v892, %v888
        %v894 = vadd.s32 %v889, %v893
        %v895 = vadd.s32 %v894, 536870912
        %v896 = vshrl.u32 %v895, 30
        %v897 = vshll.u32 %v896, 30
        %v898 = vsub.s32 %v894, %v897
        %vm899 = vcmp.lt.s32.totalorder %v898, 0
        %v900 = vsub.s32 0, %v898
        %v901 = vsel %vm899, %v900, %v898
        %v902 = vclz %v901
        %v903 = vsub.s32 %v902, 2
        %vm904 = vcmp.gt.s32.totalorder 0, %v903
        %v905 = vsel %vm904, 0, %v903
        %v906 = vsub.s32 32, %v905
        %v907 = vshll.u32 %v898, %v905
        %v908 = vshrl.u32 %v890, %v906
        %v909 = vor.u32 %v907, %v908
        %v910 = vsub.s32 4294967266, %v905
        %v911 = vadd.s32 %v910, 127
        %v912 = vshll.u32 %v911, 23
        %v913 = vor.u32 4788187, %v912
        %v914 = vand.u32 2147483647, %v913
        %v916 = vcvt.s32.f32 %v909
        %v917 = vmul.f32 %v916, %v914
        %v918 = vxor.u32 %v917, 2147483648
        %v919 = vsel %vm836, %v918, %v917
        %v920 = vsub.s32 4, %v896
        %v921 = vsel %vm836, %v920, %v896
        %v922 = vsel %vm835, %v729, %v919
        %v923 = vsel %vm835, 0, %v921
        %v924 = vcosq.f32.pop %v922
        %v925 = vsinq.f32.pop %v922
        %vm926 = vweird.f32 %v729
        %v927 = vand.u32 %v923, 3
        %vm928 = vcmp.lt.s32.totalorder %v927, 2
        %vm929 = vcmp.eq.s32.totalorder %v927, 0
        %v930 = vxor.u32 %v925, 2147483648
        %v931 = vsel %vm929, %v924, %v930
        %vm932 = vcmp.eq.s32.totalorder %v927, 2
        %v933 = vxor.u32 %v924, 2147483648
        %v934 = vsel %vm932, %v933, %v925
        %v935 = vsel %vm928, %v931, %v934
        %v936 = vsel %vm926, nan, %v935
        %v937 = vand.u32 2147483647, %v730
        %vm938 = vcmp.le.f32.partialorder %v937, 0.7853982
        %vm939 = vcmp.lt.s32.totalorder %v730, 0
        %v940 = vand.u32 %v730, 2139095040
        %v941 = vshrl.u32 %v940, 23
        %v942 = vsub.s32 %v941, 127
        %v943 = vand.u32 2147483647, %v730
        %v944 = vand.u32 %v943, 8388607
        %v945 = vor.u32 %v944, 8388608
        %v946 = vsub.s32 0, %v945
        %v947 = vadd.s32 %v942, 1
        %vm948 = vcmp.gt.s32.totalorder %v947, 0
        %v949 = vsel %vm948, %v947, 0
        %v950 = vshrl.u32 %v949, 5
        %v951 = vand.u32 %v949, 31
        %v952 = vsub.s32 32, %v951
        %v953 = vshrl.u32 683565275, %v952
        %v954 = vshll.u32 683565275, %v951
        %v955 = vshrl.u32 2475754826, %v952
        %v956 = vor.u32 %v954, %v955
        %v957 = vshll.u32 2475754826, %v951
        %v958 = vshrl.u32 2131351028, %v952
        %v959 = vor.u32 %v957, %v958
        %v960 = vshll.u32 2131351028, %v951
        %v961 = vshrl.u32 2102212464, %v952
        %v962 = vor.u32 %v960, %v961
        %v963 = vshll.u32 2102212464, %v951
        %v964 = vshrl.u32 920167782, %v952
        %v965 = vor.u32 %v963, %v964
        %v966 = vshll.u32 920167782, %v951
        %v967 = vshrl.u32 1326507024, %v952
        %v968 = vor.u32 %v966, %v967
        %vm969 = vcmp.lt.s32.totalorder %v950, 1
        %vm970 = vcmp.lt.s32.totalorder %v950, 2
        %vm971 = vcmp.lt.s32.totalorder %v950, 3
        %vm972 = vcmp.lt.s32.totalorder %v950, 4
        %v973 = vsel %vm969, %v953, %v956
        %v974 = vsel %vm972, %v962, 2102212464
        %v975 = vsel %vm971, %v959, %v974
        %v976 = vsel %vm970, %v973, %v975
        %v977 = vsel %vm969, %v956, %v959
        %v978 = vsel %vm972, %v965, 920167782
        %v979 = vsel %vm971, %v962, %v978
        %v980 = vsel %vm970, %v977, %v979
        %v981 = vsel %vm969, %v959, %v962
        %v982 = vsel %vm972, %v968, 1326507024
        %v983 = vsel %vm971, %v965, %v982
        %v984 = vsel %vm970, %v981, %v983
        %v985 = vshll.u32 %v945, 8
        %v986 = vmul.u32.u64.compose %v985, %v984
        %v987 = vextract.low.u32 %v986
        %v988 = vextract.high.u32 %v986
        %v989 = vmul.u32.u64.compose %v985, %v980
        %v990 = vextract.low.u32 %v989
        %v991 = vextract.high.u32 %v989
        %v992 = vmul.u32 %v985, %v976
        %v993 = vadd.s32 %v988, %v990
        %vm994 = vc.u32 %v988, %v990
        %v995 = vadd.s32 %v991, 1
        %v996 = vsel %vm994, %v995, %v991
        %v997 = vadd.s32 %v992, %v996
        %v998 = vadd.s32 %v997, 536870912
        %v999 = vshrl.u32 %v998, 30
        %v1000 = vshll.u32 %v999, 30
        %v1001 = vsub.s32 %v997, %v1000
        %vm1002 = vcmp.lt.s32.totalorder %v1001, 0
        %v1003 = vsub.s32 0, %v1001
        %v1004 = vsel %vm1002, %v1003, %v1001
        %v1005 = vclz %v1004
        %v1006 = vsub.s32 %v1005, 2
        %vm1007 = vcmp.gt.s32.totalorder 0, %v1006
        %v1008 = vsel %vm1007, 0, %v1006
        %v1009 = vsub.s32 32, %v1008
        %v1010 = vshll.u32 %v1001, %v1008
        %v1011 = vshrl.u32 %v993, %v1009
        %v1012 = vor.u32 %v1010, %v1011
        %v1013 = vsub.s32 4294967266, %v1008
        %v1014 = vadd.s32 %v1013, 127
        %v1015 = vshll.u32 %v1014, 23
        %v1016 = vor.u32 4788187, %v1015
        %v1017 = vand.u32 2147483647, %v1016
        %v1019 = vcvt.s32.f32 %v1012
        %v1020 = vmul.f32 %v1019, %v1017
        %v1021 = vxor.u32 %v1020, 2147483648
        %v1022 = vsel %vm939, %v1021, %v1020
        %v1023 = vsub.s32 4, %v999
        %v1024 = vsel %vm939, %v1023, %v999
        %v1025 = vsel %vm938, %v730, %v1022
        %v1026 = vsel %vm938, 0, %v1024
        %v1027 = vcosq.f32.pop %v1025
        %v1028 = vsinq.f32.pop %v1025
        %vm1029 = vweird.f32 %v730
        %v1030 = vand.u32 %v1026, 3
        %vm1031 = vcmp.lt.s32.totalorder %v1030, 2
        %vm1032 = vcmp.eq.s32.totalorder %v1030, 0
        %v1033 = vxor.u32 %v1028, 2147483648
        %v1034 = vsel %vm1032, %v1027, %v1033
        %vm1035 = vcmp.eq.s32.totalorder %v1030, 2
        %v1036 = vxor.u32 %v1027, 2147483648
        %v1037 = vsel %vm1035, %v1036, %v1028
        %v1038 = vsel %vm1031, %v1034, %v1037
        %v1039 = vsel %vm1029, nan, %v1038
        %v1040 = vsub.f32 1.0, %v833
        %v1041 = vsub.f32 1.0, %v936
        %v1042 = vsub.f32 1.0, %v1039
        %1044 = vset.pattern.permute.xlu0 0
        %1045 = vperm.xlu0 %1044, %v498
        %v1046 = vpop.permute.xlu0 %1045
        %v1048 = vmul.f32 %v1046, %v1040
        %v1049 = vmul.f32 %v1046, %v1041
        %v1050 = vmul.f32 %v1046, %v1042
        %v1051 = vadd.f32 %v720, %v1048
        %v1052 = vadd.f32 %v721, %v1049
        %v1053 = vadd.f32 %v722, %v1050
        %1054 = vmatprep.subr.mxu0 %v430
        %1055 = vmatpush1.msra.mxu0 %v429
        %1056 = vmatprep.subr.mxu0 %v428
        %1057 = vmatpush1.msra.mxu0 %v427
        %1058 = vmatprep.subr.mxu0 %v426
        %1059 = vmatpush1.msra.mxu0 %v425
        %1060 = vmatprep.subr.mxu0 %v424
        %1061 = vmatpush1.msra.mxu0 %v423
        %1062 = vmatprep.subr.mxu0 %v422
        %1063 = vmatpush1.msra.mxu0 %v421
        %1064 = vmatprep.subr.mxu0 %v420
        %1065 = vmatpush1.msra.mxu0 %v419
        %1066 = vmatprep.subr.mxu0 %v418
        %1067 = vmatpush1.msra.mxu0 %v417
        %1068 = vmatprep.subr.mxu0 %v416
        %1069 = vmatpush1.msra.mxu0 %v415
        %1070 = vmatprep.subr.mxu0 %v414
        %1071 = vmatpush1.msra.mxu0 %v413
        %1072 = vmatprep.subr.mxu0 %v412
        %1073 = vmatpush1.msra.mxu0 %v411
        %1074 = vmatprep.subr.mxu0 %v410
        %1075 = vmatpush1.msra.mxu0 %v409
        %1076 = vmatprep.subr.mxu0 %v408
        %1077 = vmatpush1.msra.mxu0 %v407
        %1078 = vmatprep.subr.mxu0 %v406
        %1079 = vmatpush1.msra.mxu0 %v405
        %1080 = vmatprep.subr.mxu0 %v404
        %1081 = vmatpush1.msra.mxu0 %v403
        %1082 = vmatprep.subr.mxu0 %v402
        %1083 = vmatpush1.msra.mxu0 %v401
        %1084 = vmatprep.subr.mxu0 %v400
        %1085 = vmatpush1.msra.mxu0 %v399
        %1086 = vmatprep.subr.mxu0 %v462
        %1087 = vmatpush2.msra.mxu0 %v461
        %1088 = vmatprep.subr.mxu0 %v460
        %1089 = vmatpush2.msra.mxu0 %v459
        %1090 = vmatprep.subr.mxu0 %v458
        %1091 = vmatpush2.msra.mxu0 %v457
        %1092 = vmatprep.subr.mxu0 %v456
        %1093 = vmatpush2.msra.mxu0 %v455
        %1094 = vmatprep.subr.mxu0 %v454
        %1095 = vmatpush2.msra.mxu0 %v453
        %1096 = vmatprep.subr.mxu0 %v452
        %1097 = vmatpush2.msra.mxu0 %v451
        %1098 = vmatprep.subr.mxu0 %v450
        %1099 = vmatpush2.msra.mxu0 %v449
        %1100 = vmatprep.subr.mxu0 %v448
        %1101 = vmatpush2.msra.mxu0 %v447
        %1102 = vmatprep.subr.mxu0 %v446
        %1103 = vmatpush2.msra.mxu0 %v445
        %1104 = vmatprep.subr.mxu0 %v444
        %1105 = vmatpush2.msra.mxu0 %v443
        %1106 = vmatprep.subr.mxu0 %v442
        %1107 = vmatpush2.msra.mxu0 %v441
        %1108 = vmatprep.subr.mxu0 %v440
        %1109 = vmatpush2.msra.mxu0 %v439
        %1110 = vmatprep.subr.mxu0 %v438
        %1111 = vmatpush2.msra.mxu0 %v437
        %1112 = vmatprep.subr.mxu0 %v436
        %1113 = vmatpush2.msra.mxu0 %v435
        %1114 = vmatprep.subr.mxu0 %v434
        %1115 = vmatpush2.msra.mxu0 %v433
        %1116 = vmatprep.subr.mxu0 %v432
        %1117 = vmatpush2.msra.mxu0 %v431
        %1118 = vmatprep.mubr.f32.mxu0 %v1052
        %1119 = vmatmul.mubr.f32.gmra.mxu0 %v1051
        %v1120 = vpop.f32.mrf.mxu0
        %v1121 = vadd.f32 0.0, %v1120
        %v1122 = vpop.f32.mrf.mxu0
        %v1123 = vadd.f32 0.0, %v1122
        %1124 = vdwg.mxu0
        %1125 = vmatprep.subr.mxu0 %v494
        %1126 = vmatpush1.msra.mxu0 %v493
        %1127 = vmatprep.subr.mxu0 %v492
        %1128 = vmatpush1.msra.mxu0 %v491
        %1129 = vmatprep.subr.mxu0 %v490
        %1130 = vmatpush1.msra.mxu0 %v489
        %1131 = vmatprep.subr.mxu0 %v488
        %1132 = vmatpush1.msra.mxu0 %v487
        %1133 = vmatprep.subr.mxu0 %v486
        %1134 = vmatpush1.msra.mxu0 %v485
        %1135 = vmatprep.subr.mxu0 %v484
        %1136 = vmatpush1.msra.mxu0 %v483
        %1137 = vmatprep.subr.mxu0 %v482
        %1138 = vmatpush1.msra.mxu0 %v481
        %1139 = vmatprep.subr.mxu0 %v480
        %1140 = vmatpush1.msra.mxu0 %v479
        %1141 = vmatprep.subr.mxu0 %v478
        %1142 = vmatpush1.msra.mxu0 %v477
        %1143 = vmatprep.subr.mxu0 %v476
        %1144 = vmatpush1.msra.mxu0 %v475
        %1145 = vmatprep.subr.mxu0 %v474
        %1146 = vmatpush1.msra.mxu0 %v473
        %1147 = vmatprep.subr.mxu0 %v472
        %1148 = vmatpush1.msra.mxu0 %v471
        %1149 = vmatprep.subr.mxu0 %v470
        %1150 = vmatpush1.msra.mxu0 %v469
        %1151 = vmatprep.subr.mxu0 %v468
        %1152 = vmatpush1.msra.mxu0 %v467
        %1153 = vmatprep.subr.mxu0 %v466
        %1154 = vmatpush1.msra.mxu0 %v465
        %1155 = vmatprep.subr.mxu0 %v464
        %1156 = vmatpush1.msra.mxu0 %v463
        %1157 = vmatprep.subr.mxu0 0.0
        %1158 = vmatpush2.msra.mxu0 0.0
        %1159 = vmatprep.subr.mxu0 0.0
        %1160 = vmatpush2.msra.mxu0 0.0
        %1161 = vmatprep.subr.mxu0 0.0
        %1162 = vmatpush2.msra.mxu0 0.0
        %1163 = vmatprep.subr.mxu0 0.0
        %1164 = vmatpush2.msra.mxu0 0.0
        %1165 = vmatprep.subr.mxu0 0.0
        %1166 = vmatpush2.msra.mxu0 0.0
        %1167 = vmatprep.subr.mxu0 0.0
        %1168 = vmatpush2.msra.mxu0 0.0
        %1169 = vmatprep.subr.mxu0 0.0
        %1170 = vmatpush2.msra.mxu0 0.0
        %1171 = vmatprep.subr.mxu0 0.0
        %1172 = vmatpush2.msra.mxu0 0.0
        %1173 = vmatprep.subr.mxu0 0.0
        %1174 = vmatpush2.msra.mxu0 0.0
        %1175 = vmatprep.subr.mxu0 0.0
        %1176 = vmatpush2.msra.mxu0 0.0
        %1177 = vmatprep.subr.mxu0 0.0
        %1178 = vmatpush2.msra.mxu0 0.0
        %1179 = vmatprep.subr.mxu0 0.0
        %1180 = vmatpush2.msra.mxu0 0.0
        %1181 = vmatprep.subr.mxu0 0.0
        %1182 = vmatpush2.msra.mxu0 0.0
        %1183 = vmatprep.subr.mxu0 0.0
        %1184 = vmatpush2.msra.mxu0 0.0
        %1185 = vmatprep.subr.mxu0 0.0
        %1186 = vmatpush2.msra.mxu0 0.0
        %1187 = vmatprep.subr.mxu0 0.0
        %1188 = vmatpush2.msra.mxu0 0.0
        %1189 = vmatprep.mubr.f32.mxu0 0.0
        %1190 = vmatmul.mubr.f32.gmra.mxu0 %v1053
        %v1191 = vpop.f32.mrf.mxu0
        %v1192 = vadd.f32 %v1121, %v1191
        %v1193 = vpop.f32.mrf.mxu0
        %v1194 = vadd.f32 %v1123, %v1193
        %1195 = vdwg.mxu0
        %v1196 = vsel %vm325, 1, 0
        %v1197 = vsel %vm326, 1, 0
        %vm1198 = vcmp.eq.s32.totalorder %v1196, 1
        %vm1199 = vcmp.eq.s32.totalorder %v1197, 1
        %v1200 = vsel %vm1198, %v1192, 0.0
        %v1201 = vsel %vm1199, %v1194, 0.0
        %v1202 = vpack.c.bf16 %v1200, %v1200
        %v1203 = vpack.c.bf16 %v1201, %v1201
        %1206 = vrot.lane.b32.xlu0 %v1202, 1
        %v1207 = vpop.permute.xlu0 %1206
        %1208 = vrot.lane.b32.xlu0 %v1203, 1
        %v1209 = vpop.permute.xlu0 %1208
        %vm1210 = vcmask 7168
        %v1211 = vsel %vm1210, %v1207, %v1209
        %vm1212 = vcmask 7168
        %v1215 = vsel %vm1212, 0, %v1207
        %vm1216 = vcmask 531456
        %v1218 = vsel %vm1216, %v1211, 0
        %v1221 = vrot.slane %v1215, 4
        %v1222 = vrot.slane %v1218, 4
        %1223 = vrot.lane.b32.xlu0 %v1221, 127
        %v1224 = vpop.permute.xlu0 %1223
        %1225 = vrot.lane.b32.xlu0 %v1222, 127
        %v1226 = vpop.permute.xlu0 %1225
        %vm1227 = vcmask 1039360
        %v1228 = vsel %vm1227, %v1224, %v1226
        %1229 = vrot.lane.b32.xlu0 %v1215, 126
        %v1230 = vpop.permute.xlu0 %1229
        %1231 = vrot.lane.b32.xlu0 %v1218, 126
        %v1232 = vpop.permute.xlu0 %1231
        %vm1233 = vcmask 1031168
        %v1234 = vsel %vm1233, %v1230, %v1232
        %vm1235 = vcmask 1043456
        %v1237 = vsel %vm1235, %v1215, %v1228
        %v1240 = vsel %vm1235, %v1218, %v1226
        %v1242 = vld [vmem:[%s3] sm:$0xf]
        %vm1243 = vcmask 195584
        %v1245 = vsel %vm1243, %v1242, 0
        %v1248 = vsel %vm1235, %v1234, 0
        %v1251 = vsel %vm1235, %v1232, 0
        %1253 = vmatprep.subr.bf16.mxu0 0
        %1254 = vmatpush1.bf16.msra.mxu0 0
        %1255 = vmatprep.subr.bf16.mxu0 0
        %1256 = vmatpush1.bf16.msra.mxu0 0
        %1257 = vmatprep.subr.bf16.mxu0 0
        %1258 = vmatpush1.bf16.msra.mxu0 0
        %1259 = vmatprep.subr.bf16.mxu0 0
        %1260 = vmatpush1.bf16.msra.mxu0 0
        %1261 = vmatprep.subr.bf16.mxu0 0
        %1262 = vmatpush1.bf16.msra.mxu0 0
        %1263 = vmatprep.subr.bf16.mxu0 0
        %1264 = vmatpush1.bf16.msra.mxu0 0
        %1265 = vmatprep.subr.bf16.mxu0 %v1251
        %1266 = vmatpush1.bf16.msra.mxu0 %v1248
        %1267 = vmatprep.subr.bf16.mxu0 %v1240
        %1268 = vmatpush1.bf16.msra.mxu0 %v1237
        %1269 = vmatprep.subr.bf16.mxu0 0
        %1270 = vmatpush2.bf16.msra.mxu0 0
        %1271 = vmatprep.subr.bf16.mxu0 0
        %1272 = vmatpush2.bf16.msra.mxu0 0
        %1273 = vmatprep.subr.bf16.mxu0 0
        %1274 = vmatpush2.bf16.msra.mxu0 0
        %1275 = vmatprep.subr.bf16.mxu0 0
        %1276 = vmatpush2.bf16.msra.mxu0 0
        %1277 = vmatprep.subr.bf16.mxu0 0
        %1278 = vmatpush2.bf16.msra.mxu0 0
        %1279 = vmatprep.subr.bf16.mxu0 0
        %1280 = vmatpush2.bf16.msra.mxu0 0
        %1281 = vmatprep.subr.bf16.mxu0 0
        %1282 = vmatpush2.bf16.msra.mxu0 0
        %1283 = vmatprep.subr.bf16.mxu0 0
        %1284 = vmatpush2.bf16.msra.mxu0 0
        %1285 = vmatprep.mubr.bf16.mxu0 0
        %1286 = vmatmul.mubr.bf16.gmra.mxu0 %v1245
        %v1287 = vpop.f32.mrf.mxu0
        %v1288 = vadd.f32 0.0, %v1287
        %v1289 = vpop.f32.mrf.mxu0
        %v1290 = vadd.f32 0.0, %v1289
        %v1291 = vpop.f32.mrf.mxu0
        %v1292 = vpop.f32.mrf.mxu0
        %1293 = vdwg.mxu0
        %v1294 = vadd.f32 %v495, %v1288
        %v1295 = vadd.f32 %v496, %v1290
        %v1296 = vld [vmem:[%s4] sm:$0xff]
        %1298 = vset.pattern.permute.xlu0 0
        %1299 = vperm.xlu0 %1298, %v1296
        %v1300 = vpop.permute.xlu0 %1299
        %v1302 = vadd.f32 %v1294, %v1300
        %v1303 = vadd.f32 %v1295, %v1300
        %s1304 = scalar_lea.vmem %s5, 8
        %v1305 = vld [vmem:[%s1304] sm:$0xff]
        %s1306 = scalar_lea.vmem %s6, 8
        %v1307 = vld [vmem:[%s1306] sm:$0xff]
        %1309 = vset.pattern.permute.xlu0 32
        %1310 = vperm.xlu0 %1309, %v1302
        %v1311 = vpop.permute.xlu0 %1310
        %v1313 = vsel %vm503, %v1311, %v1302
        %v1314 = vsel %vm504, %v1311, %v1303
        %1316 = vset.pattern.permute.xlu0 31
        %1317 = vperm.xlu0 %1316, %v1314
        %v1318 = vpop.permute.xlu0 %1317
        %v1320 = vsel %vm516, %v1318, %v1313
        %v1321 = vsel %vm517, %v1318, %v1314
        %v1323 = vsel %vm318, %v1321, 0
        %1325 = vmatprep.subr.mxu0 %v373
        %1326 = vmatpush1.msra.mxu0 %v372
        %1327 = vmatprep.subr.mxu0 %v370
        %1328 = vmatpush1.msra.mxu0 %v369
        %1329 = vmatprep.subr.mxu0 %v367
        %1330 = vmatpush1.msra.mxu0 %v366
        %1331 = vmatprep.subr.mxu0 %v364
        %1332 = vmatpush1.msra.mxu0 %v363
        %1333 = vmatprep.subr.mxu0 %v361
        %1334 = vmatpush1.msra.mxu0 %v360
        %1335 = vmatprep.subr.mxu0 %v358
        %1336 = vmatpush1.msra.mxu0 %v357
        %1337 = vmatprep.subr.mxu0 %v355
        %1338 = vmatpush1.msra.mxu0 %v354
        %1339 = vmatprep.subr.mxu0 %v352
        %1340 = vmatpush1.msra.mxu0 %v351
        %1341 = vmatprep.subr.mxu0 %v349
        %1342 = vmatpush1.msra.mxu0 %v348
        %1343 = vmatprep.subr.mxu0 %v346
        %1344 = vmatpush1.msra.mxu0 %v345
        %1345 = vmatprep.subr.mxu0 %v343
        %1346 = vmatpush1.msra.mxu0 %v342
        %1347 = vmatprep.subr.mxu0 %v340
        %1348 = vmatpush1.msra.mxu0 %v339
        %1349 = vmatprep.subr.mxu0 %v337
        %1350 = vmatpush1.msra.mxu0 %v336
        %1351 = vmatprep.subr.mxu0 %v334
        %1352 = vmatpush1.msra.mxu0 %v333
        %1353 = vmatprep.subr.mxu0 %v331
        %1354 = vmatpush1.msra.mxu0 %v330
        %1355 = vmatprep.subr.mxu0 %v328
        %1356 = vmatpush1.msra.mxu0 %v327
        %1357 = vmatprep.subr.mxu0 0.0
        %1358 = vmatpush2.msra.mxu0 0.0
        %1359 = vmatprep.subr.mxu0 0.0
        %1360 = vmatpush2.msra.mxu0 0.0
        %1361 = vmatprep.subr.mxu0 0.0
        %1362 = vmatpush2.msra.mxu0 0.0
        %1363 = vmatprep.subr.mxu0 0.0
        %1364 = vmatpush2.msra.mxu0 0.0
        %1365 = vmatprep.subr.mxu0 0.0
        %1366 = vmatpush2.msra.mxu0 0.0
        %1367 = vmatprep.subr.mxu0 0.0
        %1368 = vmatpush2.msra.mxu0 0.0
        %1369 = vmatprep.subr.mxu0 0.0
        %1370 = vmatpush2.msra.mxu0 0.0
        %1371 = vmatprep.subr.mxu0 0.0
        %1372 = vmatpush2.msra.mxu0 0.0
        %1373 = vmatprep.subr.mxu0 %v397
        %1374 = vmatpush2.msra.mxu0 %v396
        %1375 = vmatprep.subr.mxu0 %v394
        %1376 = vmatpush2.msra.mxu0 %v393
        %1377 = vmatprep.subr.mxu0 %v391
        %1378 = vmatpush2.msra.mxu0 %v390
        %1379 = vmatprep.subr.mxu0 %v388
        %1380 = vmatpush2.msra.mxu0 %v387
        %1381 = vmatprep.subr.mxu0 %v385
        %1382 = vmatpush2.msra.mxu0 %v384
        %1383 = vmatprep.subr.mxu0 %v382
        %1384 = vmatpush2.msra.mxu0 %v381
        %1385 = vmatprep.subr.mxu0 %v379
        %1386 = vmatpush2.msra.mxu0 %v378
        %1387 = vmatprep.subr.mxu0 %v376
        %1388 = vmatpush2.msra.mxu0 %v375
        %1389 = vmatprep.mubr.f32.mxu0 %v1323
        %1390 = vmatmul.mubr.f32.gmra.mxu0 %v1320
        %v1391 = vpop.f32.mrf.mxu0
        %v1392 = vadd.f32 0.0, %v1391
        %v1393 = vpop.f32.mrf.mxu0
        %v1394 = vadd.f32 0.0, %v1393
        %1395 = vdwg.mxu0
        %1396 = vmatprep.subr.mxu0 0.0
        %1397 = vmatpush1.msra.mxu0 %v374
        %1398 = vmatprep.subr.mxu0 0.0
        %1399 = vmatpush1.msra.mxu0 %v371
        %1400 = vmatprep.subr.mxu0 0.0
        %1401 = vmatpush1.msra.mxu0 %v368
        %1402 = vmatprep.subr.mxu0 0.0
        %1403 = vmatpush1.msra.mxu0 %v365
        %1404 = vmatprep.subr.mxu0 0.0
        %1405 = vmatpush1.msra.mxu0 %v362
        %1406 = vmatprep.subr.mxu0 0.0
        %1407 = vmatpush1.msra.mxu0 %v359
        %1408 = vmatprep.subr.mxu0 0.0
        %1409 = vmatpush1.msra.mxu0 %v356
        %1410 = vmatprep.subr.mxu0 0.0
        %1411 = vmatpush1.msra.mxu0 %v353
        %1412 = vmatprep.subr.mxu0 0.0
        %1413 = vmatpush1.msra.mxu0 %v350
        %1414 = vmatprep.subr.mxu0 0.0
        %1415 = vmatpush1.msra.mxu0 %v347
        %1416 = vmatprep.subr.mxu0 0.0
        %1417 = vmatpush1.msra.mxu0 %v344
        %1418 = vmatprep.subr.mxu0 0.0
        %1419 = vmatpush1.msra.mxu0 %v341
        %1420 = vmatprep.subr.mxu0 0.0
        %1421 = vmatpush1.msra.mxu0 %v338
        %1422 = vmatprep.subr.mxu0 0.0
        %1423 = vmatpush1.msra.mxu0 %v335
        %1424 = vmatprep.subr.mxu0 0.0
        %1425 = vmatpush1.msra.mxu0 %v332
        %1426 = vmatprep.subr.mxu0 0.0
        %1427 = vmatpush1.msra.mxu0 %v329
        %1428 = vmatprep.subr.mxu0 0.0
        %1429 = vmatpush2.msra.mxu0 0.0
        %1430 = vmatprep.subr.mxu0 0.0
        %1431 = vmatpush2.msra.mxu0 0.0
        %1432 = vmatprep.subr.mxu0 0.0
        %1433 = vmatpush2.msra.mxu0 0.0
        %1434 = vmatprep.subr.mxu0 0.0
        %1435 = vmatpush2.msra.mxu0 0.0
        %1436 = vmatprep.subr.mxu0 0.0
        %1437 = vmatpush2.msra.mxu0 0.0
        %1438 = vmatprep.subr.mxu0 0.0
        %1439 = vmatpush2.msra.mxu0 0.0
        %1440 = vmatprep.subr.mxu0 0.0
        %1441 = vmatpush2.msra.mxu0 0.0
        %1442 = vmatprep.subr.mxu0 0.0
        %1443 = vmatpush2.msra.mxu0 0.0
        %1444 = vmatprep.subr.mxu0 0.0
        %1445 = vmatpush2.msra.mxu0 %v398
        %1446 = vmatprep.subr.mxu0 0.0
        %1447 = vmatpush2.msra.mxu0 %v395
        %1448 = vmatprep.subr.mxu0 0.0
        %1449 = vmatpush2.msra.mxu0 %v392
        %1450 = vmatprep.subr.mxu0 0.0
        %1451 = vmatpush2.msra.mxu0 %v389
        %1452 = vmatprep.subr.mxu0 0.0
        %1453 = vmatpush2.msra.mxu0 %v386
        %1454 = vmatprep.subr.mxu0 0.0
        %1455 = vmatpush2.msra.mxu0 %v383
        %1456 = vmatprep.subr.mxu0 0.0
        %1457 = vmatpush2.msra.mxu0 %v380
        %1458 = vmatprep.subr.mxu0 0.0
        %1459 = vmatpush2.msra.mxu0 %v377
        %1460 = vmatprep.mubr.f32.mxu0 %v1323
        %1461 = vmatmul.mubr.f32.gmra.mxu0 %v1320
        %v1462 = vpop.f32.mrf.mxu0
        %v1463 = vadd.f32 0.0, %v1462
        %v1464 = vpop.f32.mrf.mxu0
        %1465 = vdwg.mxu0
        %1467 = vset.pattern.permute.xlu0 32
        %1468 = vperm.xlu0 %1467, %v1392
        %v1469 = vpop.permute.xlu0 %1468
        %v1471 = vsel %vm685, %v1469, %v1392
        %v1472 = vsel %vm686, %v1469, %v1394
        %v1473 = vsel %vm687, %v1469, %v1463
        %1475 = vset.pattern.permute.xlu0 95
        %1476 = vperm.xlu0 %1475, %v1473
        %v1477 = vpop.permute.xlu0 %1476
        %v1479 = vsel %vm712, %v1477, %v1471
        %v1480 = vsel %vm713, %v1477, %v1472
        %v1481 = vsel %vm714, %v1477, %v1473
        %1483 = vset.pattern.permute.xlu0 0
        %1484 = vperm.xlu0 %1483, %v1305
        %v1485 = vpop.permute.xlu0 %1484
        %v1487 = vmul.f32 %v1485, %v1479
        %v1488 = vmul.f32 %v1485, %v1480
        %v1489 = vmul.f32 %v1485, %v1481
        %v1490 = vand.u32 2147483647, %v1487
        %vm1491 = vcmp.le.f32.partialorder %v1490, 0.7853982
        %vm1492 = vcmp.lt.s32.totalorder %v1487, 0
        %v1493 = vand.u32 %v1487, 2139095040
        %v1494 = vshrl.u32 %v1493, 23
        %v1495 = vsub.s32 %v1494, 127
        %v1496 = vand.u32 2147483647, %v1487
        %v1497 = vand.u32 %v1496, 8388607
        %v1498 = vor.u32 %v1497, 8388608
        %v1499 = vsub.s32 0, %v1498
        %v1500 = vadd.s32 %v1495, 1
        %vm1501 = vcmp.gt.s32.totalorder %v1500, 0
        %v1502 = vsel %vm1501, %v1500, 0
        %v1503 = vshrl.u32 %v1502, 5
        %v1504 = vand.u32 %v1502, 31
        %v1505 = vsub.s32 32, %v1504
        %v1506 = vshrl.u32 683565275, %v1505
        %v1507 = vshll.u32 683565275, %v1504
        %v1508 = vshrl.u32 2475754826, %v1505
        %v1509 = vor.u32 %v1507, %v1508
        %v1510 = vshll.u32 2475754826, %v1504
        %v1511 = vshrl.u32 2131351028, %v1505
        %v1512 = vor.u32 %v1510, %v1511
        %v1513 = vshll.u32 2131351028, %v1504
        %v1514 = vshrl.u32 2102212464, %v1505
        %v1515 = vor.u32 %v1513, %v1514
        %v1516 = vshll.u32 2102212464, %v1504
        %v1517 = vshrl.u32 920167782, %v1505
        %v1518 = vor.u32 %v1516, %v1517
        %v1519 = vshll.u32 920167782, %v1504
        %v1520 = vshrl.u32 1326507024, %v1505
        %v1521 = vor.u32 %v1519, %v1520
        %vm1522 = vcmp.lt.s32.totalorder %v1503, 1
        %vm1523 = vcmp.lt.s32.totalorder %v1503, 2
        %vm1524 = vcmp.lt.s32.totalorder %v1503, 3
        %vm1525 = vcmp.lt.s32.totalorder %v1503, 4
        %v1526 = vsel %vm1522, %v1506, %v1509
        %v1527 = vsel %vm1525, %v1515, 2102212464
        %v1528 = vsel %vm1524, %v1512, %v1527
        %v1529 = vsel %vm1523, %v1526, %v1528
        %v1530 = vsel %vm1522, %v1509, %v1512
        %v1531 = vsel %vm1525, %v1518, 920167782
        %v1532 = vsel %vm1524, %v1515, %v1531
        %v1533 = vsel %vm1523, %v1530, %v1532
        %v1534 = vsel %vm1522, %v1512, %v1515
        %v1535 = vsel %vm1525, %v1521, 1326507024
        %v1536 = vsel %vm1524, %v1518, %v1535
        %v1537 = vsel %vm1523, %v1534, %v1536
        %v1538 = vshll.u32 %v1498, 8
        %v1539 = vmul.u32.u64.compose %v1538, %v1537
        %v1540 = vextract.low.u32 %v1539
        %v1541 = vextract.high.u32 %v1539
        %v1542 = vmul.u32.u64.compose %v1538, %v1533
        %v1543 = vextract.low.u32 %v1542
        %v1544 = vextract.high.u32 %v1542
        %v1545 = vmul.u32 %v1538, %v1529
        %v1546 = vadd.s32 %v1541, %v1543
        %vm1547 = vc.u32 %v1541, %v1543
        %v1548 = vadd.s32 %v1544, 1
        %v1549 = vsel %vm1547, %v1548, %v1544
        %v1550 = vadd.s32 %v1545, %v1549
        %v1551 = vadd.s32 %v1550, 536870912
        %v1552 = vshrl.u32 %v1551, 30
        %v1553 = vshll.u32 %v1552, 30
        %v1554 = vsub.s32 %v1550, %v1553
        %vm1555 = vcmp.lt.s32.totalorder %v1554, 0
        %v1556 = vsub.s32 0, %v1554
        %v1557 = vsel %vm1555, %v1556, %v1554
        %v1558 = vclz %v1557
        %v1559 = vsub.s32 %v1558, 2
        %vm1560 = vcmp.gt.s32.totalorder 0, %v1559
        %v1561 = vsel %vm1560, 0, %v1559
        %v1562 = vsub.s32 32, %v1561
        %v1563 = vshll.u32 %v1554, %v1561
        %v1564 = vshrl.u32 %v1546, %v1562
        %v1565 = vor.u32 %v1563, %v1564
        %v1566 = vsub.s32 4294967266, %v1561
        %v1567 = vadd.s32 %v1566, 127
        %v1568 = vshll.u32 %v1567, 23
        %v1569 = vor.u32 4788187, %v1568
        %v1570 = vand.u32 2147483647, %v1569
        %v1572 = vcvt.s32.f32 %v1565
        %v1573 = vmul.f32 %v1572, %v1570
        %v1574 = vxor.u32 %v1573, 2147483648
        %v1575 = vsel %vm1492, %v1574, %v1573
        %v1576 = vsub.s32 4, %v1552
        %v1577 = vsel %vm1492, %v1576, %v1552
        %v1578 = vsel %vm1491, %v1487, %v1575
        %v1579 = vsel %vm1491, 0, %v1577
        %v1580 = vcosq.f32.pop %v1578
        %v1581 = vsinq.f32.pop %v1578
        %vm1582 = vweird.f32 %v1487
        %v1583 = vand.u32 %v1579, 3
        %vm1584 = vcmp.lt.s32.totalorder %v1583, 2
        %vm1585 = vcmp.eq.s32.totalorder %v1583, 0
        %v1586 = vxor.u32 %v1581, 2147483648
        %v1587 = vsel %vm1585, %v1580, %v1586
        %vm1588 = vcmp.eq.s32.totalorder %v1583, 2
        %v1589 = vxor.u32 %v1580, 2147483648
        %v1590 = vsel %vm1588, %v1589, %v1581
        %v1591 = vsel %vm1584, %v1587, %v1590
        %v1592 = vsel %vm1582, nan, %v1591
        %v1593 = vand.u32 2147483647, %v1488
        %vm1594 = vcmp.le.f32.partialorder %v1593, 0.7853982
        %vm1595 = vcmp.lt.s32.totalorder %v1488, 0
        %v1596 = vand.u32 %v1488, 2139095040
        %v1597 = vshrl.u32 %v1596, 23
        %v1598 = vsub.s32 %v1597, 127
        %v1599 = vand.u32 2147483647, %v1488
        %v1600 = vand.u32 %v1599, 8388607
        %v1601 = vor.u32 %v1600, 8388608
        %v1602 = vsub.s32 0, %v1601
        %v1603 = vadd.s32 %v1598, 1
        %vm1604 = vcmp.gt.s32.totalorder %v1603, 0
        %v1605 = vsel %vm1604, %v1603, 0
        %v1606 = vshrl.u32 %v1605, 5
        %v1607 = vand.u32 %v1605, 31
        %v1608 = vsub.s32 32, %v1607
        %v1609 = vshrl.u32 683565275, %v1608
        %v1610 = vshll.u32 683565275, %v1607
        %v1611 = vshrl.u32 2475754826, %v1608
        %v1612 = vor.u32 %v1610, %v1611
        %v1613 = vshll.u32 2475754826, %v1607
        %v1614 = vshrl.u32 2131351028, %v1608
        %v1615 = vor.u32 %v1613, %v1614
        %v1616 = vshll.u32 2131351028, %v1607
        %v1617 = vshrl.u32 2102212464, %v1608
        %v1618 = vor.u32 %v1616, %v1617
        %v1619 = vshll.u32 2102212464, %v1607
        %v1620 = vshrl.u32 920167782, %v1608
        %v1621 = vor.u32 %v1619, %v1620
        %v1622 = vshll.u32 920167782, %v1607
        %v1623 = vshrl.u32 1326507024, %v1608
        %v1624 = vor.u32 %v1622, %v1623
        %vm1625 = vcmp.lt.s32.totalorder %v1606, 1
        %vm1626 = vcmp.lt.s32.totalorder %v1606, 2
        %vm1627 = vcmp.lt.s32.totalorder %v1606, 3
        %vm1628 = vcmp.lt.s32.totalorder %v1606, 4
        %v1629 = vsel %vm1625, %v1609, %v1612
        %v1630 = vsel %vm1628, %v1618, 2102212464
        %v1631 = vsel %vm1627, %v1615, %v1630
        %v1632 = vsel %vm1626, %v1629, %v1631
        %v1633 = vsel %vm1625, %v1612, %v1615
        %v1634 = vsel %vm1628, %v1621, 920167782
        %v1635 = vsel %vm1627, %v1618, %v1634
        %v1636 = vsel %vm1626, %v1633, %v1635
        %v1637 = vsel %vm1625, %v1615, %v1618
        %v1638 = vsel %vm1628, %v1624, 1326507024
        %v1639 = vsel %vm1627, %v1621, %v1638
        %v1640 = vsel %vm1626, %v1637, %v1639
        %v1641 = vshll.u32 %v1601, 8
        %v1642 = vmul.u32.u64.compose %v1641, %v1640
        %v1643 = vextract.low.u32 %v1642
        %v1644 = vextract.high.u32 %v1642
        %v1645 = vmul.u32.u64.compose %v1641, %v1636
        %v1646 = vextract.low.u32 %v1645
        %v1647 = vextract.high.u32 %v1645
        %v1648 = vmul.u32 %v1641, %v1632
        %v1649 = vadd.s32 %v1644, %v1646
        %vm1650 = vc.u32 %v1644, %v1646
        %v1651 = vadd.s32 %v1647, 1
        %v1652 = vsel %vm1650, %v1651, %v1647
        %v1653 = vadd.s32 %v1648, %v1652
        %v1654 = vadd.s32 %v1653, 536870912
        %v1655 = vshrl.u32 %v1654, 30
        %v1656 = vshll.u32 %v1655, 30
        %v1657 = vsub.s32 %v1653, %v1656
        %vm1658 = vcmp.lt.s32.totalorder %v1657, 0
        %v1659 = vsub.s32 0, %v1657
        %v1660 = vsel %vm1658, %v1659, %v1657
        %v1661 = vclz %v1660
        %v1662 = vsub.s32 %v1661, 2
        %vm1663 = vcmp.gt.s32.totalorder 0, %v1662
        %v1664 = vsel %vm1663, 0, %v1662
        %v1665 = vsub.s32 32, %v1664
        %v1666 = vshll.u32 %v1657, %v1664
        %v1667 = vshrl.u32 %v1649, %v1665
        %v1668 = vor.u32 %v1666, %v1667
        %v1669 = vsub.s32 4294967266, %v1664
        %v1670 = vadd.s32 %v1669, 127
        %v1671 = vshll.u32 %v1670, 23
        %v1672 = vor.u32 4788187, %v1671
        %v1673 = vand.u32 2147483647, %v1672
        %v1675 = vcvt.s32.f32 %v1668
        %v1676 = vmul.f32 %v1675, %v1673
        %v1677 = vxor.u32 %v1676, 2147483648
        %v1678 = vsel %vm1595, %v1677, %v1676
        %v1679 = vsub.s32 4, %v1655
        %v1680 = vsel %vm1595, %v1679, %v1655
        %v1681 = vsel %vm1594, %v1488, %v1678
        %v1682 = vsel %vm1594, 0, %v1680
        %v1683 = vcosq.f32.pop %v1681
        %v1684 = vsinq.f32.pop %v1681
        %vm1685 = vweird.f32 %v1488
        %v1686 = vand.u32 %v1682, 3
        %vm1687 = vcmp.lt.s32.totalorder %v1686, 2
        %vm1688 = vcmp.eq.s32.totalorder %v1686, 0
        %v1689 = vxor.u32 %v1684, 2147483648
        %v1690 = vsel %vm1688, %v1683, %v1689
        %vm1691 = vcmp.eq.s32.totalorder %v1686, 2
        %v1692 = vxor.u32 %v1683, 2147483648
        %v1693 = vsel %vm1691, %v1692, %v1684
        %v1694 = vsel %vm1687, %v1690, %v1693
        %v1695 = vsel %vm1685, nan, %v1694
        %v1696 = vand.u32 2147483647, %v1489
        %vm1697 = vcmp.le.f32.partialorder %v1696, 0.7853982
        %vm1698 = vcmp.lt.s32.totalorder %v1489, 0
        %v1699 = vand.u32 %v1489, 2139095040
        %v1700 = vshrl.u32 %v1699, 23
        %v1701 = vsub.s32 %v1700, 127
        %v1702 = vand.u32 2147483647, %v1489
        %v1703 = vand.u32 %v1702, 8388607
        %v1704 = vor.u32 %v1703, 8388608
        %v1705 = vsub.s32 0, %v1704
        %v1706 = vadd.s32 %v1701, 1
        %vm1707 = vcmp.gt.s32.totalorder %v1706, 0
        %v1708 = vsel %vm1707, %v1706, 0
        %v1709 = vshrl.u32 %v1708, 5
        %v1710 = vand.u32 %v1708, 31
        %v1711 = vsub.s32 32, %v1710
        %v1712 = vshrl.u32 683565275, %v1711
        %v1713 = vshll.u32 683565275, %v1710
        %v1714 = vshrl.u32 2475754826, %v1711
        %v1715 = vor.u32 %v1713, %v1714
        %v1716 = vshll.u32 2475754826, %v1710
        %v1717 = vshrl.u32 2131351028, %v1711
        %v1718 = vor.u32 %v1716, %v1717
        %v1719 = vshll.u32 2131351028, %v1710
        %v1720 = vshrl.u32 2102212464, %v1711
        %v1721 = vor.u32 %v1719, %v1720
        %v1722 = vshll.u32 2102212464, %v1710
        %v1723 = vshrl.u32 920167782, %v1711
        %v1724 = vor.u32 %v1722, %v1723
        %v1725 = vshll.u32 920167782, %v1710
        %v1726 = vshrl.u32 1326507024, %v1711
        %v1727 = vor.u32 %v1725, %v1726
        %vm1728 = vcmp.lt.s32.totalorder %v1709, 1
        %vm1729 = vcmp.lt.s32.totalorder %v1709, 2
        %vm1730 = vcmp.lt.s32.totalorder %v1709, 3
        %vm1731 = vcmp.lt.s32.totalorder %v1709, 4
        %v1732 = vsel %vm1728, %v1712, %v1715
        %v1733 = vsel %vm1731, %v1721, 2102212464
        %v1734 = vsel %vm1730, %v1718, %v1733
        %v1735 = vsel %vm1729, %v1732, %v1734
        %v1736 = vsel %vm1728, %v1715, %v1718
        %v1737 = vsel %vm1731, %v1724, 920167782
        %v1738 = vsel %vm1730, %v1721, %v1737
        %v1739 = vsel %vm1729, %v1736, %v1738
        %v1740 = vsel %vm1728, %v1718, %v1721
        %v1741 = vsel %vm1731, %v1727, 1326507024
        %v1742 = vsel %vm1730, %v1724, %v1741
        %v1743 = vsel %vm1729, %v1740, %v1742
        %v1744 = vshll.u32 %v1704, 8
        %v1745 = vmul.u32.u64.compose %v1744, %v1743
        %v1746 = vextract.low.u32 %v1745
        %v1747 = vextract.high.u32 %v1745
        %v1748 = vmul.u32.u64.compose %v1744, %v1739
        %v1749 = vextract.low.u32 %v1748
        %v1750 = vextract.high.u32 %v1748
        %v1751 = vmul.u32 %v1744, %v1735
        %v1752 = vadd.s32 %v1747, %v1749
        %vm1753 = vc.u32 %v1747, %v1749
        %v1754 = vadd.s32 %v1750, 1
        %v1755 = vsel %vm1753, %v1754, %v1750
        %v1756 = vadd.s32 %v1751, %v1755
        %v1757 = vadd.s32 %v1756, 536870912
        %v1758 = vshrl.u32 %v1757, 30
        %v1759 = vshll.u32 %v1758, 30
        %v1760 = vsub.s32 %v1756, %v1759
        %vm1761 = vcmp.lt.s32.totalorder %v1760, 0
        %v1762 = vsub.s32 0, %v1760
        %v1763 = vsel %vm1761, %v1762, %v1760
        %v1764 = vclz %v1763
        %v1765 = vsub.s32 %v1764, 2
        %vm1766 = vcmp.gt.s32.totalorder 0, %v1765
        %v1767 = vsel %vm1766, 0, %v1765
        %v1768 = vsub.s32 32, %v1767
        %v1769 = vshll.u32 %v1760, %v1767
        %v1770 = vshrl.u32 %v1752, %v1768
        %v1771 = vor.u32 %v1769, %v1770
        %v1772 = vsub.s32 4294967266, %v1767
        %v1773 = vadd.s32 %v1772, 127
        %v1774 = vshll.u32 %v1773, 23
        %v1775 = vor.u32 4788187, %v1774
        %v1776 = vand.u32 2147483647, %v1775
        %v1778 = vcvt.s32.f32 %v1771
        %v1779 = vmul.f32 %v1778, %v1776
        %v1780 = vxor.u32 %v1779, 2147483648
        %v1781 = vsel %vm1698, %v1780, %v1779
        %v1782 = vsub.s32 4, %v1758
        %v1783 = vsel %vm1698, %v1782, %v1758
        %v1784 = vsel %vm1697, %v1489, %v1781
        %v1785 = vsel %vm1697, 0, %v1783
        %v1786 = vcosq.f32.pop %v1784
        %v1787 = vsinq.f32.pop %v1784
        %vm1788 = vweird.f32 %v1489
        %v1789 = vand.u32 %v1785, 3
        %vm1790 = vcmp.lt.s32.totalorder %v1789, 2
        %vm1791 = vcmp.eq.s32.totalorder %v1789, 0
        %v1792 = vxor.u32 %v1787, 2147483648
        %v1793 = vsel %vm1791, %v1786, %v1792
        %vm1794 = vcmp.eq.s32.totalorder %v1789, 2
        %v1795 = vxor.u32 %v1786, 2147483648
        %v1796 = vsel %vm1794, %v1795, %v1787
        %v1797 = vsel %vm1790, %v1793, %v1796
        %v1798 = vsel %vm1788, nan, %v1797
        %v1799 = vsub.f32 1.0, %v1592
        %v1800 = vsub.f32 1.0, %v1695
        %v1801 = vsub.f32 1.0, %v1798
        %1803 = vset.pattern.permute.xlu0 0
        %1804 = vperm.xlu0 %1803, %v1307
        %v1805 = vpop.permute.xlu0 %1804
        %v1807 = vmul.f32 %v1805, %v1799
        %v1808 = vmul.f32 %v1805, %v1800
        %v1809 = vmul.f32 %v1805, %v1801
        %v1810 = vadd.f32 %v1479, %v1807
        %v1811 = vadd.f32 %v1480, %v1808
        %v1812 = vadd.f32 %v1481, %v1809
        %1813 = vmatprep.subr.mxu0 %v430
        %1814 = vmatpush1.msra.mxu0 %v429
        %1815 = vmatprep.subr.mxu0 %v428
        %1816 = vmatpush1.msra.mxu0 %v427
        %1817 = vmatprep.subr.mxu0 %v426
        %1818 = vmatpush1.msra.mxu0 %v425
        %1819 = vmatprep.subr.mxu0 %v424
        %1820 = vmatpush1.msra.mxu0 %v423
        %1821 = vmatprep.subr.mxu0 %v422
        %1822 = vmatpush1.msra.mxu0 %v421
        %1823 = vmatprep.subr.mxu0 %v420
        %1824 = vmatpush1.msra.mxu0 %v419
        %1825 = vmatprep.subr.mxu0 %v418
        %1826 = vmatpush1.msra.mxu0 %v417
        %1827 = vmatprep.subr.mxu0 %v416
        %1828 = vmatpush1.msra.mxu0 %v415
        %1829 = vmatprep.subr.mxu0 %v414
        %1830 = vmatpush1.msra.mxu0 %v413
        %1831 = vmatprep.subr.mxu0 %v412
        %1832 = vmatpush1.msra.mxu0 %v411
        %1833 = vmatprep.subr.mxu0 %v410
        %1834 = vmatpush1.msra.mxu0 %v409
        %1835 = vmatprep.subr.mxu0 %v408
        %1836 = vmatpush1.msra.mxu0 %v407
        %1837 = vmatprep.subr.mxu0 %v406
        %1838 = vmatpush1.msra.mxu0 %v405
        %1839 = vmatprep.subr.mxu0 %v404
        %1840 = vmatpush1.msra.mxu0 %v403
        %1841 = vmatprep.subr.mxu0 %v402
        %1842 = vmatpush1.msra.mxu0 %v401
        %1843 = vmatprep.subr.mxu0 %v400
        %1844 = vmatpush1.msra.mxu0 %v399
        %1845 = vmatprep.subr.mxu0 %v462
        %1846 = vmatpush2.msra.mxu0 %v461
        %1847 = vmatprep.subr.mxu0 %v460
        %1848 = vmatpush2.msra.mxu0 %v459
        %1849 = vmatprep.subr.mxu0 %v458
        %1850 = vmatpush2.msra.mxu0 %v457
        %1851 = vmatprep.subr.mxu0 %v456
        %1852 = vmatpush2.msra.mxu0 %v455
        %1853 = vmatprep.subr.mxu0 %v454
        %1854 = vmatpush2.msra.mxu0 %v453
        %1855 = vmatprep.subr.mxu0 %v452
        %1856 = vmatpush2.msra.mxu0 %v451
        %1857 = vmatprep.subr.mxu0 %v450
        %1858 = vmatpush2.msra.mxu0 %v449
        %1859 = vmatprep.subr.mxu0 %v448
        %1860 = vmatpush2.msra.mxu0 %v447
        %1861 = vmatprep.subr.mxu0 %v446
        %1862 = vmatpush2.msra.mxu0 %v445
        %1863 = vmatprep.subr.mxu0 %v444
        %1864 = vmatpush2.msra.mxu0 %v443
        %1865 = vmatprep.subr.mxu0 %v442
        %1866 = vmatpush2.msra.mxu0 %v441
        %1867 = vmatprep.subr.mxu0 %v440
        %1868 = vmatpush2.msra.mxu0 %v439
        %1869 = vmatprep.subr.mxu0 %v438
        %1870 = vmatpush2.msra.mxu0 %v437
        %1871 = vmatprep.subr.mxu0 %v436
        %1872 = vmatpush2.msra.mxu0 %v435
        %1873 = vmatprep.subr.mxu0 %v434
        %1874 = vmatpush2.msra.mxu0 %v433
        %1875 = vmatprep.subr.mxu0 %v432
        %1876 = vmatpush2.msra.mxu0 %v431
        %1877 = vmatprep.mubr.f32.mxu0 %v1811
        %1878 = vmatmul.mubr.f32.gmra.mxu0 %v1810
        %v1879 = vpop.f32.mrf.mxu0
        %v1880 = vadd.f32 0.0, %v1879
        %v1881 = vpop.f32.mrf.mxu0
        %v1882 = vadd.f32 0.0, %v1881
        %1883 = vdwg.mxu0
        %1884 = vmatprep.subr.mxu0 %v494
        %1885 = vmatpush1.msra.mxu0 %v493
        %1886 = vmatprep.subr.mxu0 %v492
        %1887 = vmatpush1.msra.mxu0 %v491
        %1888 = vmatprep.subr.mxu0 %v490
        %1889 = vmatpush1.msra.mxu0 %v489
        %1890 = vmatprep.subr.mxu0 %v488
        %1891 = vmatpush1.msra.mxu0 %v487
        %1892 = vmatprep.subr.mxu0 %v486
        %1893 = vmatpush1.msra.mxu0 %v485
        %1894 = vmatprep.subr.mxu0 %v484
        %1895 = vmatpush1.msra.mxu0 %v483
        %1896 = vmatprep.subr.mxu0 %v482
        %1897 = vmatpush1.msra.mxu0 %v481
        %1898 = vmatprep.subr.mxu0 %v480
        %1899 = vmatpush1.msra.mxu0 %v479
        %1900 = vmatprep.subr.mxu0 %v478
        %1901 = vmatpush1.msra.mxu0 %v477
        %1902 = vmatprep.subr.mxu0 %v476
        %1903 = vmatpush1.msra.mxu0 %v475
        %1904 = vmatprep.subr.mxu0 %v474
        %1905 = vmatpush1.msra.mxu0 %v473
        %1906 = vmatprep.subr.mxu0 %v472
        %1907 = vmatpush1.msra.mxu0 %v471
        %1908 = vmatprep.subr.mxu0 %v470
        %1909 = vmatpush1.msra.mxu0 %v469
        %1910 = vmatprep.subr.mxu0 %v468
        %1911 = vmatpush1.msra.mxu0 %v467
        %1912 = vmatprep.subr.mxu0 %v466
        %1913 = vmatpush1.msra.mxu0 %v465
        %1914 = vmatprep.subr.mxu0 %v464
        %1915 = vmatpush1.msra.mxu0 %v463
        %1916 = vmatprep.subr.mxu0 0.0
        %1917 = vmatpush2.msra.mxu0 0.0
        %1918 = vmatprep.subr.mxu0 0.0
        %1919 = vmatpush2.msra.mxu0 0.0
        %1920 = vmatprep.subr.mxu0 0.0
        %1921 = vmatpush2.msra.mxu0 0.0
        %1922 = vmatprep.subr.mxu0 0.0
        %1923 = vmatpush2.msra.mxu0 0.0
        %1924 = vmatprep.subr.mxu0 0.0
        %1925 = vmatpush2.msra.mxu0 0.0
        %1926 = vmatprep.subr.mxu0 0.0
        %1927 = vmatpush2.msra.mxu0 0.0
        %1928 = vmatprep.subr.mxu0 0.0
        %1929 = vmatpush2.msra.mxu0 0.0
        %1930 = vmatprep.subr.mxu0 0.0
        %1931 = vmatpush2.msra.mxu0 0.0
        %1932 = vmatprep.subr.mxu0 0.0
        %1933 = vmatpush2.msra.mxu0 0.0
        %1934 = vmatprep.subr.mxu0 0.0
        %1935 = vmatpush2.msra.mxu0 0.0
        %1936 = vmatprep.subr.mxu0 0.0
        %1937 = vmatpush2.msra.mxu0 0.0
        %1938 = vmatprep.subr.mxu0 0.0
        %1939 = vmatpush2.msra.mxu0 0.0
        %1940 = vmatprep.subr.mxu0 0.0
        %1941 = vmatpush2.msra.mxu0 0.0
        %1942 = vmatprep.subr.mxu0 0.0
        %1943 = vmatpush2.msra.mxu0 0.0
        %1944 = vmatprep.subr.mxu0 0.0
        %1945 = vmatpush2.msra.mxu0 0.0
        %1946 = vmatprep.subr.mxu0 0.0
        %1947 = vmatpush2.msra.mxu0 0.0
        %1948 = vmatprep.mubr.f32.mxu0 0.0
        %1949 = vmatmul.mubr.f32.gmra.mxu0 %v1812
        %v1950 = vpop.f32.mrf.mxu0
        %v1951 = vadd.f32 %v1880, %v1950
        %v1952 = vpop.f32.mrf.mxu0
        %v1953 = vadd.f32 %v1882, %v1952
        %1954 = vdwg.mxu0
        %v1955 = vsel %vm1198, %v1951, 0.0
        %v1956 = vsel %vm1199, %v1953, 0.0
        %v1957 = vpack.c.bf16 %v1955, %v1955
        %v1958 = vpack.c.bf16 %v1956, %v1956
        %1961 = vrot.lane.b32.xlu0 %v1957, 3
        %v1962 = vpop.permute.xlu0 %1961
        %1963 = vrot.lane.b32.xlu0 %v1958, 3
        %v1964 = vpop.permute.xlu0 %1963
        %vm1965 = vcmask 23552
        %v1966 = vsel %vm1965, %v1962, %v1964
        %vm1967 = vcmask 23552
        %v1969 = vsel %vm1967, 0, %v1962
        %vm1970 = vcmask 547840
        %v1972 = vsel %vm1970, %v1966, 0
        %v1975 = vrot.slane %v1969, 4
        %v1976 = vrot.slane %v1972, 4
        %1977 = vrot.lane.b32.xlu0 %v1975, 125
        %v1978 = vpop.permute.xlu0 %1977
        %1979 = vrot.lane.b32.xlu0 %v1976, 125
        %v1980 = vpop.permute.xlu0 %1979
        %vm1981 = vcmask 1022976
        %v1982 = vsel %vm1981, %v1978, %v1980
        %1983 = vrot.lane.b32.xlu0 %v1969, 122
        %v1984 = vpop.permute.xlu0 %1983
        %1985 = vrot.lane.b32.xlu0 %v1972, 122
        %v1986 = vpop.permute.xlu0 %1985
        %vm1987 = vcmask 998400
        %v1988 = vsel %vm1987, %v1984, %v1986
        %v1990 = vsel %vm1235, %v1969, %v1982
        %v1993 = vsel %vm1235, %v1972, %v1980
        %s1995 = scalar_lea.vmem %s3, 4
        %v1996 = vld [vmem:[%s1995] sm:$0xf]
        %v1998 = vsel %vm1243, %v1996, 0
        %v2001 = vsel %vm1235, %v1988, 0
        %v2004 = vsel %vm1235, %v1986, 0
        %2006 = vmatprep.subr.bf16.mxu0 0
        %2007 = vmatpush1.bf16.msra.mxu0 0
        %2008 = vmatprep.subr.bf16.mxu0 0
        %2009 = vmatpush1.bf16.msra.mxu0 0
        %2010 = vmatprep.subr.bf16.mxu0 0
        %2011 = vmatpush1.bf16.msra.mxu0 0
        %2012 = vmatprep.subr.bf16.mxu0 0
        %2013 = vmatpush1.bf16.msra.mxu0 0
        %2014 = vmatprep.subr.bf16.mxu0 0
        %2015 = vmatpush1.bf16.msra.mxu0 0
        %2016 = vmatprep.subr.bf16.mxu0 0
        %2017 = vmatpush1.bf16.msra.mxu0 0
        %2018 = vmatprep.subr.bf16.mxu0 %v2004
        %2019 = vmatpush1.bf16.msra.mxu0 %v2001
        %2020 = vmatprep.subr.bf16.mxu0 %v1993
        %2021 = vmatpush1.bf16.msra.mxu0 %v1990
        %2022 = vmatprep.subr.bf16.mxu0 0
        %2023 = vmatpush2.bf16.msra.mxu0 0
        %2024 = vmatprep.subr.bf16.mxu0 0
        %2025 = vmatpush2.bf16.msra.mxu0 0
        %2026 = vmatprep.subr.bf16.mxu0 0
        %2027 = vmatpush2.bf16.msra.mxu0 0
        %2028 = vmatprep.subr.bf16.mxu0 0
        %2029 = vmatpush2.bf16.msra.mxu0 0
        %2030 = vmatprep.subr.bf16.mxu0 0
        %2031 = vmatpush2.bf16.msra.mxu0 0
        %2032 = vmatprep.subr.bf16.mxu0 0
        %2033 = vmatpush2.bf16.msra.mxu0 0
        %2034 = vmatprep.subr.bf16.mxu0 0
        %2035 = vmatpush2.bf16.msra.mxu0 0
        %2036 = vmatprep.subr.bf16.mxu0 0
        %2037 = vmatpush2.bf16.msra.mxu0 0
        %2038 = vmatprep.mubr.bf16.mxu0 0
        %2039 = vmatmul.mubr.bf16.gmra.mxu0 %v1998
        %v2040 = vpop.f32.mrf.mxu0
        %v2041 = vadd.f32 0.0, %v2040
        %v2042 = vpop.f32.mrf.mxu0
        %v2043 = vadd.f32 0.0, %v2042
        %v2044 = vpop.f32.mrf.mxu0
        %v2045 = vpop.f32.mrf.mxu0
        %2046 = vdwg.mxu0
        %v2047 = vadd.f32 %v1302, %v2041
        %v2048 = vadd.f32 %v1303, %v2043
        %s2049 = scalar_lea.vmem %s4, 8
        %v2050 = vld [vmem:[%s2049] sm:$0xff]
        %2052 = vset.pattern.permute.xlu0 0
        %2053 = vperm.xlu0 %2052, %v2050
        %v2054 = vpop.permute.xlu0 %2053
        %v2056 = vadd.f32 %v2047, %v2054
        %v2057 = vadd.f32 %v2048, %v2054
        %s2058 = scalar_lea.vmem %s5, 16
        %v2059 = vld [vmem:[%s2058] sm:$0xff]
        %s2060 = scalar_lea.vmem %s6, 16
        %v2061 = vld [vmem:[%s2060] sm:$0xff]
        %2063 = vset.pattern.permute.xlu0 32
        %2064 = vperm.xlu0 %2063, %v2056
        %v2065 = vpop.permute.xlu0 %2064
        %v2067 = vsel %vm503, %v2065, %v2056
        %v2068 = vsel %vm504, %v2065, %v2057
        %2070 = vset.pattern.permute.xlu0 31
        %2071 = vperm.xlu0 %2070, %v2068
        %v2072 = vpop.permute.xlu0 %2071
        %v2074 = vsel %vm516, %v2072, %v2067
        %v2075 = vsel %vm517, %v2072, %v2068
        %v2077 = vsel %vm318, %v2075, 0
        %2079 = vmatprep.subr.mxu0 %v373
        %2080 = vmatpush1.msra.mxu0 %v372
        %2081 = vmatprep.subr.mxu0 %v370
        %2082 = vmatpush1.msra.mxu0 %v369
        %2083 = vmatprep.subr.mxu0 %v367
        %2084 = vmatpush1.msra.mxu0 %v366
        %2085 = vmatprep.subr.mxu0 %v364
        %2086 = vmatpush1.msra.mxu0 %v363
        %2087 = vmatprep.subr.mxu0 %v361
        %2088 = vmatpush1.msra.mxu0 %v360
        %2089 = vmatprep.subr.mxu0 %v358
        %2090 = vmatpush1.msra.mxu0 %v357
        %2091 = vmatprep.subr.mxu0 %v355
        %2092 = vmatpush1.msra.mxu0 %v354
        %2093 = vmatprep.subr.mxu0 %v352
        %2094 = vmatpush1.msra.mxu0 %v351
        %2095 = vmatprep.subr.mxu0 %v349
        %2096 = vmatpush1.msra.mxu0 %v348
        %2097 = vmatprep.subr.mxu0 %v346
        %2098 = vmatpush1.msra.mxu0 %v345
        %2099 = vmatprep.subr.mxu0 %v343
        %2100 = vmatpush1.msra.mxu0 %v342
        %2101 = vmatprep.subr.mxu0 %v340
        %2102 = vmatpush1.msra.mxu0 %v339
        %2103 = vmatprep.subr.mxu0 %v337
        %2104 = vmatpush1.msra.mxu0 %v336
        %2105 = vmatprep.subr.mxu0 %v334
        %2106 = vmatpush1.msra.mxu0 %v333
        %2107 = vmatprep.subr.mxu0 %v331
        %2108 = vmatpush1.msra.mxu0 %v330
        %2109 = vmatprep.subr.mxu0 %v328
        %2110 = vmatpush1.msra.mxu0 %v327
        %2111 = vmatprep.subr.mxu0 0.0
        %2112 = vmatpush2.msra.mxu0 0.0
        %2113 = vmatprep.subr.mxu0 0.0
        %2114 = vmatpush2.msra.mxu0 0.0
        %2115 = vmatprep.subr.mxu0 0.0
        %2116 = vmatpush2.msra.mxu0 0.0
        %2117 = vmatprep.subr.mxu0 0.0
        %2118 = vmatpush2.msra.mxu0 0.0
        %2119 = vmatprep.subr.mxu0 0.0
        %2120 = vmatpush2.msra.mxu0 0.0
        %2121 = vmatprep.subr.mxu0 0.0
        %2122 = vmatpush2.msra.mxu0 0.0
        %2123 = vmatprep.subr.mxu0 0.0
        %2124 = vmatpush2.msra.mxu0 0.0
        %2125 = vmatprep.subr.mxu0 0.0
        %2126 = vmatpush2.msra.mxu0 0.0
        %2127 = vmatprep.subr.mxu0 %v397
        %2128 = vmatpush2.msra.mxu0 %v396
        %2129 = vmatprep.subr.mxu0 %v394
        %2130 = vmatpush2.msra.mxu0 %v393
        %2131 = vmatprep.subr.mxu0 %v391
        %2132 = vmatpush2.msra.mxu0 %v390
        %2133 = vmatprep.subr.mxu0 %v388
        %2134 = vmatpush2.msra.mxu0 %v387
        %2135 = vmatprep.subr.mxu0 %v385
        %2136 = vmatpush2.msra.mxu0 %v384
        %2137 = vmatprep.subr.mxu0 %v382
        %2138 = vmatpush2.msra.mxu0 %v381
        %2139 = vmatprep.subr.mxu0 %v379
        %2140 = vmatpush2.msra.mxu0 %v378
        %2141 = vmatprep.subr.mxu0 %v376
        %2142 = vmatpush2.msra.mxu0 %v375
        %2143 = vmatprep.mubr.f32.mxu0 %v2077
        %2144 = vmatmul.mubr.f32.gmra.mxu0 %v2074
        %v2145 = vpop.f32.mrf.mxu0
        %v2146 = vadd.f32 0.0, %v2145
        %v2147 = vpop.f32.mrf.mxu0
        %v2148 = vadd.f32 0.0, %v2147
        %2149 = vdwg.mxu0
        %2150 = vmatprep.subr.mxu0 0.0
        %2151 = vmatpush1.msra.mxu0 %v374
        %2152 = vmatprep.subr.mxu0 0.0
        %2153 = vmatpush1.msra.mxu0 %v371
        %2154 = vmatprep.subr.mxu0 0.0
        %2155 = vmatpush1.msra.mxu0 %v368
        %2156 = vmatprep.subr.mxu0 0.0
        %2157 = vmatpush1.msra.mxu0 %v365
        %2158 = vmatprep.subr.mxu0 0.0
        %2159 = vmatpush1.msra.mxu0 %v362
        %2160 = vmatprep.subr.mxu0 0.0
        %2161 = vmatpush1.msra.mxu0 %v359
        %2162 = vmatprep.subr.mxu0 0.0
        %2163 = vmatpush1.msra.mxu0 %v356
        %2164 = vmatprep.subr.mxu0 0.0
        %2165 = vmatpush1.msra.mxu0 %v353
        %2166 = vmatprep.subr.mxu0 0.0
        %2167 = vmatpush1.msra.mxu0 %v350
        %2168 = vmatprep.subr.mxu0 0.0
        %2169 = vmatpush1.msra.mxu0 %v347
        %2170 = vmatprep.subr.mxu0 0.0
        %2171 = vmatpush1.msra.mxu0 %v344
        %2172 = vmatprep.subr.mxu0 0.0
        %2173 = vmatpush1.msra.mxu0 %v341
        %2174 = vmatprep.subr.mxu0 0.0
        %2175 = vmatpush1.msra.mxu0 %v338
        %2176 = vmatprep.subr.mxu0 0.0
        %2177 = vmatpush1.msra.mxu0 %v335
        %2178 = vmatprep.subr.mxu0 0.0
        %2179 = vmatpush1.msra.mxu0 %v332
        %2180 = vmatprep.subr.mxu0 0.0
        %2181 = vmatpush1.msra.mxu0 %v329
        %2182 = vmatprep.subr.mxu0 0.0
        %2183 = vmatpush2.msra.mxu0 0.0
        %2184 = vmatprep.subr.mxu0 0.0
        %2185 = vmatpush2.msra.mxu0 0.0
        %2186 = vmatprep.subr.mxu0 0.0
        %2187 = vmatpush2.msra.mxu0 0.0
        %2188 = vmatprep.subr.mxu0 0.0
        %2189 = vmatpush2.msra.mxu0 0.0
        %2190 = vmatprep.subr.mxu0 0.0
        %2191 = vmatpush2.msra.mxu0 0.0
        %2192 = vmatprep.subr.mxu0 0.0
        %2193 = vmatpush2.msra.mxu0 0.0
        %2194 = vmatprep.subr.mxu0 0.0
        %2195 = vmatpush2.msra.mxu0 0.0
        %2196 = vmatprep.subr.mxu0 0.0
        %2197 = vmatpush2.msra.mxu0 0.0
        %2198 = vmatprep.subr.mxu0 0.0
        %2199 = vmatpush2.msra.mxu0 %v398
        %2200 = vmatprep.subr.mxu0 0.0
        %2201 = vmatpush2.msra.mxu0 %v395
        %2202 = vmatprep.subr.mxu0 0.0
        %2203 = vmatpush2.msra.mxu0 %v392
        %2204 = vmatprep.subr.mxu0 0.0
        %2205 = vmatpush2.msra.mxu0 %v389
        %2206 = vmatprep.subr.mxu0 0.0
        %2207 = vmatpush2.msra.mxu0 %v386
        %2208 = vmatprep.subr.mxu0 0.0
        %2209 = vmatpush2.msra.mxu0 %v383
        %2210 = vmatprep.subr.mxu0 0.0
        %2211 = vmatpush2.msra.mxu0 %v380
        %2212 = vmatprep.subr.mxu0 0.0
        %2213 = vmatpush2.msra.mxu0 %v377
        %2214 = vmatprep.mubr.f32.mxu0 %v2077
        %2215 = vmatmul.mubr.f32.gmra.mxu0 %v2074
        %v2216 = vpop.f32.mrf.mxu0
        %v2217 = vadd.f32 0.0, %v2216
        %v2218 = vpop.f32.mrf.mxu0
        %2219 = vdwg.mxu0
        %2221 = vset.pattern.permute.xlu0 32
        %2222 = vperm.xlu0 %2221, %v2146
        %v2223 = vpop.permute.xlu0 %2222
        %v2225 = vsel %vm685, %v2223, %v2146
        %v2226 = vsel %vm686, %v2223, %v2148
        %v2227 = vsel %vm687, %v2223, %v2217
        %2229 = vset.pattern.permute.xlu0 95
        %2230 = vperm.xlu0 %2229, %v2227
        %v2231 = vpop.permute.xlu0 %2230
        %v2233 = vsel %vm712, %v2231, %v2225
        %v2234 = vsel %vm713, %v2231, %v2226
        %v2235 = vsel %vm714, %v2231, %v2227
        %2237 = vset.pattern.permute.xlu0 0
        %2238 = vperm.xlu0 %2237, %v2059
        %v2239 = vpop.permute.xlu0 %2238
        %v2241 = vmul.f32 %v2239, %v2233
        %v2242 = vmul.f32 %v2239, %v2234
        %v2243 = vmul.f32 %v2239, %v2235
        %v2244 = vand.u32 2147483647, %v2241
        %vm2245 = vcmp.le.f32.partialorder %v2244, 0.7853982
        %vm2246 = vcmp.lt.s32.totalorder %v2241, 0
        %v2247 = vand.u32 %v2241, 2139095040
        %v2248 = vshrl.u32 %v2247, 23
        %v2249 = vsub.s32 %v2248, 127
        %v2250 = vand.u32 2147483647, %v2241
        %v2251 = vand.u32 %v2250, 8388607
        %v2252 = vor.u32 %v2251, 8388608
        %v2253 = vsub.s32 0, %v2252
        %v2254 = vadd.s32 %v2249, 1
        %vm2255 = vcmp.gt.s32.totalorder %v2254, 0
        %v2256 = vsel %vm2255, %v2254, 0
        %v2257 = vshrl.u32 %v2256, 5
        %v2258 = vand.u32 %v2256, 31
        %v2259 = vsub.s32 32, %v2258
        %v2260 = vshrl.u32 683565275, %v2259
        %v2261 = vshll.u32 683565275, %v2258
        %v2262 = vshrl.u32 2475754826, %v2259
        %v2263 = vor.u32 %v2261, %v2262
        %v2264 = vshll.u32 2475754826, %v2258
        %v2265 = vshrl.u32 2131351028, %v2259
        %v2266 = vor.u32 %v2264, %v2265
        %v2267 = vshll.u32 2131351028, %v2258
        %v2268 = vshrl.u32 2102212464, %v2259
        %v2269 = vor.u32 %v2267, %v2268
        %v2270 = vshll.u32 2102212464, %v2258
        %v2271 = vshrl.u32 920167782, %v2259
        %v2272 = vor.u32 %v2270, %v2271
        %v2273 = vshll.u32 920167782, %v2258
        %v2274 = vshrl.u32 1326507024, %v2259
        %v2275 = vor.u32 %v2273, %v2274
        %vm2276 = vcmp.lt.s32.totalorder %v2257, 1
        %vm2277 = vcmp.lt.s32.totalorder %v2257, 2
        %vm2278 = vcmp.lt.s32.totalorder %v2257, 3
        %vm2279 = vcmp.lt.s32.totalorder %v2257, 4
        %v2280 = vsel %vm2276, %v2260, %v2263
        %v2281 = vsel %vm2279, %v2269, 2102212464
        %v2282 = vsel %vm2278, %v2266, %v2281
        %v2283 = vsel %vm2277, %v2280, %v2282
        %v2284 = vsel %vm2276, %v2263, %v2266
        %v2285 = vsel %vm2279, %v2272, 920167782
        %v2286 = vsel %vm2278, %v2269, %v2285
        %v2287 = vsel %vm2277, %v2284, %v2286
        %v2288 = vsel %vm2276, %v2266, %v2269
        %v2289 = vsel %vm2279, %v2275, 1326507024
        %v2290 = vsel %vm2278, %v2272, %v2289
        %v2291 = vsel %vm2277, %v2288, %v2290
        %v2292 = vshll.u32 %v2252, 8
        %v2293 = vmul.u32.u64.compose %v2292, %v2291
        %v2294 = vextract.low.u32 %v2293
        %v2295 = vextract.high.u32 %v2293
        %v2296 = vmul.u32.u64.compose %v2292, %v2287
        %v2297 = vextract.low.u32 %v2296
        %v2298 = vextract.high.u32 %v2296
        %v2299 = vmul.u32 %v2292, %v2283
        %v2300 = vadd.s32 %v2295, %v2297
        %vm2301 = vc.u32 %v2295, %v2297
        %v2302 = vadd.s32 %v2298, 1
        %v2303 = vsel %vm2301, %v2302, %v2298
        %v2304 = vadd.s32 %v2299, %v2303
        %v2305 = vadd.s32 %v2304, 536870912
        %v2306 = vshrl.u32 %v2305, 30
        %v2307 = vshll.u32 %v2306, 30
        %v2308 = vsub.s32 %v2304, %v2307
        %vm2309 = vcmp.lt.s32.totalorder %v2308, 0
        %v2310 = vsub.s32 0, %v2308
        %v2311 = vsel %vm2309, %v2310, %v2308
        %v2312 = vclz %v2311
        %v2313 = vsub.s32 %v2312, 2
        %vm2314 = vcmp.gt.s32.totalorder 0, %v2313
        %v2315 = vsel %vm2314, 0, %v2313
        %v2316 = vsub.s32 32, %v2315
        %v2317 = vshll.u32 %v2308, %v2315
        %v2318 = vshrl.u32 %v2300, %v2316
        %v2319 = vor.u32 %v2317, %v2318
        %v2320 = vsub.s32 4294967266, %v2315
        %v2321 = vadd.s32 %v2320, 127
        %v2322 = vshll.u32 %v2321, 23
        %v2323 = vor.u32 4788187, %v2322
        %v2324 = vand.u32 2147483647, %v2323
        %v2326 = vcvt.s32.f32 %v2319
        %v2327 = vmul.f32 %v2326, %v2324
        %v2328 = vxor.u32 %v2327, 2147483648
        %v2329 = vsel %vm2246, %v2328, %v2327
        %v2330 = vsub.s32 4, %v2306
        %v2331 = vsel %vm2246, %v2330, %v2306
        %v2332 = vsel %vm2245, %v2241, %v2329
        %v2333 = vsel %vm2245, 0, %v2331
        %v2334 = vcosq.f32.pop %v2332
        %v2335 = vsinq.f32.pop %v2332
        %vm2336 = vweird.f32 %v2241
        %v2337 = vand.u32 %v2333, 3
        %vm2338 = vcmp.lt.s32.totalorder %v2337, 2
        %vm2339 = vcmp.eq.s32.totalorder %v2337, 0
        %v2340 = vxor.u32 %v2335, 2147483648
        %v2341 = vsel %vm2339, %v2334, %v2340
        %vm2342 = vcmp.eq.s32.totalorder %v2337, 2
        %v2343 = vxor.u32 %v2334, 2147483648
        %v2344 = vsel %vm2342, %v2343, %v2335
        %v2345 = vsel %vm2338, %v2341, %v2344
        %v2346 = vsel %vm2336, nan, %v2345
        %v2347 = vand.u32 2147483647, %v2242
        %vm2348 = vcmp.le.f32.partialorder %v2347, 0.7853982
        %vm2349 = vcmp.lt.s32.totalorder %v2242, 0
        %v2350 = vand.u32 %v2242, 2139095040
        %v2351 = vshrl.u32 %v2350, 23
        %v2352 = vsub.s32 %v2351, 127
        %v2353 = vand.u32 2147483647, %v2242
        %v2354 = vand.u32 %v2353, 8388607
        %v2355 = vor.u32 %v2354, 8388608
        %v2356 = vsub.s32 0, %v2355
        %v2357 = vadd.s32 %v2352, 1
        %vm2358 = vcmp.gt.s32.totalorder %v2357, 0
        %v2359 = vsel %vm2358, %v2357, 0
        %v2360 = vshrl.u32 %v2359, 5
        %v2361 = vand.u32 %v2359, 31
        %v2362 = vsub.s32 32, %v2361
        %v2363 = vshrl.u32 683565275, %v2362
        %v2364 = vshll.u32 683565275, %v2361
        %v2365 = vshrl.u32 2475754826, %v2362
        %v2366 = vor.u32 %v2364, %v2365
        %v2367 = vshll.u32 2475754826, %v2361
        %v2368 = vshrl.u32 2131351028, %v2362
        %v2369 = vor.u32 %v2367, %v2368
        %v2370 = vshll.u32 2131351028, %v2361
        %v2371 = vshrl.u32 2102212464, %v2362
        %v2372 = vor.u32 %v2370, %v2371
        %v2373 = vshll.u32 2102212464, %v2361
        %v2374 = vshrl.u32 920167782, %v2362
        %v2375 = vor.u32 %v2373, %v2374
        %v2376 = vshll.u32 920167782, %v2361
        %v2377 = vshrl.u32 1326507024, %v2362
        %v2378 = vor.u32 %v2376, %v2377
        %vm2379 = vcmp.lt.s32.totalorder %v2360, 1
        %vm2380 = vcmp.lt.s32.totalorder %v2360, 2
        %vm2381 = vcmp.lt.s32.totalorder %v2360, 3
        %vm2382 = vcmp.lt.s32.totalorder %v2360, 4
        %v2383 = vsel %vm2379, %v2363, %v2366
        %v2384 = vsel %vm2382, %v2372, 2102212464
        %v2385 = vsel %vm2381, %v2369, %v2384
        %v2386 = vsel %vm2380, %v2383, %v2385
        %v2387 = vsel %vm2379, %v2366, %v2369
        %v2388 = vsel %vm2382, %v2375, 920167782
        %v2389 = vsel %vm2381, %v2372, %v2388
        %v2390 = vsel %vm2380, %v2387, %v2389
        %v2391 = vsel %vm2379, %v2369, %v2372
        %v2392 = vsel %vm2382, %v2378, 1326507024
        %v2393 = vsel %vm2381, %v2375, %v2392
        %v2394 = vsel %vm2380, %v2391, %v2393
        %v2395 = vshll.u32 %v2355, 8
        %v2396 = vmul.u32.u64.compose %v2395, %v2394
        %v2397 = vextract.low.u32 %v2396
        %v2398 = vextract.high.u32 %v2396
        %v2399 = vmul.u32.u64.compose %v2395, %v2390
        %v2400 = vextract.low.u32 %v2399
        %v2401 = vextract.high.u32 %v2399
        %v2402 = vmul.u32 %v2395, %v2386
        %v2403 = vadd.s32 %v2398, %v2400
        %vm2404 = vc.u32 %v2398, %v2400
        %v2405 = vadd.s32 %v2401, 1
        %v2406 = vsel %vm2404, %v2405, %v2401
        %v2407 = vadd.s32 %v2402, %v2406
        %v2408 = vadd.s32 %v2407, 536870912
        %v2409 = vshrl.u32 %v2408, 30
        %v2410 = vshll.u32 %v2409, 30
        %v2411 = vsub.s32 %v2407, %v2410
        %vm2412 = vcmp.lt.s32.totalorder %v2411, 0
        %v2413 = vsub.s32 0, %v2411
        %v2414 = vsel %vm2412, %v2413, %v2411
        %v2415 = vclz %v2414
        %v2416 = vsub.s32 %v2415, 2
        %vm2417 = vcmp.gt.s32.totalorder 0, %v2416
        %v2418 = vsel %vm2417, 0, %v2416
        %v2419 = vsub.s32 32, %v2418
        %v2420 = vshll.u32 %v2411, %v2418
        %v2421 = vshrl.u32 %v2403, %v2419
        %v2422 = vor.u32 %v2420, %v2421
        %v2423 = vsub.s32 4294967266, %v2418
        %v2424 = vadd.s32 %v2423, 127
        %v2425 = vshll.u32 %v2424, 23
        %v2426 = vor.u32 4788187, %v2425
        %v2427 = vand.u32 2147483647, %v2426
        %v2429 = vcvt.s32.f32 %v2422
        %v2430 = vmul.f32 %v2429, %v2427
        %v2431 = vxor.u32 %v2430, 2147483648
        %v2432 = vsel %vm2349, %v2431, %v2430
        %v2433 = vsub.s32 4, %v2409
        %v2434 = vsel %vm2349, %v2433, %v2409
        %v2435 = vsel %vm2348, %v2242, %v2432
        %v2436 = vsel %vm2348, 0, %v2434
        %v2437 = vcosq.f32.pop %v2435
        %v2438 = vsinq.f32.pop %v2435
        %vm2439 = vweird.f32 %v2242
        %v2440 = vand.u32 %v2436, 3
        %vm2441 = vcmp.lt.s32.totalorder %v2440, 2
        %vm2442 = vcmp.eq.s32.totalorder %v2440, 0
        %v2443 = vxor.u32 %v2438, 2147483648
        %v2444 = vsel %vm2442, %v2437, %v2443
        %vm2445 = vcmp.eq.s32.totalorder %v2440, 2
        %v2446 = vxor.u32 %v2437, 2147483648
        %v2447 = vsel %vm2445, %v2446, %v2438
        %v2448 = vsel %vm2441, %v2444, %v2447
        %v2449 = vsel %vm2439, nan, %v2448
        %v2450 = vand.u32 2147483647, %v2243
        %vm2451 = vcmp.le.f32.partialorder %v2450, 0.7853982
        %vm2452 = vcmp.lt.s32.totalorder %v2243, 0
        %v2453 = vand.u32 %v2243, 2139095040
        %v2454 = vshrl.u32 %v2453, 23
        %v2455 = vsub.s32 %v2454, 127
        %v2456 = vand.u32 2147483647, %v2243
        %v2457 = vand.u32 %v2456, 8388607
        %v2458 = vor.u32 %v2457, 8388608
        %v2459 = vsub.s32 0, %v2458
        %v2460 = vadd.s32 %v2455, 1
        %vm2461 = vcmp.gt.s32.totalorder %v2460, 0
        %v2462 = vsel %vm2461, %v2460, 0
        %v2463 = vshrl.u32 %v2462, 5
        %v2464 = vand.u32 %v2462, 31
        %v2465 = vsub.s32 32, %v2464
        %v2466 = vshrl.u32 683565275, %v2465
        %v2467 = vshll.u32 683565275, %v2464
        %v2468 = vshrl.u32 2475754826, %v2465
        %v2469 = vor.u32 %v2467, %v2468
        %v2470 = vshll.u32 2475754826, %v2464
        %v2471 = vshrl.u32 2131351028, %v2465
        %v2472 = vor.u32 %v2470, %v2471
        %v2473 = vshll.u32 2131351028, %v2464
        %v2474 = vshrl.u32 2102212464, %v2465
        %v2475 = vor.u32 %v2473, %v2474
        %v2476 = vshll.u32 2102212464, %v2464
        %v2477 = vshrl.u32 920167782, %v2465
        %v2478 = vor.u32 %v2476, %v2477
        %v2479 = vshll.u32 920167782, %v2464
        %v2480 = vshrl.u32 1326507024, %v2465
        %v2481 = vor.u32 %v2479, %v2480
        %vm2482 = vcmp.lt.s32.totalorder %v2463, 1
        %vm2483 = vcmp.lt.s32.totalorder %v2463, 2
        %vm2484 = vcmp.lt.s32.totalorder %v2463, 3
        %vm2485 = vcmp.lt.s32.totalorder %v2463, 4
        %v2486 = vsel %vm2482, %v2466, %v2469
        %v2487 = vsel %vm2485, %v2475, 2102212464
        %v2488 = vsel %vm2484, %v2472, %v2487
        %v2489 = vsel %vm2483, %v2486, %v2488
        %v2490 = vsel %vm2482, %v2469, %v2472
        %v2491 = vsel %vm2485, %v2478, 920167782
        %v2492 = vsel %vm2484, %v2475, %v2491
        %v2493 = vsel %vm2483, %v2490, %v2492
        %v2494 = vsel %vm2482, %v2472, %v2475
        %v2495 = vsel %vm2485, %v2481, 1326507024
        %v2496 = vsel %vm2484, %v2478, %v2495
        %v2497 = vsel %vm2483, %v2494, %v2496
        %v2498 = vshll.u32 %v2458, 8
        %v2499 = vmul.u32.u64.compose %v2498, %v2497
        %v2500 = vextract.low.u32 %v2499
        %v2501 = vextract.high.u32 %v2499
        %v2502 = vmul.u32.u64.compose %v2498, %v2493
        %v2503 = vextract.low.u32 %v2502
        %v2504 = vextract.high.u32 %v2502
        %v2505 = vmul.u32 %v2498, %v2489
        %v2506 = vadd.s32 %v2501, %v2503
        %vm2507 = vc.u32 %v2501, %v2503
        %v2508 = vadd.s32 %v2504, 1
        %v2509 = vsel %vm2507, %v2508, %v2504
        %v2510 = vadd.s32 %v2505, %v2509
        %v2511 = vadd.s32 %v2510, 536870912
        %v2512 = vshrl.u32 %v2511, 30
        %v2513 = vshll.u32 %v2512, 30
        %v2514 = vsub.s32 %v2510, %v2513
        %vm2515 = vcmp.lt.s32.totalorder %v2514, 0
        %v2516 = vsub.s32 0, %v2514
        %v2517 = vsel %vm2515, %v2516, %v2514
        %v2518 = vclz %v2517
        %v2519 = vsub.s32 %v2518, 2
        %vm2520 = vcmp.gt.s32.totalorder 0, %v2519
        %v2521 = vsel %vm2520, 0, %v2519
        %v2522 = vsub.s32 32, %v2521
        %v2523 = vshll.u32 %v2514, %v2521
        %v2524 = vshrl.u32 %v2506, %v2522
        %v2525 = vor.u32 %v2523, %v2524
        %v2526 = vsub.s32 4294967266, %v2521
        %v2527 = vadd.s32 %v2526, 127
        %v2528 = vshll.u32 %v2527, 23
        %v2529 = vor.u32 4788187, %v2528
        %v2530 = vand.u32 2147483647, %v2529
        %v2532 = vcvt.s32.f32 %v2525
        %v2533 = vmul.f32 %v2532, %v2530
        %v2534 = vxor.u32 %v2533, 2147483648
        %v2535 = vsel %vm2452, %v2534, %v2533
        %v2536 = vsub.s32 4, %v2512
        %v2537 = vsel %vm2452, %v2536, %v2512
        %v2538 = vsel %vm2451, %v2243, %v2535
        %v2539 = vsel %vm2451, 0, %v2537
        %v2540 = vcosq.f32.pop %v2538
        %v2541 = vsinq.f32.pop %v2538
        %vm2542 = vweird.f32 %v2243
        %v2543 = vand.u32 %v2539, 3
        %vm2544 = vcmp.lt.s32.totalorder %v2543, 2
        %vm2545 = vcmp.eq.s32.totalorder %v2543, 0
        %v2546 = vxor.u32 %v2541, 2147483648
        %v2547 = vsel %vm2545, %v2540, %v2546
        %vm2548 = vcmp.eq.s32.totalorder %v2543, 2
        %v2549 = vxor.u32 %v2540, 2147483648
        %v2550 = vsel %vm2548, %v2549, %v2541
        %v2551 = vsel %vm2544, %v2547, %v2550
        %v2552 = vsel %vm2542, nan, %v2551
        %v2553 = vsub.f32 1.0, %v2346
        %v2554 = vsub.f32 1.0, %v2449
        %v2555 = vsub.f32 1.0, %v2552
        %2557 = vset.pattern.permute.xlu0 0
        %2558 = vperm.xlu0 %2557, %v2061
        %v2559 = vpop.permute.xlu0 %2558
        %v2561 = vmul.f32 %v2559, %v2553
        %v2562 = vmul.f32 %v2559, %v2554
        %v2563 = vmul.f32 %v2559, %v2555
        %v2564 = vadd.f32 %v2233, %v2561
        %v2565 = vadd.f32 %v2234, %v2562
        %v2566 = vadd.f32 %v2235, %v2563
        %2567 = vmatprep.subr.mxu0 %v430
        %2568 = vmatpush1.msra.mxu0 %v429
        %2569 = vmatprep.subr.mxu0 %v428
        %2570 = vmatpush1.msra.mxu0 %v427
        %2571 = vmatprep.subr.mxu0 %v426
        %2572 = vmatpush1.msra.mxu0 %v425
        %2573 = vmatprep.subr.mxu0 %v424
        %2574 = vmatpush1.msra.mxu0 %v423
        %2575 = vmatprep.subr.mxu0 %v422
        %2576 = vmatpush1.msra.mxu0 %v421
        %2577 = vmatprep.subr.mxu0 %v420
        %2578 = vmatpush1.msra.mxu0 %v419
        %2579 = vmatprep.subr.mxu0 %v418
        %2580 = vmatpush1.msra.mxu0 %v417
        %2581 = vmatprep.subr.mxu0 %v416
        %2582 = vmatpush1.msra.mxu0 %v415
        %2583 = vmatprep.subr.mxu0 %v414
        %2584 = vmatpush1.msra.mxu0 %v413
        %2585 = vmatprep.subr.mxu0 %v412
        %2586 = vmatpush1.msra.mxu0 %v411
        %2587 = vmatprep.subr.mxu0 %v410
        %2588 = vmatpush1.msra.mxu0 %v409
        %2589 = vmatprep.subr.mxu0 %v408
        %2590 = vmatpush1.msra.mxu0 %v407
        %2591 = vmatprep.subr.mxu0 %v406
        %2592 = vmatpush1.msra.mxu0 %v405
        %2593 = vmatprep.subr.mxu0 %v404
        %2594 = vmatpush1.msra.mxu0 %v403
        %2595 = vmatprep.subr.mxu0 %v402
        %2596 = vmatpush1.msra.mxu0 %v401
        %2597 = vmatprep.subr.mxu0 %v400
        %2598 = vmatpush1.msra.mxu0 %v399
        %2599 = vmatprep.subr.mxu0 %v462
        %2600 = vmatpush2.msra.mxu0 %v461
        %2601 = vmatprep.subr.mxu0 %v460
        %2602 = vmatpush2.msra.mxu0 %v459
        %2603 = vmatprep.subr.mxu0 %v458
        %2604 = vmatpush2.msra.mxu0 %v457
        %2605 = vmatprep.subr.mxu0 %v456
        %2606 = vmatpush2.msra.mxu0 %v455
        %2607 = vmatprep.subr.mxu0 %v454
        %2608 = vmatpush2.msra.mxu0 %v453
        %2609 = vmatprep.subr.mxu0 %v452
        %2610 = vmatpush2.msra.mxu0 %v451
        %2611 = vmatprep.subr.mxu0 %v450
        %2612 = vmatpush2.msra.mxu0 %v449
        %2613 = vmatprep.subr.mxu0 %v448
        %2614 = vmatpush2.msra.mxu0 %v447
        %2615 = vmatprep.subr.mxu0 %v446
        %2616 = vmatpush2.msra.mxu0 %v445
        %2617 = vmatprep.subr.mxu0 %v444
        %2618 = vmatpush2.msra.mxu0 %v443
        %2619 = vmatprep.subr.mxu0 %v442
        %2620 = vmatpush2.msra.mxu0 %v441
        %2621 = vmatprep.subr.mxu0 %v440
        %2622 = vmatpush2.msra.mxu0 %v439
        %2623 = vmatprep.subr.mxu0 %v438
        %2624 = vmatpush2.msra.mxu0 %v437
        %2625 = vmatprep.subr.mxu0 %v436
        %2626 = vmatpush2.msra.mxu0 %v435
        %2627 = vmatprep.subr.mxu0 %v434
        %2628 = vmatpush2.msra.mxu0 %v433
        %2629 = vmatprep.subr.mxu0 %v432
        %2630 = vmatpush2.msra.mxu0 %v431
        %2631 = vmatprep.mubr.f32.mxu0 %v2565
        %2632 = vmatmul.mubr.f32.gmra.mxu0 %v2564
        %v2633 = vpop.f32.mrf.mxu0
        %v2634 = vadd.f32 0.0, %v2633
        %v2635 = vpop.f32.mrf.mxu0
        %v2636 = vadd.f32 0.0, %v2635
        %2637 = vdwg.mxu0
        %2638 = vmatprep.subr.mxu0 %v494
        %2639 = vmatpush1.msra.mxu0 %v493
        %2640 = vmatprep.subr.mxu0 %v492
        %2641 = vmatpush1.msra.mxu0 %v491
        %2642 = vmatprep.subr.mxu0 %v490
        %2643 = vmatpush1.msra.mxu0 %v489
        %2644 = vmatprep.subr.mxu0 %v488
        %2645 = vmatpush1.msra.mxu0 %v487
        %2646 = vmatprep.subr.mxu0 %v486
        %2647 = vmatpush1.msra.mxu0 %v485
        %2648 = vmatprep.subr.mxu0 %v484
        %2649 = vmatpush1.msra.mxu0 %v483
        %2650 = vmatprep.subr.mxu0 %v482
        %2651 = vmatpush1.msra.mxu0 %v481
        %2652 = vmatprep.subr.mxu0 %v480
        %2653 = vmatpush1.msra.mxu0 %v479
        %2654 = vmatprep.subr.mxu0 %v478
        %2655 = vmatpush1.msra.mxu0 %v477
        %2656 = vmatprep.subr.mxu0 %v476
        %2657 = vmatpush1.msra.mxu0 %v475
        %2658 = vmatprep.subr.mxu0 %v474
        %2659 = vmatpush1.msra.mxu0 %v473
        %2660 = vmatprep.subr.mxu0 %v472
        %2661 = vmatpush1.msra.mxu0 %v471
        %2662 = vmatprep.subr.mxu0 %v470
        %2663 = vmatpush1.msra.mxu0 %v469
        %2664 = vmatprep.subr.mxu0 %v468
        %2665 = vmatpush1.msra.mxu0 %v467
        %2666 = vmatprep.subr.mxu0 %v466
        %2667 = vmatpush1.msra.mxu0 %v465
        %2668 = vmatprep.subr.mxu0 %v464
        %2669 = vmatpush1.msra.mxu0 %v463
        %2670 = vmatprep.subr.mxu0 0.0
        %2671 = vmatpush2.msra.mxu0 0.0
        %2672 = vmatprep.subr.mxu0 0.0
        %2673 = vmatpush2.msra.mxu0 0.0
        %2674 = vmatprep.subr.mxu0 0.0
        %2675 = vmatpush2.msra.mxu0 0.0
        %2676 = vmatprep.subr.mxu0 0.0
        %2677 = vmatpush2.msra.mxu0 0.0
        %2678 = vmatprep.subr.mxu0 0.0
        %2679 = vmatpush2.msra.mxu0 0.0
        %2680 = vmatprep.subr.mxu0 0.0
        %2681 = vmatpush2.msra.mxu0 0.0
        %2682 = vmatprep.subr.mxu0 0.0
        %2683 = vmatpush2.msra.mxu0 0.0
        %2684 = vmatprep.subr.mxu0 0.0
        %2685 = vmatpush2.msra.mxu0 0.0
        %2686 = vmatprep.subr.mxu0 0.0
        %2687 = vmatpush2.msra.mxu0 0.0
        %2688 = vmatprep.subr.mxu0 0.0
        %2689 = vmatpush2.msra.mxu0 0.0
        %2690 = vmatprep.subr.mxu0 0.0
        %2691 = vmatpush2.msra.mxu0 0.0
        %2692 = vmatprep.subr.mxu0 0.0
        %2693 = vmatpush2.msra.mxu0 0.0
        %2694 = vmatprep.subr.mxu0 0.0
        %2695 = vmatpush2.msra.mxu0 0.0
        %2696 = vmatprep.subr.mxu0 0.0
        %2697 = vmatpush2.msra.mxu0 0.0
        %2698 = vmatprep.subr.mxu0 0.0
        %2699 = vmatpush2.msra.mxu0 0.0
        %2700 = vmatprep.subr.mxu0 0.0
        %2701 = vmatpush2.msra.mxu0 0.0
        %2702 = vmatprep.mubr.f32.mxu0 0.0
        %2703 = vmatmul.mubr.f32.gmra.mxu0 %v2566
        %v2704 = vpop.f32.mrf.mxu0
        %v2705 = vadd.f32 %v2634, %v2704
        %v2706 = vpop.f32.mrf.mxu0
        %v2707 = vadd.f32 %v2636, %v2706
        %2708 = vdwg.mxu0
        %v2709 = vsel %vm1198, %v2705, 0.0
        %v2710 = vsel %vm1199, %v2707, 0.0
        %v2711 = vpack.c.bf16 %v2709, %v2709
        %v2712 = vpack.c.bf16 %v2710, %v2710
        %2715 = vrot.lane.b32.xlu0 %v2711, 5
        %v2716 = vpop.permute.xlu0 %2715
        %2717 = vrot.lane.b32.xlu0 %v2712, 5
        %v2718 = vpop.permute.xlu0 %2717
        %vm2719 = vcmask 39936
        %v2720 = vsel %vm2719, %v2716, %v2718
        %vm2721 = vcmask 39936
        %v2723 = vsel %vm2721, 0, %v2716
        %vm2724 = vcmask 564224
        %v2726 = vsel %vm2724, %v2720, 0
        %v2729 = vrot.slane %v2723, 4
        %v2730 = vrot.slane %v2726, 4
        %2731 = vrot.lane.b32.xlu0 %v2729, 123
        %v2732 = vpop.permute.xlu0 %2731
        %2733 = vrot.lane.b32.xlu0 %v2730, 123
        %v2734 = vpop.permute.xlu0 %2733
        %vm2735 = vcmask 1006592
        %v2736 = vsel %vm2735, %v2732, %v2734
        %2737 = vrot.lane.b32.xlu0 %v2723, 118
        %v2738 = vpop.permute.xlu0 %2737
        %2739 = vrot.lane.b32.xlu0 %v2726, 118
        %v2740 = vpop.permute.xlu0 %2739
        %vm2741 = vcmask 965632
        %v2742 = vsel %vm2741, %v2738, %v2740
        %v2744 = vsel %vm1235, %v2723, %v2736
        %v2747 = vsel %vm1235, %v2726, %v2734
        %s2749 = scalar_lea.vmem %s3, 8
        %v2750 = vld [vmem:[%s2749] sm:$0xf]
        %v2752 = vsel %vm1243, %v2750, 0
        %v2755 = vsel %vm1235, %v2742, 0
        %v2758 = vsel %vm1235, %v2740, 0
        %2760 = vmatprep.subr.bf16.mxu0 0
        %2761 = vmatpush1.bf16.msra.mxu0 0
        %2762 = vmatprep.subr.bf16.mxu0 0
        %2763 = vmatpush1.bf16.msra.mxu0 0
        %2764 = vmatprep.subr.bf16.mxu0 0
        %2765 = vmatpush1.bf16.msra.mxu0 0
        %2766 = vmatprep.subr.bf16.mxu0 0
        %2767 = vmatpush1.bf16.msra.mxu0 0
        %2768 = vmatprep.subr.bf16.mxu0 0
        %2769 = vmatpush1.bf16.msra.mxu0 0
        %2770 = vmatprep.subr.bf16.mxu0 0
        %2771 = vmatpush1.bf16.msra.mxu0 0
        %2772 = vmatprep.subr.bf16.mxu0 %v2758
        %2773 = vmatpush1.bf16.msra.mxu0 %v2755
        %2774 = vmatprep.subr.bf16.mxu0 %v2747
        %2775 = vmatpush1.bf16.msra.mxu0 %v2744
        %2776 = vmatprep.subr.bf16.mxu0 0
        %2777 = vmatpush2.bf16.msra.mxu0 0
        %2778 = vmatprep.subr.bf16.mxu0 0
        %2779 = vmatpush2.bf16.msra.mxu0 0
        %2780 = vmatprep.subr.bf16.mxu0 0
        %2781 = vmatpush2.bf16.msra.mxu0 0
        %2782 = vmatprep.subr.bf16.mxu0 0
        %2783 = vmatpush2.bf16.msra.mxu0 0
        %2784 = vmatprep.subr.bf16.mxu0 0
        %2785 = vmatpush2.bf16.msra.mxu0 0
        %2786 = vmatprep.subr.bf16.mxu0 0
        %2787 = vmatpush2.bf16.msra.mxu0 0
        %2788 = vmatprep.subr.bf16.mxu0 0
        %2789 = vmatpush2.bf16.msra.mxu0 0
        %2790 = vmatprep.subr.bf16.mxu0 0
        %2791 = vmatpush2.bf16.msra.mxu0 0
        %2792 = vmatprep.mubr.bf16.mxu0 0
        %2793 = vmatmul.mubr.bf16.gmra.mxu0 %v2752
        %v2794 = vpop.f32.mrf.mxu0
        %v2795 = vadd.f32 0.0, %v2794
        %v2796 = vpop.f32.mrf.mxu0
        %v2797 = vadd.f32 0.0, %v2796
        %v2798 = vpop.f32.mrf.mxu0
        %v2799 = vpop.f32.mrf.mxu0
        %2800 = vdwg.mxu0
        %v2801 = vadd.f32 %v2056, %v2795
        %v2802 = vadd.f32 %v2057, %v2797
        %s2803 = scalar_lea.vmem %s4, 16
        %v2804 = vld [vmem:[%s2803] sm:$0xff]
        %2806 = vset.pattern.permute.xlu0 0
        %2807 = vperm.xlu0 %2806, %v2804
        %v2808 = vpop.permute.xlu0 %2807
        %v2810 = vadd.f32 %v2801, %v2808
        %v2811 = vadd.f32 %v2802, %v2808
        %2814 = vrot.lane.b32.xlu0 %v2810, 96
        %v2815 = vpop.permute.xlu0 %2814
        %2816 = vrot.lane.b32.xlu0 %v2811, 96
        %v2817 = vpop.permute.xlu0 %2816
        %vm2818 = vcmask 785408
        %v2819 = vsel %vm2818, %v2815, %v2817
        %2821 = vst [vmem:[%s295] sm:$0xff] %v2819
        %s2822 = sand.u32 %s197, 1
        %s2823 = scalar_lea.sflag [#allocation3], %s2822
        %s2824 = sand.u32 %s197, 1
        %s2825 = smul.addr %s2824, 8
        %s2826 = scalar_lea.vmem [#allocation2], %s2825
        // Predicated region
        $region49: #{tpu_custom_call.1} parent=47 // pred_check
          %p2827 = pneg %p207
        $region50: #{tpu_custom_call.1} parent=47 // pred_check_branch
          %2829 = sbr.rel (%p2827) target = $region52
        $region51: #{tpu_custom_call.1} parent=47 // pred_region
          %s2831 = ssub.s32 128, 128
          %2832 = vsyncadd %s2823, %s2831
          %s2833 = smul.addr %s25, 4
          %s2834 = sadd.s32 %s26, %s2833
          %s2835 = smul.addr %s2834, 128
          %s2836 = scalar_lea.hbm %s7, %s2835
          %s2838 = sshll.u32 %s2826, 4
          %s2839 = int_to_ptr.vmem [resolvable:$true] %s2838
          %2841 = dma.vmem_to_hbm [thread:$0]  %s2839, 128, %s2836, %s2823
        $region52: #{tpu_custom_call.1} parent=47 // pred_fallthru
          _
      $region48: #{tpu_custom_call.1} parent=5 // pred_fallthru
        _
      %p2842 = scmp.le.s32.totalorder 2, %s16
      // Predicated region
      $region53: #{tpu_custom_call.1} parent=5 // pred_check
        %p2843 = pneg %p2842
      $region54: #{tpu_custom_call.1} parent=5 // pred_check_branch
        %2845 = sbr.rel (%p2843) target = $region56
      $region55: #{tpu_custom_call.1} parent=5 // pred_region
        %s2846 = ssub.s32 %s16, 2
        // Predicated region
        $region57: #{tpu_custom_call.1} parent=55 // pred_check
          %p2847 = pneg %p213
        $region58: #{tpu_custom_call.1} parent=55 // pred_check_branch
          %2849 = sbr.rel (%p2847) target = $region60
        $region59: #{tpu_custom_call.1} parent=55 // pred_region
          %s2850 = sand.u32 %s198, 1
          %s2851 = scalar_lea.sflag [#allocation3], %s2850
          %s2852 = sand.u32 %s198, 1
          %s2853 = smul.addr %s2852, 8
          %s2854 = scalar_lea.vmem [#allocation2], %s2853
          %2855 = dma.done %s2851, 128
        $region60: #{tpu_custom_call.1} parent=55 // pred_fallthru
          _
      $region56: #{tpu_custom_call.1} parent=5 // pred_fallthru
        _
    $region6: #{tpu_custom_call.1} parent=1 // loop_footer
      %s20 = sadd.s32 1, %s16
    $region7: #{tpu_custom_call.1} parent=1 // loop_footer_branch
      %15 = sbr.rel target = $region3
    $region8: #{tpu_custom_call.1} parent=1 // loop_exit
      _
    %2856 = vsyncpa [#allocation3], 1
    %s2857 = scalar_lea.sflag [#allocation3], 1
    %2858 = vsyncpa %s2857, 1

</llo_original>
